<compile_context>
chip_gen: v5e
topology: v5e:2x2
jax: 0.10.0
libtpu: 0.0.40
codegen_flags: <defaults>
</compile_context>

<pallas_src>
import math

import jax
import jax.numpy as jnp
from jax import lax
from jax.experimental import pallas as pl
from jax.experimental.pallas import tpu as pltpu


def _round_up(x, m):
    return ((x + m - 1) // m) * m


def patch_embed_kernel(x_ref, w_ref, b_ref, o_ref):
    # (tm, K) @ (K, tn) on the MXU with f32 accumulation, then bias broadcast.
    acc = jnp.dot(x_ref[...], w_ref[...], preferred_element_type=jnp.float32)
    o_ref[...] = (acc + b_ref[...]).astype(o_ref.dtype)


def patch_embed_forward(x, weight, bias, *, patch_size, tm=256, tn=512):
    """
    x:      (B, C, L)            channels-first signal (PyTorch layout)
    weight: (E, C, patch_size)   Conv1d weight
    bias:   (E,)                 Conv1d bias
    returns (B, L // patch_size, E)  ==  proj(x).transpose(1, 2)
    """
    B, C, L = x.shape
    E = weight.shape[0]
    ps = patch_size
    assert L % ps == 0, "img_size must be divisible by patch_size"
    num_patches = L // ps
    M = B * num_patches
    K = C * ps

    # im2col: one row per patch, features ordered as (channel, within-patch k)
    # so they line up with weight.reshape(E, C*ps).
    x_rows = (x.reshape(B, C, num_patches, ps)
                .transpose(0, 2, 1, 3)
                .reshape(M, K))
    w_flat = jnp.transpose(weight.reshape(E, K))   # (K, E)
    b_2d = bias.reshape(1, E)

    # Row tiling: use big tiles, pad M up so the grid divides evenly.
    tm_eff = min(tm, _round_up(M, 8))
    M_pad = _round_up(M, tm_eff)
    if M_pad != M:
        x_rows = jnp.pad(x_rows, ((0, M_pad - M), (0, 0)))

    # Lane-dense tiling over the embed dim (multiple of 128); bounds the
    # per-step VMEM weight slab.
    tn_eff = tn if (tn <= E and E % tn == 0) else E
    n_tiles = E // tn_eff
    m_tiles = M_pad // tm_eff

    cost = pl.CostEstimate(
        flops=2 * M_pad * K * E,
        transcendentals=0,
        bytes_accessed=4 * (M_pad * K + K * E + E + M_pad * E),
    )

    out2d = pl.pallas_call(
        patch_embed_kernel,
        out_shape=jax.ShapeDtypeStruct((M_pad, E), x.dtype),
        grid_spec=pltpu.PrefetchScalarGridSpec(
            num_scalar_prefetch=0,
            # E-tiles outer => weight slab re-fetched only n_tiles times;
            # row tiles iterate on the fast inner axis.
            grid=(n_tiles, m_tiles),
            in_specs=[
                pl.BlockSpec((tm_eff, K), lambda j, i: (i, 0)),    # patch rows
                pl.BlockSpec((K, tn_eff), lambda j, i: (0, j)),    # weight slab
                pl.BlockSpec((1, tn_eff), lambda j, i: (0, j)),    # bias slab
            ],
            out_specs=pl.BlockSpec((tm_eff, tn_eff), lambda j, i: (i, j)),
        ),
        compiler_params=pltpu.CompilerParams(
            dimension_semantics=("parallel", "parallel")),
        cost_estimate=cost,
    )(x_rows, w_flat, b_2d)

    return out2d[:M].reshape(B, num_patches, E)


def init_patch_embed_params(key, in_chans, embed_dim, patch_size, dtype=jnp.float32):
    """Mimics nn.Conv1d default init: U(+/- 1/sqrt(fan_in)), fan_in = C*ps."""
    kw, kb = jax.random.split(key)
    bound = 1.0 / math.sqrt(in_chans * patch_size)
    weight = jax.random.uniform(kw, (embed_dim, in_chans, patch_size), dtype, -bound, bound)
    bias = jax.random.uniform(kb, (embed_dim,), dtype, -bound, bound)
    return weight, bias


def patch_embed_reference(x, weight, bias, patch_size):
    """Independent reference using XLA's conv (matches PyTorch Conv1d)."""
    y = lax.conv_general_dilated(
        x, weight,
        window_strides=(patch_size,),
        padding="VALID",
        dimension_numbers=("NCH", "OIH", "NCH"),
    )                                   # (B, E, num_patches)
    y = y + bias[None, :, None]
    return jnp.transpose(y, (0, 2, 1))  # (B, num_patches, E)


if __name__ == "__main__":
    # Shapes fixed by the module: in_chans=512, img_size=128, patch_size=4, embed_dim=1024.
    B, C, L = 2, 512, 128
    ps, E = 4, 1024

    key = jax.random.PRNGKey(0)
    kx, kp = jax.random.split(key)
    x = jax.random.normal(kx, (B, C, L), dtype=jnp.float32)
    weight, bias = init_patch_embed_params(kp, C, E, ps)

    out = patch_embed_forward(x, weight, bias, patch_size=ps)
    out = jax.block_until_ready(out)

    ref = patch_embed_reference(x, weight, bias, ps)
    assert out.shape == (B, L // ps, E)
    assert jnp.allclose(out, ref, atol=5e-3, rtol=5e-3), "mismatch vs conv reference"

    print("KERNEL_OK")
</pallas_src>

<mosaic_0001>
module attributes {stable_mosaic.version = 11 : i64} {
  func.func @patch_embed_kernel(%arg0: i32, %arg1: i32, %arg2: memref<64x2048xf32, #tpu.memory_space<vmem>>, %arg3: memref<2048x512xf32, #tpu.memory_space<vmem>>, %arg4: memref<1x512xf32, #tpu.memory_space<vmem>>, %arg5: memref<64x512xf32, #tpu.memory_space<vmem>>) attributes {dimension_semantics = [#tpu.dimension_semantics<parallel>, #tpu.dimension_semantics<parallel>], iteration_bounds = array<i64: 2, 1>, scalar_prefetch = 0 : i64, scratch_operands = 0 : i64, tpu.core_type = #tpu.core_type<tc>, window_params = [{transform_indices = @transform_0, window_bounds = array<i64: 64, 2048>}, {transform_indices = @transform_1, window_bounds = array<i64: 2048, 512>}, {transform_indices = @transform_2, window_bounds = array<i64: 1, 512>}, {transform_indices = @transform_3, window_bounds = array<i64: 64, 512>}]} {
    %c0 = arith.constant 0 : index
    %c0_0 = arith.constant 0 : index
    %0 = vector.load %arg2[%c0, %c0_0] : memref<64x2048xf32, #tpu.memory_space<vmem>>, vector<64x2048xf32>
    %c0_1 = arith.constant 0 : index
    %c0_2 = arith.constant 0 : index
    %1 = vector.load %arg3[%c0_1, %c0_2] : memref<2048x512xf32, #tpu.memory_space<vmem>>, vector<2048x512xf32>
    %cst = arith.constant dense<0.000000e+00> : vector<64x512xf32>
    %2 = tpu.matmul %0, %1, %cst {dimension_numbers = #tpu.dot_dimension_numbers<[1], [0], [0], [1], [0, 0, 1, 1], [], []>} : vector<64x2048xf32>, vector<2048x512xf32>, vector<64x512xf32> -> vector<64x512xf32>
    %c0_3 = arith.constant 0 : index
    %c0_4 = arith.constant 0 : index
    %3 = vector.load %arg4[%c0_3, %c0_4] : memref<1x512xf32, #tpu.memory_space<vmem>>, vector<1x512xf32>
    %4 = vector.broadcast %3 : vector<1x512xf32> to vector<64x512xf32>
    %5 = arith.addf %2, %4 : vector<64x512xf32>
    %c0_5 = arith.constant 0 : index
    %c0_6 = arith.constant 0 : index
    %6 = vector.load %arg5[%c0_5, %c0_6] : memref<64x512xf32, #tpu.memory_space<vmem>>, vector<64x512xf32>
    tpu.vector_store %arg5[%c0_5, %c0_6], %5 {strides = array<i32>} : memref<64x512xf32, #tpu.memory_space<vmem>>, vector<64x512xf32>,
    return
  }
  func.func @transform_0(%arg0: i32, %arg1: i32) -> (i32, i32) {
    %c0_i32 = arith.constant 0 : i32
    %c0_i32_0 = arith.constant 0 : i32
    return %arg1, %c0_i32 : i32, i32
  }
  func.func @transform_1(%arg0: i32, %arg1: i32) -> (i32, i32) {
    %c0_i32 = arith.constant 0 : i32
    %c0_i32_0 = arith.constant 0 : i32
    return %c0_i32, %arg0 : i32, i32
  }
  func.func @transform_2(%arg0: i32, %arg1: i32) -> (i32, i32) {
    %c0_i32 = arith.constant 0 : i32
    %c0_i32_0 = arith.constant 0 : i32
    return %c0_i32, %arg0 : i32, i32
  }
  func.func @transform_3(%arg0: i32, %arg1: i32) -> (i32, i32) {
    %c0_i32 = arith.constant 0 : i32
    return %arg1, %arg0 : i32, i32
  }
}

</mosaic_0001>

<llo_original>
// kernel: tpu_custom_call.1
$region0: #{tpu_custom_call.1}
  #allocation0 [shape = 'u32[]', space=smem, size = 0x4, offset = 0x4, fixed_abs, tag = 'smem constant byte address 0x4 - core index']
  #allocation1 [shape = 'u32[72,128]{1,0:T(1,128)}', space=vmem, size = 0x9000, scoped, tag = 'internal scratch']
  %s0 = inlined_call_operand.hbm [shape: f32[64,2048], index: 0, kind: input, shape index: {}]
  %s1 = inlined_call_operand.hbm [shape: f32[2048,1024], index: 1, kind: input, shape index: {}]
  %s2 = inlined_call_operand.hbm [shape: f32[1,1024], index: 2, kind: input, shape index: {}]
  %s3 = inlined_call_operand.hbm [shape: f32[64,1024], index: 3, kind: output, shape index: {}]
  %s4 = sld [smem:[#allocation0]]
  $region57: #{tpu_custom_call.1} parent=0
    _
  %s6 = ssub.s32 1, %s4
  %s7 = scalar_select 0, %s6, %s4
  $region1: #{tpu_custom_call.1} parent=0
    #allocation2 [shape = 'u8[524288]{0}', space=vmem, size = 0x80000, scoped, tag = 'input window, operand 0, single buffered']
    #allocation3 [shape = 's32[2]{0}', space=sflag, size = 0x8, scoped, tag = 'scoped memory for tpu_custom_call.1']
    #allocation4 [shape = 's32[2]{0}', space=sflag, size = 0x8, scoped, tag = 'scoped memory for tpu_custom_call.1']
    #allocation5 [shape = 'u8[8388608]{0}', space=vmem, size = 0x800000, scoped, tag = 'input window, operand 1']
    #allocation6 [shape = 's32[2]{0}', space=sflag, size = 0x8, scoped, tag = 'scoped memory for tpu_custom_call.1']
    #allocation7 [shape = 'u8[4096]{0}', space=vmem, size = 0x1000, scoped, tag = 'input window, operand 2']
    #allocation8 [shape = 'u8[262144]{0}', space=vmem, size = 0x40000, scoped, tag = 'output window, operand 0']
    %8 = vsyncpa [#allocation3], 0
    %9 = vsyncpa [#allocation6], 0
    %s10 = scalar_lea.sflag [#allocation6], 1
    %11 = vsyncpa %s10, 0
    %12 = vsyncpa [#allocation4], 0
    %s13 = scalar_lea.sflag [#allocation4], 1
    %14 = vsyncpa %s13, 0
    loop: start=0, step=1, limit=4
    $region2: #{tpu_custom_call.1} parent=1 // loop_pre_header
      _
    $region3: #{tpu_custom_call.1} parent=1 // loop_header
      %s16 = sphi 0, %s20
      %p17 = scmp.ge.s32.totalorder %s16, 4
      %s23 = sphi 0, %s35
      %s24 = sphi 0, %s31
      %s25 = sphi 0, %s23
      %s26 = sphi 0, %s24
      %s27 = sphi 0, %s25
      %s28 = sphi 0, %s26
      %s38 = sphi 0, %s40
      %s41 = sphi 0, %s38
      %s42 = sphi 0, %s41
      %s58 = sphi 0, %s42
      %s64 = sphi 0, %s66
      %s67 = sphi 0, %s64
      %s68 = sphi 0, %s67
      %s84 = sphi 0, %s68
      %s90 = sphi 0, %s92
      %s93 = sphi 0, %s90
      %s94 = sphi 0, %s93
      %s110 = sphi 0, %s94
      %s118 = sphi 0, %s120
      %s121 = sphi 0, %s118
      %s122 = sphi 0, %s121
      %s138 = sphi 0, %s122
    $region4: #{tpu_custom_call.1} parent=1 // loop_header_branch
      %19 = sbr.rel (%p17) target = $region8
    $region5: #{tpu_custom_call.1} parent=1 // loop_body
      %s21 = ssub.s32 %s16, 1
      %s22 = ssub.s32 %s16, 2
      %s29 = sadd.s32 1, %s24
      %p30 = scmp.ge.s32.totalorder %s29, 1
      %s31 = scalar_select %p30, 0, %s29
      %s32 = sadd.s32 1, %s23
      %s33 = scalar_select %p30, %s32, %s23
      %p34 = scmp.ge.s32.totalorder %s33, 2
      %s35 = scalar_select %p34, 0, %s33
      %s36 = ssub.s32 %s24, %s31
      %p37 = scmp.eq.s32.totalorder %s36, 0
      %s39 = sadd.s32 %s38, 1
      %s40 = scalar_select %p37, %s38, %s39
      %p43 = pneg %p37
      %p44 = scmp.eq.s32.totalorder %s16, 1
      %p45 = por %p43, %p44
      %p46 = scmp.ne.s32.totalorder %s38, %s41
      %p47 = scmp.eq.s32.totalorder %s16, 0
      %p48 = por %p46, %p47
      %p49 = scmp.ne.s32.totalorder %s38, %s41
      %p50 = scmp.eq.s32.totalorder %s21, 1
      %p51 = por %p49, %p50
      %p52 = scmp.ne.s32.totalorder %s41, %s42
      %p53 = scmp.eq.s32.totalorder %s21, 0
      %p54 = por %p52, %p53
      %p55 = scmp.ne.s32.totalorder %s41, %s42
      %p56 = scmp.eq.s32.totalorder %s22, 1
      %p57 = por %p55, %p56
      %p59 = scmp.ne.s32.totalorder %s42, %s58
      %p60 = scmp.eq.s32.totalorder %s22, 0
      %p61 = por %p59, %p60
      %s62 = ssub.s32 %s23, %s35
      %p63 = scmp.eq.s32.totalorder %s62, 0
      %s65 = sadd.s32 %s64, 1
      %s66 = scalar_select %p63, %s64, %s65
      %p69 = pneg %p63
      %p70 = scmp.eq.s32.totalorder %s16, 1
      %p71 = por %p69, %p70
      %p72 = scmp.ne.s32.totalorder %s64, %s67
      %p73 = scmp.eq.s32.totalorder %s16, 0
      %p74 = por %p72, %p73
      %p75 = scmp.ne.s32.totalorder %s64, %s67
      %p76 = scmp.eq.s32.totalorder %s21, 1
      %p77 = por %p75, %p76
      %p78 = scmp.ne.s32.totalorder %s67, %s68
      %p79 = scmp.eq.s32.totalorder %s21, 0
      %p80 = por %p78, %p79
      %p81 = scmp.ne.s32.totalorder %s67, %s68
      %p82 = scmp.eq.s32.totalorder %s22, 1
      %p83 = por %p81, %p82
      %p85 = scmp.ne.s32.totalorder %s68, %s84
      %p86 = scmp.eq.s32.totalorder %s22, 0
      %p87 = por %p85, %p86
      %s88 = ssub.s32 %s23, %s35
      %p89 = scmp.eq.s32.totalorder %s88, 0
      %s91 = sadd.s32 %s90, 1
      %s92 = scalar_select %p89, %s90, %s91
      %p95 = pneg %p89
      %p96 = scmp.eq.s32.totalorder %s16, 1
      %p97 = por %p95, %p96
      %p98 = scmp.ne.s32.totalorder %s90, %s93
      %p99 = scmp.eq.s32.totalorder %s16, 0
      %p100 = por %p98, %p99
      %p101 = scmp.ne.s32.totalorder %s90, %s93
      %p102 = scmp.eq.s32.totalorder %s21, 1
      %p103 = por %p101, %p102
      %p104 = scmp.ne.s32.totalorder %s93, %s94
      %p105 = scmp.eq.s32.totalorder %s21, 0
      %p106 = por %p104, %p105
      %p107 = scmp.ne.s32.totalorder %s93, %s94
      %p108 = scmp.eq.s32.totalorder %s22, 1
      %p109 = por %p107, %p108
      %p111 = scmp.ne.s32.totalorder %s94, %s110
      %p112 = scmp.eq.s32.totalorder %s22, 0
      %p113 = por %p111, %p112
      %s114 = ssub.s32 %s24, %s31
      %s115 = ssub.s32 %s23, %s35
      %s116 = sor.u32 %s114, %s115
      %p117 = scmp.eq.s32.totalorder %s116, 0
      %s119 = sadd.s32 %s118, 1
      %s120 = scalar_select %p117, %s118, %s119
      %p123 = pneg %p117
      %p124 = scmp.eq.s32.totalorder %s16, 1
      %p125 = por %p123, %p124
      %p126 = scmp.ne.s32.totalorder %s118, %s121
      %p127 = scmp.eq.s32.totalorder %s16, 0
      %p128 = por %p126, %p127
      %p129 = scmp.ne.s32.totalorder %s118, %s121
      %p130 = scmp.eq.s32.totalorder %s21, 1
      %p131 = por %p129, %p130
      %p132 = scmp.ne.s32.totalorder %s121, %s122
      %p133 = scmp.eq.s32.totalorder %s21, 0
      %p134 = por %p132, %p133
      %p135 = scmp.ne.s32.totalorder %s121, %s122
      %p136 = scmp.eq.s32.totalorder %s22, 1
      %p137 = por %p135, %p136
      %p139 = scmp.ne.s32.totalorder %s122, %s138
      %p140 = scmp.eq.s32.totalorder %s22, 0
      %p141 = por %p139, %p140
      %p142 = scmp.le.s32.totalorder 1, %s16
      %p143 = scmp.lt.s32.totalorder %s16, 3
      %p144 = pnand %p142, %p143
      %p145 = pneg %p144
      // Predicated region
      $region9: #{tpu_custom_call.1} parent=5 // pred_check
        _
      $region10: #{tpu_custom_call.1} parent=5 // pred_check_branch
        %147 = sbr.rel (%p144) target = $region12
      $region11: #{tpu_custom_call.1} parent=5 // pred_region
        %s148 = ssub.s32 %s16, 1
        // Predicated region
        $region13: #{tpu_custom_call.1} parent=11 // pred_check
          %p149 = pneg %p54
        $region14: #{tpu_custom_call.1} parent=11 // pred_check_branch
          %151 = sbr.rel (%p149) target = $region16
        $region15: #{tpu_custom_call.1} parent=11 // pred_region
          %s152 = smul.u32 8, %s26
          %154 = vsyncadd [#allocation3], 0
          %s155 = smul.addr %s152, 16
          %s156 = smul.addr %s155, 8
          %s157 = scalar_lea.hbm %s0, %s156
          %s158 = sshll.u32 %s157, 4
          %s159 = int_to_ptr.hbm [resolvable:$true] %s158
          %s160 = sshll.u32 [#allocation2], 4
          %s161 = int_to_ptr.vmem [resolvable:$true] %s160
          %166 = dma.hbm_to_vmem [thread:$0]  %s159, 16384, %s161, [#allocation3], 2048, 2048, 128
        $region16: #{tpu_custom_call.1} parent=11 // pred_fallthru
          _
      $region12: #{tpu_custom_call.1} parent=5 // pred_fallthru
        _
      %p167 = scmp.lt.s32.totalorder %s16, 2
      // Predicated region
      $region17: #{tpu_custom_call.1} parent=5 // pred_check
        %p168 = pneg %p167
      $region18: #{tpu_custom_call.1} parent=5 // pred_check_branch
        %170 = sbr.rel (%p168) target = $region20
      $region19: #{tpu_custom_call.1} parent=5 // pred_region
        // Predicated region
        $region21: #{tpu_custom_call.1} parent=19 // pred_check
          %p171 = pneg %p74
        $region22: #{tpu_custom_call.1} parent=19 // pred_check_branch
          %173 = sbr.rel (%p171) target = $region24
        $region23: #{tpu_custom_call.1} parent=19 // pred_region
          %s174 = sand.u32 %s16, 1
          %s175 = scalar_lea.sflag [#allocation6], %s174
          %s176 = sand.u32 %s64, 1
          %s177 = smul.addr %s176, 8192
          %s178 = scalar_lea.vmem [#allocation5], %s177
          %s179 = smul.u32 4, %s23
          %181 = vsyncadd %s175, 0
          %s182 = smul.addr %s179, 8
          %s183 = scalar_lea.hbm %s1, %s182
          %s184 = sshll.u32 %s183, 4
          %s185 = int_to_ptr.hbm [resolvable:$true] %s184
          %s186 = sshll.u32 %s178, 4
          %s187 = int_to_ptr.vmem [resolvable:$true] %s186
          %192 = dma.hbm_to_vmem [thread:$0]  %s185, 131072, %s187, %s175, 1024, 512, 32
        $region24: #{tpu_custom_call.1} parent=19 // pred_fallthru
          _
        // Predicated region
        $region25: #{tpu_custom_call.1} parent=19 // pred_check
          %p193 = pneg %p100
        $region26: #{tpu_custom_call.1} parent=19 // pred_check_branch
          %195 = sbr.rel (%p193) target = $region28
        $region27: #{tpu_custom_call.1} parent=19 // pred_region
          %s196 = sand.u32 %s16, 1
          %s197 = scalar_lea.sflag [#allocation6], %s196
          %s198 = sand.u32 %s90, 1
          %s199 = smul.addr %s198, 4
          %s200 = scalar_lea.vmem [#allocation7], %s199
          %s201 = smul.u32 4, %s23
          %203 = vsyncadd %s197, 0
          %s204 = scalar_lea.hbm %s2, %s201
          %s206 = sshll.u32 %s204, 4
          %s207 = int_to_ptr.hbm [resolvable:$true] %s206
          %s208 = sshll.u32 %s200, 4
          %s209 = int_to_ptr.vmem [resolvable:$true] %s208
          %211 = dma.hbm_to_vmem [thread:$0]  %s207, 64, %s209, %s197
        $region28: #{tpu_custom_call.1} parent=19 // pred_fallthru
          _
      $region20: #{tpu_custom_call.1} parent=5 // pred_fallthru
        _
      %p212 = scmp.le.s32.totalorder 1, %s16
      %p213 = scmp.lt.s32.totalorder %s16, 3
      %p214 = pnand %p212, %p213
      %p215 = pneg %p214
      // Predicated region
      $region29: #{tpu_custom_call.1} parent=5 // pred_check
        _
      $region30: #{tpu_custom_call.1} parent=5 // pred_check_branch
        %217 = sbr.rel (%p214) target = $region32
      $region31: #{tpu_custom_call.1} parent=5 // pred_region
        %s218 = ssub.s32 %s16, 1
        // Predicated region
        $region33: #{tpu_custom_call.1} parent=31 // pred_check
          %p219 = pneg %p54
        $region34: #{tpu_custom_call.1} parent=31 // pred_check_branch
          %221 = sbr.rel (%p219) target = $region36
        $region35: #{tpu_custom_call.1} parent=31 // pred_region
          %223 = dma.done [#allocation3], 16384
        $region36: #{tpu_custom_call.1} parent=31 // pred_fallthru
          _
        %s224 = sand.u32 %s21, 1
        %s225 = scalar_lea.sflag [#allocation6], %s224
        %s226 = sand.u32 %s67, 1
        %s227 = smul.addr %s226, 8192
        %s228 = scalar_lea.vmem [#allocation5], %s227
        // Predicated region
        $region37: #{tpu_custom_call.1} parent=31 // pred_check
          %p229 = pneg %p80
        $region38: #{tpu_custom_call.1} parent=31 // pred_check_branch
          %231 = sbr.rel (%p229) target = $region40
        $region39: #{tpu_custom_call.1} parent=31 // pred_region
          %233 = dma.done %s225, 131072
        $region40: #{tpu_custom_call.1} parent=31 // pred_fallthru
          _
        %s234 = sand.u32 %s21, 1
        %s235 = scalar_lea.sflag [#allocation6], %s234
        %s236 = sand.u32 %s93, 1
        %s237 = smul.addr %s236, 4
        %s238 = scalar_lea.vmem [#allocation7], %s237
        // Predicated region
        $region41: #{tpu_custom_call.1} parent=31 // pred_check
          %p239 = pneg %p106
        $region42: #{tpu_custom_call.1} parent=31 // pred_check_branch
          %241 = sbr.rel (%p239) target = $region44
        $region43: #{tpu_custom_call.1} parent=31 // pred_region
          %243 = dma.done %s235, 64
        $region44: #{tpu_custom_call.1} parent=31 // pred_fallthru
          _
        %p244 = pneg %p54
        %p245 = pneg %p51
        %s246 = sand.u32 %s21, 1
        %s247 = scalar_lea.sflag [#allocation6], %s246
        %s248 = sand.u32 %s67, 1
        %s249 = smul.addr %s248, 8192
        %s250 = scalar_lea.vmem [#allocation5], %s249
        %p251 = pneg %p80
        %p252 = pneg %p77
        %s253 = sand.u32 %s21, 1
        %s254 = scalar_lea.sflag [#allocation6], %s253
        %s255 = sand.u32 %s93, 1
        %s256 = smul.addr %s255, 4
        %s257 = scalar_lea.vmem [#allocation7], %s256
        %p258 = pneg %p106
        %p259 = pneg %p103
        %p260 = pneg %p134
        %p261 = pneg %p131
        %s262 = sand.u32 %s121, 1
        %s263 = scalar_lea.sflag [#allocation4], %s262
        %s264 = sand.u32 %s121, 1
        %s265 = smul.addr %s264, 256
        %s266 = scalar_lea.vmem [#allocation8], %s265
        %s267 = smul.u32 8, %s26
        %s268 = smul.u32 4, %s25
        %s269 = smul.u32 4, %s25
        %s270 = smul.u32 8, %s26
        %s271 = smul.u32 4, %s25
        %v272 = vld [vmem:[#allocation2] sm:$0xff]
        %v273 = vld [vmem:[#allocation2 + $0x8] sm:$0xff]
        %v274 = vld [vmem:[#allocation2 + $0x10] sm:$0xff]
        %v275 = vld [vmem:[#allocation2 + $0x18] sm:$0xff]
        %v276 = vld [vmem:[#allocation2 + $0x20] sm:$0xff]
        %v277 = vld [vmem:[#allocation2 + $0x28] sm:$0xff]
        %v278 = vld [vmem:[#allocation2 + $0x30] sm:$0xff]
        %v279 = vld [vmem:[#allocation2 + $0x38] sm:$0xff]
        %v280 = vld [vmem:[#allocation2 + $0x40] sm:$0xff]
        %v281 = vld [vmem:[#allocation2 + $0x48] sm:$0xff]
        %v282 = vld [vmem:[#allocation2 + $0x50] sm:$0xff]
        %v283 = vld [vmem:[#allocation2 + $0x58] sm:$0xff]
        %v284 = vld [vmem:[#allocation2 + $0x60] sm:$0xff]
        %v285 = vld [vmem:[#allocation2 + $0x68] sm:$0xff]
        %v286 = vld [vmem:[#allocation2 + $0x70] sm:$0xff]
        %v287 = vld [vmem:[#allocation2 + $0x78] sm:$0xff]
        %v288 = vld [vmem:[#allocation2 + $0x80] sm:$0xff]
        %v289 = vld [vmem:[#allocation2 + $0x88] sm:$0xff]
        %v290 = vld [vmem:[#allocation2 + $0x90] sm:$0xff]
        %v291 = vld [vmem:[#allocation2 + $0x98] sm:$0xff]
        %v292 = vld [vmem:[#allocation2 + $0xa0] sm:$0xff]
        %v293 = vld [vmem:[#allocation2 + $0xa8] sm:$0xff]
        %v294 = vld [vmem:[#allocation2 + $0xb0] sm:$0xff]
        %v295 = vld [vmem:[#allocation2 + $0xb8] sm:$0xff]
        %v296 = vld [vmem:[#allocation2 + $0xc0] sm:$0xff]
        %v297 = vld [vmem:[#allocation2 + $0xc8] sm:$0xff]
        %v298 = vld [vmem:[#allocation2 + $0xd0] sm:$0xff]
        %v299 = vld [vmem:[#allocation2 + $0xd8] sm:$0xff]
        %v300 = vld [vmem:[#allocation2 + $0xe0] sm:$0xff]
        %v301 = vld [vmem:[#allocation2 + $0xe8] sm:$0xff]
        %v302 = vld [vmem:[#allocation2 + $0xf0] sm:$0xff]
        %v303 = vld [vmem:[#allocation2 + $0xf8] sm:$0xff]
        %v304 = vld [vmem:[#allocation2 + $0x100] sm:$0xff]
        %v305 = vld [vmem:[#allocation2 + $0x108] sm:$0xff]
        %v306 = vld [vmem:[#allocation2 + $0x110] sm:$0xff]
        %v307 = vld [vmem:[#allocation2 + $0x118] sm:$0xff]
        %v308 = vld [vmem:[#allocation2 + $0x120] sm:$0xff]
        %v309 = vld [vmem:[#allocation2 + $0x128] sm:$0xff]
        %v310 = vld [vmem:[#allocation2 + $0x130] sm:$0xff]
        %v311 = vld [vmem:[#allocation2 + $0x138] sm:$0xff]
        %v312 = vld [vmem:[#allocation2 + $0x140] sm:$0xff]
        %v313 = vld [vmem:[#allocation2 + $0x148] sm:$0xff]
        %v314 = vld [vmem:[#allocation2 + $0x150] sm:$0xff]
        %v315 = vld [vmem:[#allocation2 + $0x158] sm:$0xff]
        %v316 = vld [vmem:[#allocation2 + $0x160] sm:$0xff]
        %v317 = vld [vmem:[#allocation2 + $0x168] sm:$0xff]
        %v318 = vld [vmem:[#allocation2 + $0x170] sm:$0xff]
        %v319 = vld [vmem:[#allocation2 + $0x178] sm:$0xff]
        %v320 = vld [vmem:[#allocation2 + $0x180] sm:$0xff]
        %v321 = vld [vmem:[#allocation2 + $0x188] sm:$0xff]
        %v322 = vld [vmem:[#allocation2 + $0x190] sm:$0xff]
        %v323 = vld [vmem:[#allocation2 + $0x198] sm:$0xff]
        %v324 = vld [vmem:[#allocation2 + $0x1a0] sm:$0xff]
        %v325 = vld [vmem:[#allocation2 + $0x1a8] sm:$0xff]
        %v326 = vld [vmem:[#allocation2 + $0x1b0] sm:$0xff]
        %v327 = vld [vmem:[#allocation2 + $0x1b8] sm:$0xff]
        %v328 = vld [vmem:[#allocation2 + $0x1c0] sm:$0xff]
        %v329 = vld [vmem:[#allocation2 + $0x1c8] sm:$0xff]
        %v330 = vld [vmem:[#allocation2 + $0x1d0] sm:$0xff]
        %v331 = vld [vmem:[#allocation2 + $0x1d8] sm:$0xff]
        %v332 = vld [vmem:[#allocation2 + $0x1e0] sm:$0xff]
        %v333 = vld [vmem:[#allocation2 + $0x1e8] sm:$0xff]
        %v334 = vld [vmem:[#allocation2 + $0x1f0] sm:$0xff]
        %v335 = vld [vmem:[#allocation2 + $0x1f8] sm:$0xff]
        %v336 = vld [vmem:[#allocation2 + $0x200] sm:$0xff]
        %v337 = vld [vmem:[#allocation2 + $0x208] sm:$0xff]
        %v338 = vld [vmem:[#allocation2 + $0x210] sm:$0xff]
        %v339 = vld [vmem:[#allocation2 + $0x218] sm:$0xff]
        %v340 = vld [vmem:[#allocation2 + $0x220] sm:$0xff]
        %v341 = vld [vmem:[#allocation2 + $0x228] sm:$0xff]
        %v342 = vld [vmem:[#allocation2 + $0x230] sm:$0xff]
        %v343 = vld [vmem:[#allocation2 + $0x238] sm:$0xff]
        %v344 = vld [vmem:[#allocation2 + $0x240] sm:$0xff]
        %v345 = vld [vmem:[#allocation2 + $0x248] sm:$0xff]
        %v346 = vld [vmem:[#allocation2 + $0x250] sm:$0xff]
        %v347 = vld [vmem:[#allocation2 + $0x258] sm:$0xff]
        %v348 = vld [vmem:[#allocation2 + $0x260] sm:$0xff]
        %v349 = vld [vmem:[#allocation2 + $0x268] sm:$0xff]
        %v350 = vld [vmem:[#allocation2 + $0x270] sm:$0xff]
        %v351 = vld [vmem:[#allocation2 + $0x278] sm:$0xff]
        %v352 = vld [vmem:[#allocation2 + $0x280] sm:$0xff]
        %v353 = vld [vmem:[#allocation2 + $0x288] sm:$0xff]
        %v354 = vld [vmem:[#allocation2 + $0x290] sm:$0xff]
        %v355 = vld [vmem:[#allocation2 + $0x298] sm:$0xff]
        %v356 = vld [vmem:[#allocation2 + $0x2a0] sm:$0xff]
        %v357 = vld [vmem:[#allocation2 + $0x2a8] sm:$0xff]
        %v358 = vld [vmem:[#allocation2 + $0x2b0] sm:$0xff]
        %v359 = vld [vmem:[#allocation2 + $0x2b8] sm:$0xff]
        %v360 = vld [vmem:[#allocation2 + $0x2c0] sm:$0xff]
        %v361 = vld [vmem:[#allocation2 + $0x2c8] sm:$0xff]
        %v362 = vld [vmem:[#allocation2 + $0x2d0] sm:$0xff]
        %v363 = vld [vmem:[#allocation2 + $0x2d8] sm:$0xff]
        %v364 = vld [vmem:[#allocation2 + $0x2e0] sm:$0xff]
        %v365 = vld [vmem:[#allocation2 + $0x2e8] sm:$0xff]
        %v366 = vld [vmem:[#allocation2 + $0x2f0] sm:$0xff]
        %v367 = vld [vmem:[#allocation2 + $0x2f8] sm:$0xff]
        %v368 = vld [vmem:[#allocation2 + $0x300] sm:$0xff]
        %v369 = vld [vmem:[#allocation2 + $0x308] sm:$0xff]
        %v370 = vld [vmem:[#allocation2 + $0x310] sm:$0xff]
        %v371 = vld [vmem:[#allocation2 + $0x318] sm:$0xff]
        %v372 = vld [vmem:[#allocation2 + $0x320] sm:$0xff]
        %v373 = vld [vmem:[#allocation2 + $0x328] sm:$0xff]
        %v374 = vld [vmem:[#allocation2 + $0x330] sm:$0xff]
        %v375 = vld [vmem:[#allocation2 + $0x338] sm:$0xff]
        %v376 = vld [vmem:[#allocation2 + $0x340] sm:$0xff]
        %v377 = vld [vmem:[#allocation2 + $0x348] sm:$0xff]
        %v378 = vld [vmem:[#allocation2 + $0x350] sm:$0xff]
        %v379 = vld [vmem:[#allocation2 + $0x358] sm:$0xff]
        %v380 = vld [vmem:[#allocation2 + $0x360] sm:$0xff]
        %v381 = vld [vmem:[#allocation2 + $0x368] sm:$0xff]
        %v382 = vld [vmem:[#allocation2 + $0x370] sm:$0xff]
        %v383 = vld [vmem:[#allocation2 + $0x378] sm:$0xff]
        %v384 = vld [vmem:[#allocation2 + $0x380] sm:$0xff]
        %v385 = vld [vmem:[#allocation2 + $0x388] sm:$0xff]
        %v386 = vld [vmem:[#allocation2 + $0x390] sm:$0xff]
        %v387 = vld [vmem:[#allocation2 + $0x398] sm:$0xff]
        %v388 = vld [vmem:[#allocation2 + $0x3a0] sm:$0xff]
        %v389 = vld [vmem:[#allocation2 + $0x3a8] sm:$0xff]
        %v390 = vld [vmem:[#allocation2 + $0x3b0] sm:$0xff]
        %v391 = vld [vmem:[#allocation2 + $0x3b8] sm:$0xff]
        %v392 = vld [vmem:[#allocation2 + $0x3c0] sm:$0xff]
        %v393 = vld [vmem:[#allocation2 + $0x3c8] sm:$0xff]
        %v394 = vld [vmem:[#allocation2 + $0x3d0] sm:$0xff]
        %v395 = vld [vmem:[#allocation2 + $0x3d8] sm:$0xff]
        %v396 = vld [vmem:[#allocation2 + $0x3e0] sm:$0xff]
        %v397 = vld [vmem:[#allocation2 + $0x3e8] sm:$0xff]
        %v398 = vld [vmem:[#allocation2 + $0x3f0] sm:$0xff]
        %v399 = vld [vmem:[#allocation2 + $0x3f8] sm:$0xff]
        %v400 = vld [vmem:[%s228] sm:$0xff]
        %v401 = vld [vmem:[%s228 + $0x8] sm:$0xff]
        %v402 = vld [vmem:[%s228 + $0x10] sm:$0xff]
        %v403 = vld [vmem:[%s228 + $0x18] sm:$0xff]
        %v404 = vld [vmem:[%s228 + $0x20] sm:$0xff]
        %v405 = vld [vmem:[%s228 + $0x28] sm:$0xff]
        %v406 = vld [vmem:[%s228 + $0x30] sm:$0xff]
        %v407 = vld [vmem:[%s228 + $0x38] sm:$0xff]
        %v408 = vld [vmem:[%s228 + $0x40] sm:$0xff]
        %v409 = vld [vmem:[%s228 + $0x48] sm:$0xff]
        %v410 = vld [vmem:[%s228 + $0x50] sm:$0xff]
        %v411 = vld [vmem:[%s228 + $0x58] sm:$0xff]
        %v412 = vld [vmem:[%s228 + $0x60] sm:$0xff]
        %v413 = vld [vmem:[%s228 + $0x68] sm:$0xff]
        %v414 = vld [vmem:[%s228 + $0x70] sm:$0xff]
        %v415 = vld [vmem:[%s228 + $0x78] sm:$0xff]
        %v416 = vld [vmem:[%s228 + $0x80] sm:$0xff]
        %v417 = vld [vmem:[%s228 + $0x88] sm:$0xff]
        %v418 = vld [vmem:[%s228 + $0x90] sm:$0xff]
        %v419 = vld [vmem:[%s228 + $0x98] sm:$0xff]
        %v420 = vld [vmem:[%s228 + $0xa0] sm:$0xff]
        %v421 = vld [vmem:[%s228 + $0xa8] sm:$0xff]
        %v422 = vld [vmem:[%s228 + $0xb0] sm:$0xff]
        %v423 = vld [vmem:[%s228 + $0xb8] sm:$0xff]
        %v424 = vld [vmem:[%s228 + $0xc0] sm:$0xff]
        %v425 = vld [vmem:[%s228 + $0xc8] sm:$0xff]
        %v426 = vld [vmem:[%s228 + $0xd0] sm:$0xff]
        %v427 = vld [vmem:[%s228 + $0xd8] sm:$0xff]
        %v428 = vld [vmem:[%s228 + $0xe0] sm:$0xff]
        %v429 = vld [vmem:[%s228 + $0xe8] sm:$0xff]
        %v430 = vld [vmem:[%s228 + $0xf0] sm:$0xff]
        %v431 = vld [vmem:[%s228 + $0xf8] sm:$0xff]
        %v432 = vld [vmem:[%s228 + $0x100] sm:$0xff]
        %v433 = vld [vmem:[%s228 + $0x108] sm:$0xff]
        %v434 = vld [vmem:[%s228 + $0x110] sm:$0xff]
        %v435 = vld [vmem:[%s228 + $0x118] sm:$0xff]
        %v436 = vld [vmem:[%s228 + $0x120] sm:$0xff]
        %v437 = vld [vmem:[%s228 + $0x128] sm:$0xff]
        %v438 = vld [vmem:[%s228 + $0x130] sm:$0xff]
        %v439 = vld [vmem:[%s228 + $0x138] sm:$0xff]
        %v440 = vld [vmem:[%s228 + $0x140] sm:$0xff]
        %v441 = vld [vmem:[%s228 + $0x148] sm:$0xff]
        %v442 = vld [vmem:[%s228 + $0x150] sm:$0xff]
        %v443 = vld [vmem:[%s228 + $0x158] sm:$0xff]
        %v444 = vld [vmem:[%s228 + $0x160] sm:$0xff]
        %v445 = vld [vmem:[%s228 + $0x168] sm:$0xff]
        %v446 = vld [vmem:[%s228 + $0x170] sm:$0xff]
        %v447 = vld [vmem:[%s228 + $0x178] sm:$0xff]
        %v448 = vld [vmem:[%s228 + $0x180] sm:$0xff]
        %v449 = vld [vmem:[%s228 + $0x188] sm:$0xff]
        %v450 = vld [vmem:[%s228 + $0x190] sm:$0xff]
        %v451 = vld [vmem:[%s228 + $0x198] sm:$0xff]
        %v452 = vld [vmem:[%s228 + $0x1a0] sm:$0xff]
        %v453 = vld [vmem:[%s228 + $0x1a8] sm:$0xff]
        %v454 = vld [vmem:[%s228 + $0x1b0] sm:$0xff]
        %v455 = vld [vmem:[%s228 + $0x1b8] sm:$0xff]
        %v456 = vld [vmem:[%s228 + $0x1c0] sm:$0xff]
        %v457 = vld [vmem:[%s228 + $0x1c8] sm:$0xff]
        %v458 = vld [vmem:[%s228 + $0x1d0] sm:$0xff]
        %v459 = vld [vmem:[%s228 + $0x1d8] sm:$0xff]
        %v460 = vld [vmem:[%s228 + $0x1e0] sm:$0xff]
        %v461 = vld [vmem:[%s228 + $0x1e8] sm:$0xff]
        %v462 = vld [vmem:[%s228 + $0x1f0] sm:$0xff]
        %v463 = vld [vmem:[%s228 + $0x1f8] sm:$0xff]
        %v464 = vld [vmem:[%s228 + $0x200] sm:$0xff]
        %v465 = vld [vmem:[%s228 + $0x208] sm:$0xff]
        %v466 = vld [vmem:[%s228 + $0x210] sm:$0xff]
        %v467 = vld [vmem:[%s228 + $0x218] sm:$0xff]
        %v468 = vld [vmem:[%s228 + $0x220] sm:$0xff]
        %v469 = vld [vmem:[%s228 + $0x228] sm:$0xff]
        %v470 = vld [vmem:[%s228 + $0x230] sm:$0xff]
        %v471 = vld [vmem:[%s228 + $0x238] sm:$0xff]
        %v472 = vld [vmem:[%s228 + $0x240] sm:$0xff]
        %v473 = vld [vmem:[%s228 + $0x248] sm:$0xff]
        %v474 = vld [vmem:[%s228 + $0x250] sm:$0xff]
        %v475 = vld [vmem:[%s228 + $0x258] sm:$0xff]
        %v476 = vld [vmem:[%s228 + $0x260] sm:$0xff]
        %v477 = vld [vmem:[%s228 + $0x268] sm:$0xff]
        %v478 = vld [vmem:[%s228 + $0x270] sm:$0xff]
        %v479 = vld [vmem:[%s228 + $0x278] sm:$0xff]
        %v480 = vld [vmem:[%s228 + $0x280] sm:$0xff]
        %v481 = vld [vmem:[%s228 + $0x288] sm:$0xff]
        %v482 = vld [vmem:[%s228 + $0x290] sm:$0xff]
        %v483 = vld [vmem:[%s228 + $0x298] sm:$0xff]
        %v484 = vld [vmem:[%s228 + $0x2a0] sm:$0xff]
        %v485 = vld [vmem:[%s228 + $0x2a8] sm:$0xff]
        %v486 = vld [vmem:[%s228 + $0x2b0] sm:$0xff]
        %v487 = vld [vmem:[%s228 + $0x2b8] sm:$0xff]
        %v488 = vld [vmem:[%s228 + $0x2c0] sm:$0xff]
        %v489 = vld [vmem:[%s228 + $0x2c8] sm:$0xff]
        %v490 = vld [vmem:[%s228 + $0x2d0] sm:$0xff]
        %v491 = vld [vmem:[%s228 + $0x2d8] sm:$0xff]
        %v492 = vld [vmem:[%s228 + $0x2e0] sm:$0xff]
        %v493 = vld [vmem:[%s228 + $0x2e8] sm:$0xff]
        %v494 = vld [vmem:[%s228 + $0x2f0] sm:$0xff]
        %v495 = vld [vmem:[%s228 + $0x2f8] sm:$0xff]
        %v496 = vld [vmem:[%s228 + $0x300] sm:$0xff]
        %v497 = vld [vmem:[%s228 + $0x308] sm:$0xff]
        %v498 = vld [vmem:[%s228 + $0x310] sm:$0xff]
        %v499 = vld [vmem:[%s228 + $0x318] sm:$0xff]
        %v500 = vld [vmem:[%s228 + $0x320] sm:$0xff]
        %v501 = vld [vmem:[%s228 + $0x328] sm:$0xff]
        %v502 = vld [vmem:[%s228 + $0x330] sm:$0xff]
        %v503 = vld [vmem:[%s228 + $0x338] sm:$0xff]
        %v504 = vld [vmem:[%s228 + $0x340] sm:$0xff]
        %v505 = vld [vmem:[%s228 + $0x348] sm:$0xff]
        %v506 = vld [vmem:[%s228 + $0x350] sm:$0xff]
        %v507 = vld [vmem:[%s228 + $0x358] sm:$0xff]
        %v508 = vld [vmem:[%s228 + $0x360] sm:$0xff]
        %v509 = vld [vmem:[%s228 + $0x368] sm:$0xff]
        %v510 = vld [vmem:[%s228 + $0x370] sm:$0xff]
        %v511 = vld [vmem:[%s228 + $0x378] sm:$0xff]
        %v512 = vld [vmem:[%s228 + $0x380] sm:$0xff]
        %v513 = vld [vmem:[%s228 + $0x388] sm:$0xff]
        %v514 = vld [vmem:[%s228 + $0x390] sm:$0xff]
        %v515 = vld [vmem:[%s228 + $0x398] sm:$0xff]
        %v516 = vld [vmem:[%s228 + $0x3a0] sm:$0xff]
        %v517 = vld [vmem:[%s228 + $0x3a8] sm:$0xff]
        %v518 = vld [vmem:[%s228 + $0x3b0] sm:$0xff]
        %v519 = vld [vmem:[%s228 + $0x3b8] sm:$0xff]
        %v520 = vld [vmem:[%s228 + $0x3c0] sm:$0xff]
        %v521 = vld [vmem:[%s228 + $0x3c8] sm:$0xff]
        %v522 = vld [vmem:[%s228 + $0x3d0] sm:$0xff]
        %v523 = vld [vmem:[%s228 + $0x3d8] sm:$0xff]
        %v524 = vld [vmem:[%s228 + $0x3e0] sm:$0xff]
        %v525 = vld [vmem:[%s228 + $0x3e8] sm:$0xff]
        %v526 = vld [vmem:[%s228 + $0x3f0] sm:$0xff]
        %v527 = vld [vmem:[%s228 + $0x3f8] sm:$0xff]
        %v528 = vld [vmem:[%s228 + $0x400] sm:$0xff]
        %v529 = vld [vmem:[%s228 + $0x408] sm:$0xff]
        %v530 = vld [vmem:[%s228 + $0x410] sm:$0xff]
        %v531 = vld [vmem:[%s228 + $0x418] sm:$0xff]
        %v532 = vld [vmem:[%s228 + $0x420] sm:$0xff]
        %v533 = vld [vmem:[%s228 + $0x428] sm:$0xff]
        %v534 = vld [vmem:[%s228 + $0x430] sm:$0xff]
        %v535 = vld [vmem:[%s228 + $0x438] sm:$0xff]
        %v536 = vld [vmem:[%s228 + $0x440] sm:$0xff]
        %v537 = vld [vmem:[%s228 + $0x448] sm:$0xff]
        %v538 = vld [vmem:[%s228 + $0x450] sm:$0xff]
        %v539 = vld [vmem:[%s228 + $0x458] sm:$0xff]
        %v540 = vld [vmem:[%s228 + $0x460] sm:$0xff]
        %v541 = vld [vmem:[%s228 + $0x468] sm:$0xff]
        %v542 = vld [vmem:[%s228 + $0x470] sm:$0xff]
        %v543 = vld [vmem:[%s228 + $0x478] sm:$0xff]
        %v544 = vld [vmem:[%s228 + $0x480] sm:$0xff]
        %v545 = vld [vmem:[%s228 + $0x488] sm:$0xff]
        %v546 = vld [vmem:[%s228 + $0x490] sm:$0xff]
        %v547 = vld [vmem:[%s228 + $0x498] sm:$0xff]
        %v548 = vld [vmem:[%s228 + $0x4a0] sm:$0xff]
        %v549 = vld [vmem:[%s228 + $0x4a8] sm:$0xff]
        %v550 = vld [vmem:[%s228 + $0x4b0] sm:$0xff]
        %v551 = vld [vmem:[%s228 + $0x4b8] sm:$0xff]
        %v552 = vld [vmem:[%s228 + $0x4c0] sm:$0xff]
        %v553 = vld [vmem:[%s228 + $0x4c8] sm:$0xff]
        %v554 = vld [vmem:[%s228 + $0x4d0] sm:$0xff]
        %v555 = vld [vmem:[%s228 + $0x4d8] sm:$0xff]
        %v556 = vld [vmem:[%s228 + $0x4e0] sm:$0xff]
        %v557 = vld [vmem:[%s228 + $0x4e8] sm:$0xff]
        %v558 = vld [vmem:[%s228 + $0x4f0] sm:$0xff]
        %v559 = vld [vmem:[%s228 + $0x4f8] sm:$0xff]
        %v560 = vld [vmem:[%s228 + $0x500] sm:$0xff]
        %v561 = vld [vmem:[%s228 + $0x508] sm:$0xff]
        %v562 = vld [vmem:[%s228 + $0x510] sm:$0xff]
        %v563 = vld [vmem:[%s228 + $0x518] sm:$0xff]
        %v564 = vld [vmem:[%s228 + $0x520] sm:$0xff]
        %v565 = vld [vmem:[%s228 + $0x528] sm:$0xff]
        %v566 = vld [vmem:[%s228 + $0x530] sm:$0xff]
        %v567 = vld [vmem:[%s228 + $0x538] sm:$0xff]
        %v568 = vld [vmem:[%s228 + $0x540] sm:$0xff]
        %v569 = vld [vmem:[%s228 + $0x548] sm:$0xff]
        %v570 = vld [vmem:[%s228 + $0x550] sm:$0xff]
        %v571 = vld [vmem:[%s228 + $0x558] sm:$0xff]
        %v572 = vld [vmem:[%s228 + $0x560] sm:$0xff]
        %v573 = vld [vmem:[%s228 + $0x568] sm:$0xff]
        %v574 = vld [vmem:[%s228 + $0x570] sm:$0xff]
        %v575 = vld [vmem:[%s228 + $0x578] sm:$0xff]
        %v576 = vld [vmem:[%s228 + $0x580] sm:$0xff]
        %v577 = vld [vmem:[%s228 + $0x588] sm:$0xff]
        %v578 = vld [vmem:[%s228 + $0x590] sm:$0xff]
        %v579 = vld [vmem:[%s228 + $0x598] sm:$0xff]
        %v580 = vld [vmem:[%s228 + $0x5a0] sm:$0xff]
        %v581 = vld [vmem:[%s228 + $0x5a8] sm:$0xff]
        %v582 = vld [vmem:[%s228 + $0x5b0] sm:$0xff]
        %v583 = vld [vmem:[%s228 + $0x5b8] sm:$0xff]
        %v584 = vld [vmem:[%s228 + $0x5c0] sm:$0xff]
        %v585 = vld [vmem:[%s228 + $0x5c8] sm:$0xff]
        %v586 = vld [vmem:[%s228 + $0x5d0] sm:$0xff]
        %v587 = vld [vmem:[%s228 + $0x5d8] sm:$0xff]
        %v588 = vld [vmem:[%s228 + $0x5e0] sm:$0xff]
        %v589 = vld [vmem:[%s228 + $0x5e8] sm:$0xff]
        %v590 = vld [vmem:[%s228 + $0x5f0] sm:$0xff]
        %v591 = vld [vmem:[%s228 + $0x5f8] sm:$0xff]
        %v592 = vld [vmem:[%s228 + $0x600] sm:$0xff]
        %v593 = vld [vmem:[%s228 + $0x608] sm:$0xff]
        %v594 = vld [vmem:[%s228 + $0x610] sm:$0xff]
        %v595 = vld [vmem:[%s228 + $0x618] sm:$0xff]
        %v596 = vld [vmem:[%s228 + $0x620] sm:$0xff]
        %v597 = vld [vmem:[%s228 + $0x628] sm:$0xff]
        %v598 = vld [vmem:[%s228 + $0x630] sm:$0xff]
        %v599 = vld [vmem:[%s228 + $0x638] sm:$0xff]
        %v600 = vld [vmem:[%s228 + $0x640] sm:$0xff]
        %v601 = vld [vmem:[%s228 + $0x648] sm:$0xff]
        %v602 = vld [vmem:[%s228 + $0x650] sm:$0xff]
        %v603 = vld [vmem:[%s228 + $0x658] sm:$0xff]
        %v604 = vld [vmem:[%s228 + $0x660] sm:$0xff]
        %v605 = vld [vmem:[%s228 + $0x668] sm:$0xff]
        %v606 = vld [vmem:[%s228 + $0x670] sm:$0xff]
        %v607 = vld [vmem:[%s228 + $0x678] sm:$0xff]
        %v608 = vld [vmem:[%s228 + $0x680] sm:$0xff]
        %v609 = vld [vmem:[%s228 + $0x688] sm:$0xff]
        %v610 = vld [vmem:[%s228 + $0x690] sm:$0xff]
        %v611 = vld [vmem:[%s228 + $0x698] sm:$0xff]
        %v612 = vld [vmem:[%s228 + $0x6a0] sm:$0xff]
        %v613 = vld [vmem:[%s228 + $0x6a8] sm:$0xff]
        %v614 = vld [vmem:[%s228 + $0x6b0] sm:$0xff]
        %v615 = vld [vmem:[%s228 + $0x6b8] sm:$0xff]
        %v616 = vld [vmem:[%s228 + $0x6c0] sm:$0xff]
        %v617 = vld [vmem:[%s228 + $0x6c8] sm:$0xff]
        %v618 = vld [vmem:[%s228 + $0x6d0] sm:$0xff]
        %v619 = vld [vmem:[%s228 + $0x6d8] sm:$0xff]
        %v620 = vld [vmem:[%s228 + $0x6e0] sm:$0xff]
        %v621 = vld [vmem:[%s228 + $0x6e8] sm:$0xff]
        %v622 = vld [vmem:[%s228 + $0x6f0] sm:$0xff]
        %v623 = vld [vmem:[%s228 + $0x6f8] sm:$0xff]
        %v624 = vld [vmem:[%s228 + $0x700] sm:$0xff]
        %v625 = vld [vmem:[%s228 + $0x708] sm:$0xff]
        %v626 = vld [vmem:[%s228 + $0x710] sm:$0xff]
        %v627 = vld [vmem:[%s228 + $0x718] sm:$0xff]
        %v628 = vld [vmem:[%s228 + $0x720] sm:$0xff]
        %v629 = vld [vmem:[%s228 + $0x728] sm:$0xff]
        %v630 = vld [vmem:[%s228 + $0x730] sm:$0xff]
        %v631 = vld [vmem:[%s228 + $0x738] sm:$0xff]
        %v632 = vld [vmem:[%s228 + $0x740] sm:$0xff]
        %v633 = vld [vmem:[%s228 + $0x748] sm:$0xff]
        %v634 = vld [vmem:[%s228 + $0x750] sm:$0xff]
        %v635 = vld [vmem:[%s228 + $0x758] sm:$0xff]
        %v636 = vld [vmem:[%s228 + $0x760] sm:$0xff]
        %v637 = vld [vmem:[%s228 + $0x768] sm:$0xff]
        %v638 = vld [vmem:[%s228 + $0x770] sm:$0xff]
        %v639 = vld [vmem:[%s228 + $0x778] sm:$0xff]
        %v640 = vld [vmem:[%s228 + $0x780] sm:$0xff]
        %v641 = vld [vmem:[%s228 + $0x788] sm:$0xff]
        %v642 = vld [vmem:[%s228 + $0x790] sm:$0xff]
        %v643 = vld [vmem:[%s228 + $0x798] sm:$0xff]
        %v644 = vld [vmem:[%s228 + $0x7a0] sm:$0xff]
        %v645 = vld [vmem:[%s228 + $0x7a8] sm:$0xff]
        %v646 = vld [vmem:[%s228 + $0x7b0] sm:$0xff]
        %v647 = vld [vmem:[%s228 + $0x7b8] sm:$0xff]
        %v648 = vld [vmem:[%s228 + $0x7c0] sm:$0xff]
        %v649 = vld [vmem:[%s228 + $0x7c8] sm:$0xff]
        %v650 = vld [vmem:[%s228 + $0x7d0] sm:$0xff]
        %v651 = vld [vmem:[%s228 + $0x7d8] sm:$0xff]
        %v652 = vld [vmem:[%s228 + $0x7e0] sm:$0xff]
        %v653 = vld [vmem:[%s228 + $0x7e8] sm:$0xff]
        %v654 = vld [vmem:[%s228 + $0x7f0] sm:$0xff]
        %v655 = vld [vmem:[%s228 + $0x7f8] sm:$0xff]
        %v656 = vld [vmem:[%s228 + $0x800] sm:$0xff]
        %v657 = vld [vmem:[%s228 + $0x808] sm:$0xff]
        %v658 = vld [vmem:[%s228 + $0x810] sm:$0xff]
        %v659 = vld [vmem:[%s228 + $0x818] sm:$0xff]
        %v660 = vld [vmem:[%s228 + $0x820] sm:$0xff]
        %v661 = vld [vmem:[%s228 + $0x828] sm:$0xff]
        %v662 = vld [vmem:[%s228 + $0x830] sm:$0xff]
        %v663 = vld [vmem:[%s228 + $0x838] sm:$0xff]
        %v664 = vld [vmem:[%s228 + $0x840] sm:$0xff]
        %v665 = vld [vmem:[%s228 + $0x848] sm:$0xff]
        %v666 = vld [vmem:[%s228 + $0x850] sm:$0xff]
        %v667 = vld [vmem:[%s228 + $0x858] sm:$0xff]
        %v668 = vld [vmem:[%s228 + $0x860] sm:$0xff]
        %v669 = vld [vmem:[%s228 + $0x868] sm:$0xff]
        %v670 = vld [vmem:[%s228 + $0x870] sm:$0xff]
        %v671 = vld [vmem:[%s228 + $0x878] sm:$0xff]
        %v672 = vld [vmem:[%s228 + $0x880] sm:$0xff]
        %v673 = vld [vmem:[%s228 + $0x888] sm:$0xff]
        %v674 = vld [vmem:[%s228 + $0x890] sm:$0xff]
        %v675 = vld [vmem:[%s228 + $0x898] sm:$0xff]
        %v676 = vld [vmem:[%s228 + $0x8a0] sm:$0xff]
        %v677 = vld [vmem:[%s228 + $0x8a8] sm:$0xff]
        %v678 = vld [vmem:[%s228 + $0x8b0] sm:$0xff]
        %v679 = vld [vmem:[%s228 + $0x8b8] sm:$0xff]
        %v680 = vld [vmem:[%s228 + $0x8c0] sm:$0xff]
        %v681 = vld [vmem:[%s228 + $0x8c8] sm:$0xff]
        %v682 = vld [vmem:[%s228 + $0x8d0] sm:$0xff]
        %v683 = vld [vmem:[%s228 + $0x8d8] sm:$0xff]
        %v684 = vld [vmem:[%s228 + $0x8e0] sm:$0xff]
        %v685 = vld [vmem:[%s228 + $0x8e8] sm:$0xff]
        %v686 = vld [vmem:[%s228 + $0x8f0] sm:$0xff]
        %v687 = vld [vmem:[%s228 + $0x8f8] sm:$0xff]
        %v688 = vld [vmem:[%s228 + $0x900] sm:$0xff]
        %v689 = vld [vmem:[%s228 + $0x908] sm:$0xff]
        %v690 = vld [vmem:[%s228 + $0x910] sm:$0xff]
        %v691 = vld [vmem:[%s228 + $0x918] sm:$0xff]
        %v692 = vld [vmem:[%s228 + $0x920] sm:$0xff]
        %v693 = vld [vmem:[%s228 + $0x928] sm:$0xff]
        %v694 = vld [vmem:[%s228 + $0x930] sm:$0xff]
        %v695 = vld [vmem:[%s228 + $0x938] sm:$0xff]
        %v696 = vld [vmem:[%s228 + $0x940] sm:$0xff]
        %v697 = vld [vmem:[%s228 + $0x948] sm:$0xff]
        %v698 = vld [vmem:[%s228 + $0x950] sm:$0xff]
        %v699 = vld [vmem:[%s228 + $0x958] sm:$0xff]
        %v700 = vld [vmem:[%s228 + $0x960] sm:$0xff]
        %v701 = vld [vmem:[%s228 + $0x968] sm:$0xff]
        %v702 = vld [vmem:[%s228 + $0x970] sm:$0xff]
        %v703 = vld [vmem:[%s228 + $0x978] sm:$0xff]
        %v704 = vld [vmem:[%s228 + $0x980] sm:$0xff]
        %v705 = vld [vmem:[%s228 + $0x988] sm:$0xff]
        %v706 = vld [vmem:[%s228 + $0x990] sm:$0xff]
        %v707 = vld [vmem:[%s228 + $0x998] sm:$0xff]
        %v708 = vld [vmem:[%s228 + $0x9a0] sm:$0xff]
        %v709 = vld [vmem:[%s228 + $0x9a8] sm:$0xff]
        %v710 = vld [vmem:[%s228 + $0x9b0] sm:$0xff]
        %v711 = vld [vmem:[%s228 + $0x9b8] sm:$0xff]
        %v712 = vld [vmem:[%s228 + $0x9c0] sm:$0xff]
        %v713 = vld [vmem:[%s228 + $0x9c8] sm:$0xff]
        %v714 = vld [vmem:[%s228 + $0x9d0] sm:$0xff]
        %v715 = vld [vmem:[%s228 + $0x9d8] sm:$0xff]
        %v716 = vld [vmem:[%s228 + $0x9e0] sm:$0xff]
        %v717 = vld [vmem:[%s228 + $0x9e8] sm:$0xff]
        %v718 = vld [vmem:[%s228 + $0x9f0] sm:$0xff]
        %v719 = vld [vmem:[%s228 + $0x9f8] sm:$0xff]
        %v720 = vld [vmem:[%s228 + $0xa00] sm:$0xff]
        %v721 = vld [vmem:[%s228 + $0xa08] sm:$0xff]
        %v722 = vld [vmem:[%s228 + $0xa10] sm:$0xff]
        %v723 = vld [vmem:[%s228 + $0xa18] sm:$0xff]
        %v724 = vld [vmem:[%s228 + $0xa20] sm:$0xff]
        %v725 = vld [vmem:[%s228 + $0xa28] sm:$0xff]
        %v726 = vld [vmem:[%s228 + $0xa30] sm:$0xff]
        %v727 = vld [vmem:[%s228 + $0xa38] sm:$0xff]
        %v728 = vld [vmem:[%s228 + $0xa40] sm:$0xff]
        %v729 = vld [vmem:[%s228 + $0xa48] sm:$0xff]
        %v730 = vld [vmem:[%s228 + $0xa50] sm:$0xff]
        %v731 = vld [vmem:[%s228 + $0xa58] sm:$0xff]
        %v732 = vld [vmem:[%s228 + $0xa60] sm:$0xff]
        %v733 = vld [vmem:[%s228 + $0xa68] sm:$0xff]
        %v734 = vld [vmem:[%s228 + $0xa70] sm:$0xff]
        %v735 = vld [vmem:[%s228 + $0xa78] sm:$0xff]
        %v736 = vld [vmem:[%s228 + $0xa80] sm:$0xff]
        %v737 = vld [vmem:[%s228 + $0xa88] sm:$0xff]
        %v738 = vld [vmem:[%s228 + $0xa90] sm:$0xff]
        %v739 = vld [vmem:[%s228 + $0xa98] sm:$0xff]
        %v740 = vld [vmem:[%s228 + $0xaa0] sm:$0xff]
        %v741 = vld [vmem:[%s228 + $0xaa8] sm:$0xff]
        %v742 = vld [vmem:[%s228 + $0xab0] sm:$0xff]
        %v743 = vld [vmem:[%s228 + $0xab8] sm:$0xff]
        %v744 = vld [vmem:[%s228 + $0xac0] sm:$0xff]
        %v745 = vld [vmem:[%s228 + $0xac8] sm:$0xff]
        %v746 = vld [vmem:[%s228 + $0xad0] sm:$0xff]
        %v747 = vld [vmem:[%s228 + $0xad8] sm:$0xff]
        %v748 = vld [vmem:[%s228 + $0xae0] sm:$0xff]
        %v749 = vld [vmem:[%s228 + $0xae8] sm:$0xff]
        %v750 = vld [vmem:[%s228 + $0xaf0] sm:$0xff]
        %v751 = vld [vmem:[%s228 + $0xaf8] sm:$0xff]
        %v752 = vld [vmem:[%s228 + $0xb00] sm:$0xff]
        %v753 = vld [vmem:[%s228 + $0xb08] sm:$0xff]
        %v754 = vld [vmem:[%s228 + $0xb10] sm:$0xff]
        %v755 = vld [vmem:[%s228 + $0xb18] sm:$0xff]
        %v756 = vld [vmem:[%s228 + $0xb20] sm:$0xff]
        %v757 = vld [vmem:[%s228 + $0xb28] sm:$0xff]
        %v758 = vld [vmem:[%s228 + $0xb30] sm:$0xff]
        %v759 = vld [vmem:[%s228 + $0xb38] sm:$0xff]
        %v760 = vld [vmem:[%s228 + $0xb40] sm:$0xff]
        %v761 = vld [vmem:[%s228 + $0xb48] sm:$0xff]
        %v762 = vld [vmem:[%s228 + $0xb50] sm:$0xff]
        %v763 = vld [vmem:[%s228 + $0xb58] sm:$0xff]
        %v764 = vld [vmem:[%s228 + $0xb60] sm:$0xff]
        %v765 = vld [vmem:[%s228 + $0xb68] sm:$0xff]
        %v766 = vld [vmem:[%s228 + $0xb70] sm:$0xff]
        %v767 = vld [vmem:[%s228 + $0xb78] sm:$0xff]
        %v768 = vld [vmem:[%s228 + $0xb80] sm:$0xff]
        %v769 = vld [vmem:[%s228 + $0xb88] sm:$0xff]
        %v770 = vld [vmem:[%s228 + $0xb90] sm:$0xff]
        %v771 = vld [vmem:[%s228 + $0xb98] sm:$0xff]
        %v772 = vld [vmem:[%s228 + $0xba0] sm:$0xff]
        %v773 = vld [vmem:[%s228 + $0xba8] sm:$0xff]
        %v774 = vld [vmem:[%s228 + $0xbb0] sm:$0xff]
        %v775 = vld [vmem:[%s228 + $0xbb8] sm:$0xff]
        %v776 = vld [vmem:[%s228 + $0xbc0] sm:$0xff]
        %v777 = vld [vmem:[%s228 + $0xbc8] sm:$0xff]
        %v778 = vld [vmem:[%s228 + $0xbd0] sm:$0xff]
        %v779 = vld [vmem:[%s228 + $0xbd8] sm:$0xff]
        %v780 = vld [vmem:[%s228 + $0xbe0] sm:$0xff]
        %v781 = vld [vmem:[%s228 + $0xbe8] sm:$0xff]
        %v782 = vld [vmem:[%s228 + $0xbf0] sm:$0xff]
        %v783 = vld [vmem:[%s228 + $0xbf8] sm:$0xff]
        %v784 = vld [vmem:[%s228 + $0xc00] sm:$0xff]
        %v785 = vld [vmem:[%s228 + $0xc08] sm:$0xff]
        %v786 = vld [vmem:[%s228 + $0xc10] sm:$0xff]
        %v787 = vld [vmem:[%s228 + $0xc18] sm:$0xff]
        %v788 = vld [vmem:[%s228 + $0xc20] sm:$0xff]
        %v789 = vld [vmem:[%s228 + $0xc28] sm:$0xff]
        %v790 = vld [vmem:[%s228 + $0xc30] sm:$0xff]
        %v791 = vld [vmem:[%s228 + $0xc38] sm:$0xff]
        %v792 = vld [vmem:[%s228 + $0xc40] sm:$0xff]
        %v793 = vld [vmem:[%s228 + $0xc48] sm:$0xff]
        %v794 = vld [vmem:[%s228 + $0xc50] sm:$0xff]
        %v795 = vld [vmem:[%s228 + $0xc58] sm:$0xff]
        %v796 = vld [vmem:[%s228 + $0xc60] sm:$0xff]
        %v797 = vld [vmem:[%s228 + $0xc68] sm:$0xff]
        %v798 = vld [vmem:[%s228 + $0xc70] sm:$0xff]
        %v799 = vld [vmem:[%s228 + $0xc78] sm:$0xff]
        %v800 = vld [vmem:[%s228 + $0xc80] sm:$0xff]
        %v801 = vld [vmem:[%s228 + $0xc88] sm:$0xff]
        %v802 = vld [vmem:[%s228 + $0xc90] sm:$0xff]
        %v803 = vld [vmem:[%s228 + $0xc98] sm:$0xff]
        %v804 = vld [vmem:[%s228 + $0xca0] sm:$0xff]
        %v805 = vld [vmem:[%s228 + $0xca8] sm:$0xff]
        %v806 = vld [vmem:[%s228 + $0xcb0] sm:$0xff]
        %v807 = vld [vmem:[%s228 + $0xcb8] sm:$0xff]
        %v808 = vld [vmem:[%s228 + $0xcc0] sm:$0xff]
        %v809 = vld [vmem:[%s228 + $0xcc8] sm:$0xff]
        %v810 = vld [vmem:[%s228 + $0xcd0] sm:$0xff]
        %v811 = vld [vmem:[%s228 + $0xcd8] sm:$0xff]
        %v812 = vld [vmem:[%s228 + $0xce0] sm:$0xff]
        %v813 = vld [vmem:[%s228 + $0xce8] sm:$0xff]
        %v814 = vld [vmem:[%s228 + $0xcf0] sm:$0xff]
        %v815 = vld [vmem:[%s228 + $0xcf8] sm:$0xff]
        %v816 = vld [vmem:[%s228 + $0xd00] sm:$0xff]
        %v817 = vld [vmem:[%s228 + $0xd08] sm:$0xff]
        %v818 = vld [vmem:[%s228 + $0xd10] sm:$0xff]
        %v819 = vld [vmem:[%s228 + $0xd18] sm:$0xff]
        %v820 = vld [vmem:[%s228 + $0xd20] sm:$0xff]
        %v821 = vld [vmem:[%s228 + $0xd28] sm:$0xff]
        %v822 = vld [vmem:[%s228 + $0xd30] sm:$0xff]
        %v823 = vld [vmem:[%s228 + $0xd38] sm:$0xff]
        %v824 = vld [vmem:[%s228 + $0xd40] sm:$0xff]
        %v825 = vld [vmem:[%s228 + $0xd48] sm:$0xff]
        %v826 = vld [vmem:[%s228 + $0xd50] sm:$0xff]
        %v827 = vld [vmem:[%s228 + $0xd58] sm:$0xff]
        %v828 = vld [vmem:[%s228 + $0xd60] sm:$0xff]
        %v829 = vld [vmem:[%s228 + $0xd68] sm:$0xff]
        %v830 = vld [vmem:[%s228 + $0xd70] sm:$0xff]
        %v831 = vld [vmem:[%s228 + $0xd78] sm:$0xff]
        %v832 = vld [vmem:[%s228 + $0xd80] sm:$0xff]
        %v833 = vld [vmem:[%s228 + $0xd88] sm:$0xff]
        %v834 = vld [vmem:[%s228 + $0xd90] sm:$0xff]
        %v835 = vld [vmem:[%s228 + $0xd98] sm:$0xff]
        %v836 = vld [vmem:[%s228 + $0xda0] sm:$0xff]
        %v837 = vld [vmem:[%s228 + $0xda8] sm:$0xff]
        %v838 = vld [vmem:[%s228 + $0xdb0] sm:$0xff]
        %v839 = vld [vmem:[%s228 + $0xdb8] sm:$0xff]
        %v840 = vld [vmem:[%s228 + $0xdc0] sm:$0xff]
        %v841 = vld [vmem:[%s228 + $0xdc8] sm:$0xff]
        %v842 = vld [vmem:[%s228 + $0xdd0] sm:$0xff]
        %v843 = vld [vmem:[%s228 + $0xdd8] sm:$0xff]
        %v844 = vld [vmem:[%s228 + $0xde0] sm:$0xff]
        %v845 = vld [vmem:[%s228 + $0xde8] sm:$0xff]
        %v846 = vld [vmem:[%s228 + $0xdf0] sm:$0xff]
        %v847 = vld [vmem:[%s228 + $0xdf8] sm:$0xff]
        %v848 = vld [vmem:[%s228 + $0xe00] sm:$0xff]
        %v849 = vld [vmem:[%s228 + $0xe08] sm:$0xff]
        %v850 = vld [vmem:[%s228 + $0xe10] sm:$0xff]
        %v851 = vld [vmem:[%s228 + $0xe18] sm:$0xff]
        %v852 = vld [vmem:[%s228 + $0xe20] sm:$0xff]
        %v853 = vld [vmem:[%s228 + $0xe28] sm:$0xff]
        %v854 = vld [vmem:[%s228 + $0xe30] sm:$0xff]
        %v855 = vld [vmem:[%s228 + $0xe38] sm:$0xff]
        %v856 = vld [vmem:[%s228 + $0xe40] sm:$0xff]
        %v857 = vld [vmem:[%s228 + $0xe48] sm:$0xff]
        %v858 = vld [vmem:[%s228 + $0xe50] sm:$0xff]
        %v859 = vld [vmem:[%s228 + $0xe58] sm:$0xff]
        %v860 = vld [vmem:[%s228 + $0xe60] sm:$0xff]
        %v861 = vld [vmem:[%s228 + $0xe68] sm:$0xff]
        %v862 = vld [vmem:[%s228 + $0xe70] sm:$0xff]
        %v863 = vld [vmem:[%s228 + $0xe78] sm:$0xff]
        %v864 = vld [vmem:[%s228 + $0xe80] sm:$0xff]
        %v865 = vld [vmem:[%s228 + $0xe88] sm:$0xff]
        %v866 = vld [vmem:[%s228 + $0xe90] sm:$0xff]
        %v867 = vld [vmem:[%s228 + $0xe98] sm:$0xff]
        %v868 = vld [vmem:[%s228 + $0xea0] sm:$0xff]
        %v869 = vld [vmem:[%s228 + $0xea8] sm:$0xff]
        %v870 = vld [vmem:[%s228 + $0xeb0] sm:$0xff]
        %v871 = vld [vmem:[%s228 + $0xeb8] sm:$0xff]
        %v872 = vld [vmem:[%s228 + $0xec0] sm:$0xff]
        %v873 = vld [vmem:[%s228 + $0xec8] sm:$0xff]
        %v874 = vld [vmem:[%s228 + $0xed0] sm:$0xff]
        %v875 = vld [vmem:[%s228 + $0xed8] sm:$0xff]
        %v876 = vld [vmem:[%s228 + $0xee0] sm:$0xff]
        %v877 = vld [vmem:[%s228 + $0xee8] sm:$0xff]
        %v878 = vld [vmem:[%s228 + $0xef0] sm:$0xff]
        %v879 = vld [vmem:[%s228 + $0xef8] sm:$0xff]
        %v880 = vld [vmem:[%s228 + $0xf00] sm:$0xff]
        %v881 = vld [vmem:[%s228 + $0xf08] sm:$0xff]
        %v882 = vld [vmem:[%s228 + $0xf10] sm:$0xff]
        %v883 = vld [vmem:[%s228 + $0xf18] sm:$0xff]
        %v884 = vld [vmem:[%s228 + $0xf20] sm:$0xff]
        %v885 = vld [vmem:[%s228 + $0xf28] sm:$0xff]
        %v886 = vld [vmem:[%s228 + $0xf30] sm:$0xff]
        %v887 = vld [vmem:[%s228 + $0xf38] sm:$0xff]
        %v888 = vld [vmem:[%s228 + $0xf40] sm:$0xff]
        %v889 = vld [vmem:[%s228 + $0xf48] sm:$0xff]
        %v890 = vld [vmem:[%s228 + $0xf50] sm:$0xff]
        %v891 = vld [vmem:[%s228 + $0xf58] sm:$0xff]
        %v892 = vld [vmem:[%s228 + $0xf60] sm:$0xff]
        %v893 = vld [vmem:[%s228 + $0xf68] sm:$0xff]
        %v894 = vld [vmem:[%s228 + $0xf70] sm:$0xff]
        %v895 = vld [vmem:[%s228 + $0xf78] sm:$0xff]
        %v896 = vld [vmem:[%s228 + $0xf80] sm:$0xff]
        %v897 = vld [vmem:[%s228 + $0xf88] sm:$0xff]
        %v898 = vld [vmem:[%s228 + $0xf90] sm:$0xff]
        %v899 = vld [vmem:[%s228 + $0xf98] sm:$0xff]
        %v900 = vld [vmem:[%s228 + $0xfa0] sm:$0xff]
        %v901 = vld [vmem:[%s228 + $0xfa8] sm:$0xff]
        %v902 = vld [vmem:[%s228 + $0xfb0] sm:$0xff]
        %v903 = vld [vmem:[%s228 + $0xfb8] sm:$0xff]
        %v904 = vld [vmem:[%s228 + $0xfc0] sm:$0xff]
        %v905 = vld [vmem:[%s228 + $0xfc8] sm:$0xff]
        %v906 = vld [vmem:[%s228 + $0xfd0] sm:$0xff]
        %v907 = vld [vmem:[%s228 + $0xfd8] sm:$0xff]
        %v908 = vld [vmem:[%s228 + $0xfe0] sm:$0xff]
        %v909 = vld [vmem:[%s228 + $0xfe8] sm:$0xff]
        %v910 = vld [vmem:[%s228 + $0xff0] sm:$0xff]
        %v911 = vld [vmem:[%s228 + $0xff8] sm:$0xff]
        %v912 = vld [vmem:[%s228 + $0x1000] sm:$0xff]
        %v913 = vld [vmem:[%s228 + $0x1008] sm:$0xff]
        %v914 = vld [vmem:[%s228 + $0x1010] sm:$0xff]
        %v915 = vld [vmem:[%s228 + $0x1018] sm:$0xff]
        %v916 = vld [vmem:[%s228 + $0x1020] sm:$0xff]
        %v917 = vld [vmem:[%s228 + $0x1028] sm:$0xff]
        %v918 = vld [vmem:[%s228 + $0x1030] sm:$0xff]
        %v919 = vld [vmem:[%s228 + $0x1038] sm:$0xff]
        %v920 = vld [vmem:[%s228 + $0x1040] sm:$0xff]
        %v921 = vld [vmem:[%s228 + $0x1048] sm:$0xff]
        %v922 = vld [vmem:[%s228 + $0x1050] sm:$0xff]
        %v923 = vld [vmem:[%s228 + $0x1058] sm:$0xff]
        %v924 = vld [vmem:[%s228 + $0x1060] sm:$0xff]
        %v925 = vld [vmem:[%s228 + $0x1068] sm:$0xff]
        %v926 = vld [vmem:[%s228 + $0x1070] sm:$0xff]
        %v927 = vld [vmem:[%s228 + $0x1078] sm:$0xff]
        %v928 = vld [vmem:[%s228 + $0x1080] sm:$0xff]
        %v929 = vld [vmem:[%s228 + $0x1088] sm:$0xff]
        %v930 = vld [vmem:[%s228 + $0x1090] sm:$0xff]
        %v931 = vld [vmem:[%s228 + $0x1098] sm:$0xff]
        %v932 = vld [vmem:[%s228 + $0x10a0] sm:$0xff]
        %v933 = vld [vmem:[%s228 + $0x10a8] sm:$0xff]
        %v934 = vld [vmem:[%s228 + $0x10b0] sm:$0xff]
        %v935 = vld [vmem:[%s228 + $0x10b8] sm:$0xff]
        %v936 = vld [vmem:[%s228 + $0x10c0] sm:$0xff]
        %v937 = vld [vmem:[%s228 + $0x10c8] sm:$0xff]
        %v938 = vld [vmem:[%s228 + $0x10d0] sm:$0xff]
        %v939 = vld [vmem:[%s228 + $0x10d8] sm:$0xff]
        %v940 = vld [vmem:[%s228 + $0x10e0] sm:$0xff]
        %v941 = vld [vmem:[%s228 + $0x10e8] sm:$0xff]
        %v942 = vld [vmem:[%s228 + $0x10f0] sm:$0xff]
        %v943 = vld [vmem:[%s228 + $0x10f8] sm:$0xff]
        %v944 = vld [vmem:[%s228 + $0x1100] sm:$0xff]
        %v945 = vld [vmem:[%s228 + $0x1108] sm:$0xff]
        %v946 = vld [vmem:[%s228 + $0x1110] sm:$0xff]
        %v947 = vld [vmem:[%s228 + $0x1118] sm:$0xff]
        %v948 = vld [vmem:[%s228 + $0x1120] sm:$0xff]
        %v949 = vld [vmem:[%s228 + $0x1128] sm:$0xff]
        %v950 = vld [vmem:[%s228 + $0x1130] sm:$0xff]
        %v951 = vld [vmem:[%s228 + $0x1138] sm:$0xff]
        %v952 = vld [vmem:[%s228 + $0x1140] sm:$0xff]
        %v953 = vld [vmem:[%s228 + $0x1148] sm:$0xff]
        %v954 = vld [vmem:[%s228 + $0x1150] sm:$0xff]
        %v955 = vld [vmem:[%s228 + $0x1158] sm:$0xff]
        %v956 = vld [vmem:[%s228 + $0x1160] sm:$0xff]
        %v957 = vld [vmem:[%s228 + $0x1168] sm:$0xff]
        %v958 = vld [vmem:[%s228 + $0x1170] sm:$0xff]
        %v959 = vld [vmem:[%s228 + $0x1178] sm:$0xff]
        %v960 = vld [vmem:[%s228 + $0x1180] sm:$0xff]
        %v961 = vld [vmem:[%s228 + $0x1188] sm:$0xff]
        %v962 = vld [vmem:[%s228 + $0x1190] sm:$0xff]
        %v963 = vld [vmem:[%s228 + $0x1198] sm:$0xff]
        %v964 = vld [vmem:[%s228 + $0x11a0] sm:$0xff]
        %v965 = vld [vmem:[%s228 + $0x11a8] sm:$0xff]
        %v966 = vld [vmem:[%s228 + $0x11b0] sm:$0xff]
        %v967 = vld [vmem:[%s228 + $0x11b8] sm:$0xff]
        %v968 = vld [vmem:[%s228 + $0x11c0] sm:$0xff]
        %v969 = vld [vmem:[%s228 + $0x11c8] sm:$0xff]
        %v970 = vld [vmem:[%s228 + $0x11d0] sm:$0xff]
        %v971 = vld [vmem:[%s228 + $0x11d8] sm:$0xff]
        %v972 = vld [vmem:[%s228 + $0x11e0] sm:$0xff]
        %v973 = vld [vmem:[%s228 + $0x11e8] sm:$0xff]
        %v974 = vld [vmem:[%s228 + $0x11f0] sm:$0xff]
        %v975 = vld [vmem:[%s228 + $0x11f8] sm:$0xff]
        %v976 = vld [vmem:[%s228 + $0x1200] sm:$0xff]
        %v977 = vld [vmem:[%s228 + $0x1208] sm:$0xff]
        %v978 = vld [vmem:[%s228 + $0x1210] sm:$0xff]
        %v979 = vld [vmem:[%s228 + $0x1218] sm:$0xff]
        %v980 = vld [vmem:[%s228 + $0x1220] sm:$0xff]
        %v981 = vld [vmem:[%s228 + $0x1228] sm:$0xff]
        %v982 = vld [vmem:[%s228 + $0x1230] sm:$0xff]
        %v983 = vld [vmem:[%s228 + $0x1238] sm:$0xff]
        %v984 = vld [vmem:[%s228 + $0x1240] sm:$0xff]
        %v985 = vld [vmem:[%s228 + $0x1248] sm:$0xff]
        %v986 = vld [vmem:[%s228 + $0x1250] sm:$0xff]
        %v987 = vld [vmem:[%s228 + $0x1258] sm:$0xff]
        %v988 = vld [vmem:[%s228 + $0x1260] sm:$0xff]
        %v989 = vld [vmem:[%s228 + $0x1268] sm:$0xff]
        %v990 = vld [vmem:[%s228 + $0x1270] sm:$0xff]
        %v991 = vld [vmem:[%s228 + $0x1278] sm:$0xff]
        %v992 = vld [vmem:[%s228 + $0x1280] sm:$0xff]
        %v993 = vld [vmem:[%s228 + $0x1288] sm:$0xff]
        %v994 = vld [vmem:[%s228 + $0x1290] sm:$0xff]
        %v995 = vld [vmem:[%s228 + $0x1298] sm:$0xff]
        %v996 = vld [vmem:[%s228 + $0x12a0] sm:$0xff]
        %v997 = vld [vmem:[%s228 + $0x12a8] sm:$0xff]
        %v998 = vld [vmem:[%s228 + $0x12b0] sm:$0xff]
        %v999 = vld [vmem:[%s228 + $0x12b8] sm:$0xff]
        %v1000 = vld [vmem:[%s228 + $0x12c0] sm:$0xff]
        %v1001 = vld [vmem:[%s228 + $0x12c8] sm:$0xff]
        %v1002 = vld [vmem:[%s228 + $0x12d0] sm:$0xff]
        %v1003 = vld [vmem:[%s228 + $0x12d8] sm:$0xff]
        %v1004 = vld [vmem:[%s228 + $0x12e0] sm:$0xff]
        %v1005 = vld [vmem:[%s228 + $0x12e8] sm:$0xff]
        %v1006 = vld [vmem:[%s228 + $0x12f0] sm:$0xff]
        %v1007 = vld [vmem:[%s228 + $0x12f8] sm:$0xff]
        %v1008 = vld [vmem:[%s228 + $0x1300] sm:$0xff]
        %v1009 = vld [vmem:[%s228 + $0x1308] sm:$0xff]
        %v1010 = vld [vmem:[%s228 + $0x1310] sm:$0xff]
        %v1011 = vld [vmem:[%s228 + $0x1318] sm:$0xff]
        %v1012 = vld [vmem:[%s228 + $0x1320] sm:$0xff]
        %v1013 = vld [vmem:[%s228 + $0x1328] sm:$0xff]
        %v1014 = vld [vmem:[%s228 + $0x1330] sm:$0xff]
        %v1015 = vld [vmem:[%s228 + $0x1338] sm:$0xff]
        %v1016 = vld [vmem:[%s228 + $0x1340] sm:$0xff]
        %v1017 = vld [vmem:[%s228 + $0x1348] sm:$0xff]
        %v1018 = vld [vmem:[%s228 + $0x1350] sm:$0xff]
        %v1019 = vld [vmem:[%s228 + $0x1358] sm:$0xff]
        %v1020 = vld [vmem:[%s228 + $0x1360] sm:$0xff]
        %v1021 = vld [vmem:[%s228 + $0x1368] sm:$0xff]
        %v1022 = vld [vmem:[%s228 + $0x1370] sm:$0xff]
        %v1023 = vld [vmem:[%s228 + $0x1378] sm:$0xff]
        %v1024 = vld [vmem:[%s228 + $0x1380] sm:$0xff]
        %v1025 = vld [vmem:[%s228 + $0x1388] sm:$0xff]
        %v1026 = vld [vmem:[%s228 + $0x1390] sm:$0xff]
        %v1027 = vld [vmem:[%s228 + $0x1398] sm:$0xff]
        %v1028 = vld [vmem:[%s228 + $0x13a0] sm:$0xff]
        %v1029 = vld [vmem:[%s228 + $0x13a8] sm:$0xff]
        %v1030 = vld [vmem:[%s228 + $0x13b0] sm:$0xff]
        %v1031 = vld [vmem:[%s228 + $0x13b8] sm:$0xff]
        %v1032 = vld [vmem:[%s228 + $0x13c0] sm:$0xff]
        %v1033 = vld [vmem:[%s228 + $0x13c8] sm:$0xff]
        %v1034 = vld [vmem:[%s228 + $0x13d0] sm:$0xff]
        %v1035 = vld [vmem:[%s228 + $0x13d8] sm:$0xff]
        %v1036 = vld [vmem:[%s228 + $0x13e0] sm:$0xff]
        %v1037 = vld [vmem:[%s228 + $0x13e8] sm:$0xff]
        %v1038 = vld [vmem:[%s228 + $0x13f0] sm:$0xff]
        %v1039 = vld [vmem:[%s228 + $0x13f8] sm:$0xff]
        %v1040 = vld [vmem:[%s228 + $0x1400] sm:$0xff]
        %v1041 = vld [vmem:[%s228 + $0x1408] sm:$0xff]
        %v1042 = vld [vmem:[%s228 + $0x1410] sm:$0xff]
        %v1043 = vld [vmem:[%s228 + $0x1418] sm:$0xff]
        %v1044 = vld [vmem:[%s228 + $0x1420] sm:$0xff]
        %v1045 = vld [vmem:[%s228 + $0x1428] sm:$0xff]
        %v1046 = vld [vmem:[%s228 + $0x1430] sm:$0xff]
        %v1047 = vld [vmem:[%s228 + $0x1438] sm:$0xff]
        %v1048 = vld [vmem:[%s228 + $0x1440] sm:$0xff]
        %v1049 = vld [vmem:[%s228 + $0x1448] sm:$0xff]
        %v1050 = vld [vmem:[%s228 + $0x1450] sm:$0xff]
        %v1051 = vld [vmem:[%s228 + $0x1458] sm:$0xff]
        %v1052 = vld [vmem:[%s228 + $0x1460] sm:$0xff]
        %v1053 = vld [vmem:[%s228 + $0x1468] sm:$0xff]
        %v1054 = vld [vmem:[%s228 + $0x1470] sm:$0xff]
        %v1055 = vld [vmem:[%s228 + $0x1478] sm:$0xff]
        %v1056 = vld [vmem:[%s228 + $0x1480] sm:$0xff]
        %v1057 = vld [vmem:[%s228 + $0x1488] sm:$0xff]
        %v1058 = vld [vmem:[%s228 + $0x1490] sm:$0xff]
        %v1059 = vld [vmem:[%s228 + $0x1498] sm:$0xff]
        %v1060 = vld [vmem:[%s228 + $0x14a0] sm:$0xff]
        %v1061 = vld [vmem:[%s228 + $0x14a8] sm:$0xff]
        %v1062 = vld [vmem:[%s228 + $0x14b0] sm:$0xff]
        %v1063 = vld [vmem:[%s228 + $0x14b8] sm:$0xff]
        %v1064 = vld [vmem:[%s228 + $0x14c0] sm:$0xff]
        %v1065 = vld [vmem:[%s228 + $0x14c8] sm:$0xff]
        %v1066 = vld [vmem:[%s228 + $0x14d0] sm:$0xff]
        %v1067 = vld [vmem:[%s228 + $0x14d8] sm:$0xff]
        %v1068 = vld [vmem:[%s228 + $0x14e0] sm:$0xff]
        %v1069 = vld [vmem:[%s228 + $0x14e8] sm:$0xff]
        %v1070 = vld [vmem:[%s228 + $0x14f0] sm:$0xff]
        %v1071 = vld [vmem:[%s228 + $0x14f8] sm:$0xff]
        %v1072 = vld [vmem:[%s228 + $0x1500] sm:$0xff]
        %v1073 = vld [vmem:[%s228 + $0x1508] sm:$0xff]
        %v1074 = vld [vmem:[%s228 + $0x1510] sm:$0xff]
        %v1075 = vld [vmem:[%s228 + $0x1518] sm:$0xff]
        %v1076 = vld [vmem:[%s228 + $0x1520] sm:$0xff]
        %v1077 = vld [vmem:[%s228 + $0x1528] sm:$0xff]
        %v1078 = vld [vmem:[%s228 + $0x1530] sm:$0xff]
        %v1079 = vld [vmem:[%s228 + $0x1538] sm:$0xff]
        %v1080 = vld [vmem:[%s228 + $0x1540] sm:$0xff]
        %v1081 = vld [vmem:[%s228 + $0x1548] sm:$0xff]
        %v1082 = vld [vmem:[%s228 + $0x1550] sm:$0xff]
        %v1083 = vld [vmem:[%s228 + $0x1558] sm:$0xff]
        %v1084 = vld [vmem:[%s228 + $0x1560] sm:$0xff]
        %v1085 = vld [vmem:[%s228 + $0x1568] sm:$0xff]
        %v1086 = vld [vmem:[%s228 + $0x1570] sm:$0xff]
        %v1087 = vld [vmem:[%s228 + $0x1578] sm:$0xff]
        %v1088 = vld [vmem:[%s228 + $0x1580] sm:$0xff]
        %v1089 = vld [vmem:[%s228 + $0x1588] sm:$0xff]
        %v1090 = vld [vmem:[%s228 + $0x1590] sm:$0xff]
        %v1091 = vld [vmem:[%s228 + $0x1598] sm:$0xff]
        %v1092 = vld [vmem:[%s228 + $0x15a0] sm:$0xff]
        %v1093 = vld [vmem:[%s228 + $0x15a8] sm:$0xff]
        %v1094 = vld [vmem:[%s228 + $0x15b0] sm:$0xff]
        %v1095 = vld [vmem:[%s228 + $0x15b8] sm:$0xff]
        %v1096 = vld [vmem:[%s228 + $0x15c0] sm:$0xff]
        %v1097 = vld [vmem:[%s228 + $0x15c8] sm:$0xff]
        %v1098 = vld [vmem:[%s228 + $0x15d0] sm:$0xff]
        %v1099 = vld [vmem:[%s228 + $0x15d8] sm:$0xff]
        %v1100 = vld [vmem:[%s228 + $0x15e0] sm:$0xff]
        %v1101 = vld [vmem:[%s228 + $0x15e8] sm:$0xff]
        %v1102 = vld [vmem:[%s228 + $0x15f0] sm:$0xff]
        %v1103 = vld [vmem:[%s228 + $0x15f8] sm:$0xff]
        %v1104 = vld [vmem:[%s228 + $0x1600] sm:$0xff]
        %v1105 = vld [vmem:[%s228 + $0x1608] sm:$0xff]
        %v1106 = vld [vmem:[%s228 + $0x1610] sm:$0xff]
        %v1107 = vld [vmem:[%s228 + $0x1618] sm:$0xff]
        %v1108 = vld [vmem:[%s228 + $0x1620] sm:$0xff]
        %v1109 = vld [vmem:[%s228 + $0x1628] sm:$0xff]
        %v1110 = vld [vmem:[%s228 + $0x1630] sm:$0xff]
        %v1111 = vld [vmem:[%s228 + $0x1638] sm:$0xff]
        %v1112 = vld [vmem:[%s228 + $0x1640] sm:$0xff]
        %v1113 = vld [vmem:[%s228 + $0x1648] sm:$0xff]
        %v1114 = vld [vmem:[%s228 + $0x1650] sm:$0xff]
        %v1115 = vld [vmem:[%s228 + $0x1658] sm:$0xff]
        %v1116 = vld [vmem:[%s228 + $0x1660] sm:$0xff]
        %v1117 = vld [vmem:[%s228 + $0x1668] sm:$0xff]
        %v1118 = vld [vmem:[%s228 + $0x1670] sm:$0xff]
        %v1119 = vld [vmem:[%s228 + $0x1678] sm:$0xff]
        %v1120 = vld [vmem:[%s228 + $0x1680] sm:$0xff]
        %v1121 = vld [vmem:[%s228 + $0x1688] sm:$0xff]
        %v1122 = vld [vmem:[%s228 + $0x1690] sm:$0xff]
        %v1123 = vld [vmem:[%s228 + $0x1698] sm:$0xff]
        %v1124 = vld [vmem:[%s228 + $0x16a0] sm:$0xff]
        %v1125 = vld [vmem:[%s228 + $0x16a8] sm:$0xff]
        %v1126 = vld [vmem:[%s228 + $0x16b0] sm:$0xff]
        %v1127 = vld [vmem:[%s228 + $0x16b8] sm:$0xff]
        %v1128 = vld [vmem:[%s228 + $0x16c0] sm:$0xff]
        %v1129 = vld [vmem:[%s228 + $0x16c8] sm:$0xff]
        %v1130 = vld [vmem:[%s228 + $0x16d0] sm:$0xff]
        %v1131 = vld [vmem:[%s228 + $0x16d8] sm:$0xff]
        %v1132 = vld [vmem:[%s228 + $0x16e0] sm:$0xff]
        %v1133 = vld [vmem:[%s228 + $0x16e8] sm:$0xff]
        %v1134 = vld [vmem:[%s228 + $0x16f0] sm:$0xff]
        %v1135 = vld [vmem:[%s228 + $0x16f8] sm:$0xff]
        %v1136 = vld [vmem:[%s228 + $0x1700] sm:$0xff]
        %v1137 = vld [vmem:[%s228 + $0x1708] sm:$0xff]
        %v1138 = vld [vmem:[%s228 + $0x1710] sm:$0xff]
        %v1139 = vld [vmem:[%s228 + $0x1718] sm:$0xff]
        %v1140 = vld [vmem:[%s228 + $0x1720] sm:$0xff]
        %v1141 = vld [vmem:[%s228 + $0x1728] sm:$0xff]
        %v1142 = vld [vmem:[%s228 + $0x1730] sm:$0xff]
        %v1143 = vld [vmem:[%s228 + $0x1738] sm:$0xff]
        %v1144 = vld [vmem:[%s228 + $0x1740] sm:$0xff]
        %v1145 = vld [vmem:[%s228 + $0x1748] sm:$0xff]
        %v1146 = vld [vmem:[%s228 + $0x1750] sm:$0xff]
        %v1147 = vld [vmem:[%s228 + $0x1758] sm:$0xff]
        %v1148 = vld [vmem:[%s228 + $0x1760] sm:$0xff]
        %v1149 = vld [vmem:[%s228 + $0x1768] sm:$0xff]
        %v1150 = vld [vmem:[%s228 + $0x1770] sm:$0xff]
        %v1151 = vld [vmem:[%s228 + $0x1778] sm:$0xff]
        %v1152 = vld [vmem:[%s228 + $0x1780] sm:$0xff]
        %v1153 = vld [vmem:[%s228 + $0x1788] sm:$0xff]
        %v1154 = vld [vmem:[%s228 + $0x1790] sm:$0xff]
        %v1155 = vld [vmem:[%s228 + $0x1798] sm:$0xff]
        %v1156 = vld [vmem:[%s228 + $0x17a0] sm:$0xff]
        %v1157 = vld [vmem:[%s228 + $0x17a8] sm:$0xff]
        %v1158 = vld [vmem:[%s228 + $0x17b0] sm:$0xff]
        %v1159 = vld [vmem:[%s228 + $0x17b8] sm:$0xff]
        %v1160 = vld [vmem:[%s228 + $0x17c0] sm:$0xff]
        %v1161 = vld [vmem:[%s228 + $0x17c8] sm:$0xff]
        %v1162 = vld [vmem:[%s228 + $0x17d0] sm:$0xff]
        %v1163 = vld [vmem:[%s228 + $0x17d8] sm:$0xff]
        %v1164 = vld [vmem:[%s228 + $0x17e0] sm:$0xff]
        %v1165 = vld [vmem:[%s228 + $0x17e8] sm:$0xff]
        %v1166 = vld [vmem:[%s228 + $0x17f0] sm:$0xff]
        %v1167 = vld [vmem:[%s228 + $0x17f8] sm:$0xff]
        %v1168 = vld [vmem:[%s228 + $0x1800] sm:$0xff]
        %v1169 = vld [vmem:[%s228 + $0x1808] sm:$0xff]
        %v1170 = vld [vmem:[%s228 + $0x1810] sm:$0xff]
        %v1171 = vld [vmem:[%s228 + $0x1818] sm:$0xff]
        %v1172 = vld [vmem:[%s228 + $0x1820] sm:$0xff]
        %v1173 = vld [vmem:[%s228 + $0x1828] sm:$0xff]
        %v1174 = vld [vmem:[%s228 + $0x1830] sm:$0xff]
        %v1175 = vld [vmem:[%s228 + $0x1838] sm:$0xff]
        %v1176 = vld [vmem:[%s228 + $0x1840] sm:$0xff]
        %v1177 = vld [vmem:[%s228 + $0x1848] sm:$0xff]
        %v1178 = vld [vmem:[%s228 + $0x1850] sm:$0xff]
        %v1179 = vld [vmem:[%s228 + $0x1858] sm:$0xff]
        %v1180 = vld [vmem:[%s228 + $0x1860] sm:$0xff]
        %v1181 = vld [vmem:[%s228 + $0x1868] sm:$0xff]
        %v1182 = vld [vmem:[%s228 + $0x1870] sm:$0xff]
        %v1183 = vld [vmem:[%s228 + $0x1878] sm:$0xff]
        %v1184 = vld [vmem:[%s228 + $0x1880] sm:$0xff]
        %v1185 = vld [vmem:[%s228 + $0x1888] sm:$0xff]
        %v1186 = vld [vmem:[%s228 + $0x1890] sm:$0xff]
        %v1187 = vld [vmem:[%s228 + $0x1898] sm:$0xff]
        %v1188 = vld [vmem:[%s228 + $0x18a0] sm:$0xff]
        %v1189 = vld [vmem:[%s228 + $0x18a8] sm:$0xff]
        %v1190 = vld [vmem:[%s228 + $0x18b0] sm:$0xff]
        %v1191 = vld [vmem:[%s228 + $0x18b8] sm:$0xff]
        %v1192 = vld [vmem:[%s228 + $0x18c0] sm:$0xff]
        %v1193 = vld [vmem:[%s228 + $0x18c8] sm:$0xff]
        %v1194 = vld [vmem:[%s228 + $0x18d0] sm:$0xff]
        %v1195 = vld [vmem:[%s228 + $0x18d8] sm:$0xff]
        %v1196 = vld [vmem:[%s228 + $0x18e0] sm:$0xff]
        %v1197 = vld [vmem:[%s228 + $0x18e8] sm:$0xff]
        %v1198 = vld [vmem:[%s228 + $0x18f0] sm:$0xff]
        %v1199 = vld [vmem:[%s228 + $0x18f8] sm:$0xff]
        %v1200 = vld [vmem:[%s228 + $0x1900] sm:$0xff]
        %v1201 = vld [vmem:[%s228 + $0x1908] sm:$0xff]
        %v1202 = vld [vmem:[%s228 + $0x1910] sm:$0xff]
        %v1203 = vld [vmem:[%s228 + $0x1918] sm:$0xff]
        %v1204 = vld [vmem:[%s228 + $0x1920] sm:$0xff]
        %v1205 = vld [vmem:[%s228 + $0x1928] sm:$0xff]
        %v1206 = vld [vmem:[%s228 + $0x1930] sm:$0xff]
        %v1207 = vld [vmem:[%s228 + $0x1938] sm:$0xff]
        %v1208 = vld [vmem:[%s228 + $0x1940] sm:$0xff]
        %v1209 = vld [vmem:[%s228 + $0x1948] sm:$0xff]
        %v1210 = vld [vmem:[%s228 + $0x1950] sm:$0xff]
        %v1211 = vld [vmem:[%s228 + $0x1958] sm:$0xff]
        %v1212 = vld [vmem:[%s228 + $0x1960] sm:$0xff]
        %v1213 = vld [vmem:[%s228 + $0x1968] sm:$0xff]
        %v1214 = vld [vmem:[%s228 + $0x1970] sm:$0xff]
        %v1215 = vld [vmem:[%s228 + $0x1978] sm:$0xff]
        %v1216 = vld [vmem:[%s228 + $0x1980] sm:$0xff]
        %v1217 = vld [vmem:[%s228 + $0x1988] sm:$0xff]
        %v1218 = vld [vmem:[%s228 + $0x1990] sm:$0xff]
        %v1219 = vld [vmem:[%s228 + $0x1998] sm:$0xff]
        %v1220 = vld [vmem:[%s228 + $0x19a0] sm:$0xff]
        %v1221 = vld [vmem:[%s228 + $0x19a8] sm:$0xff]
        %v1222 = vld [vmem:[%s228 + $0x19b0] sm:$0xff]
        %v1223 = vld [vmem:[%s228 + $0x19b8] sm:$0xff]
        %v1224 = vld [vmem:[%s228 + $0x19c0] sm:$0xff]
        %v1225 = vld [vmem:[%s228 + $0x19c8] sm:$0xff]
        %v1226 = vld [vmem:[%s228 + $0x19d0] sm:$0xff]
        %v1227 = vld [vmem:[%s228 + $0x19d8] sm:$0xff]
        %v1228 = vld [vmem:[%s228 + $0x19e0] sm:$0xff]
        %v1229 = vld [vmem:[%s228 + $0x19e8] sm:$0xff]
        %v1230 = vld [vmem:[%s228 + $0x19f0] sm:$0xff]
        %v1231 = vld [vmem:[%s228 + $0x19f8] sm:$0xff]
        %v1232 = vld [vmem:[%s228 + $0x1a00] sm:$0xff]
        %v1233 = vld [vmem:[%s228 + $0x1a08] sm:$0xff]
        %v1234 = vld [vmem:[%s228 + $0x1a10] sm:$0xff]
        %v1235 = vld [vmem:[%s228 + $0x1a18] sm:$0xff]
        %v1236 = vld [vmem:[%s228 + $0x1a20] sm:$0xff]
        %v1237 = vld [vmem:[%s228 + $0x1a28] sm:$0xff]
        %v1238 = vld [vmem:[%s228 + $0x1a30] sm:$0xff]
        %v1239 = vld [vmem:[%s228 + $0x1a38] sm:$0xff]
        %v1240 = vld [vmem:[%s228 + $0x1a40] sm:$0xff]
        %v1241 = vld [vmem:[%s228 + $0x1a48] sm:$0xff]
        %v1242 = vld [vmem:[%s228 + $0x1a50] sm:$0xff]
        %v1243 = vld [vmem:[%s228 + $0x1a58] sm:$0xff]
        %v1244 = vld [vmem:[%s228 + $0x1a60] sm:$0xff]
        %v1245 = vld [vmem:[%s228 + $0x1a68] sm:$0xff]
        %v1246 = vld [vmem:[%s228 + $0x1a70] sm:$0xff]
        %v1247 = vld [vmem:[%s228 + $0x1a78] sm:$0xff]
        %v1248 = vld [vmem:[%s228 + $0x1a80] sm:$0xff]
        %v1249 = vld [vmem:[%s228 + $0x1a88] sm:$0xff]
        %v1250 = vld [vmem:[%s228 + $0x1a90] sm:$0xff]
        %v1251 = vld [vmem:[%s228 + $0x1a98] sm:$0xff]
        %v1252 = vld [vmem:[%s228 + $0x1aa0] sm:$0xff]
        %v1253 = vld [vmem:[%s228 + $0x1aa8] sm:$0xff]
        %v1254 = vld [vmem:[%s228 + $0x1ab0] sm:$0xff]
        %v1255 = vld [vmem:[%s228 + $0x1ab8] sm:$0xff]
        %v1256 = vld [vmem:[%s228 + $0x1ac0] sm:$0xff]
        %v1257 = vld [vmem:[%s228 + $0x1ac8] sm:$0xff]
        %v1258 = vld [vmem:[%s228 + $0x1ad0] sm:$0xff]
        %v1259 = vld [vmem:[%s228 + $0x1ad8] sm:$0xff]
        %v1260 = vld [vmem:[%s228 + $0x1ae0] sm:$0xff]
        %v1261 = vld [vmem:[%s228 + $0x1ae8] sm:$0xff]
        %v1262 = vld [vmem:[%s228 + $0x1af0] sm:$0xff]
        %v1263 = vld [vmem:[%s228 + $0x1af8] sm:$0xff]
        %v1264 = vld [vmem:[%s228 + $0x1b00] sm:$0xff]
        %v1265 = vld [vmem:[%s228 + $0x1b08] sm:$0xff]
        %v1266 = vld [vmem:[%s228 + $0x1b10] sm:$0xff]
        %v1267 = vld [vmem:[%s228 + $0x1b18] sm:$0xff]
        %v1268 = vld [vmem:[%s228 + $0x1b20] sm:$0xff]
        %v1269 = vld [vmem:[%s228 + $0x1b28] sm:$0xff]
        %v1270 = vld [vmem:[%s228 + $0x1b30] sm:$0xff]
        %v1271 = vld [vmem:[%s228 + $0x1b38] sm:$0xff]
        %v1272 = vld [vmem:[%s228 + $0x1b40] sm:$0xff]
        %v1273 = vld [vmem:[%s228 + $0x1b48] sm:$0xff]
        %v1274 = vld [vmem:[%s228 + $0x1b50] sm:$0xff]
        %v1275 = vld [vmem:[%s228 + $0x1b58] sm:$0xff]
        %v1276 = vld [vmem:[%s228 + $0x1b60] sm:$0xff]
        %v1277 = vld [vmem:[%s228 + $0x1b68] sm:$0xff]
        %v1278 = vld [vmem:[%s228 + $0x1b70] sm:$0xff]
        %v1279 = vld [vmem:[%s228 + $0x1b78] sm:$0xff]
        %v1280 = vld [vmem:[%s228 + $0x1b80] sm:$0xff]
        %v1281 = vld [vmem:[%s228 + $0x1b88] sm:$0xff]
        %v1282 = vld [vmem:[%s228 + $0x1b90] sm:$0xff]
        %v1283 = vld [vmem:[%s228 + $0x1b98] sm:$0xff]
        %v1284 = vld [vmem:[%s228 + $0x1ba0] sm:$0xff]
        %v1285 = vld [vmem:[%s228 + $0x1ba8] sm:$0xff]
        %v1286 = vld [vmem:[%s228 + $0x1bb0] sm:$0xff]
        %v1287 = vld [vmem:[%s228 + $0x1bb8] sm:$0xff]
        %v1288 = vld [vmem:[%s228 + $0x1bc0] sm:$0xff]
        %v1289 = vld [vmem:[%s228 + $0x1bc8] sm:$0xff]
        %v1290 = vld [vmem:[%s228 + $0x1bd0] sm:$0xff]
        %v1291 = vld [vmem:[%s228 + $0x1bd8] sm:$0xff]
        %v1292 = vld [vmem:[%s228 + $0x1be0] sm:$0xff]
        %v1293 = vld [vmem:[%s228 + $0x1be8] sm:$0xff]
        %v1294 = vld [vmem:[%s228 + $0x1bf0] sm:$0xff]
        %v1295 = vld [vmem:[%s228 + $0x1bf8] sm:$0xff]
        %v1296 = vld [vmem:[%s228 + $0x1c00] sm:$0xff]
        %v1297 = vld [vmem:[%s228 + $0x1c08] sm:$0xff]
        %v1298 = vld [vmem:[%s228 + $0x1c10] sm:$0xff]
        %v1299 = vld [vmem:[%s228 + $0x1c18] sm:$0xff]
        %v1300 = vld [vmem:[%s228 + $0x1c20] sm:$0xff]
        %v1301 = vld [vmem:[%s228 + $0x1c28] sm:$0xff]
        %v1302 = vld [vmem:[%s228 + $0x1c30] sm:$0xff]
        %v1303 = vld [vmem:[%s228 + $0x1c38] sm:$0xff]
        %v1304 = vld [vmem:[%s228 + $0x1c40] sm:$0xff]
        %v1305 = vld [vmem:[%s228 + $0x1c48] sm:$0xff]
        %v1306 = vld [vmem:[%s228 + $0x1c50] sm:$0xff]
        %v1307 = vld [vmem:[%s228 + $0x1c58] sm:$0xff]
        %v1308 = vld [vmem:[%s228 + $0x1c60] sm:$0xff]
        %v1309 = vld [vmem:[%s228 + $0x1c68] sm:$0xff]
        %v1310 = vld [vmem:[%s228 + $0x1c70] sm:$0xff]
        %v1311 = vld [vmem:[%s228 + $0x1c78] sm:$0xff]
        %v1312 = vld [vmem:[%s228 + $0x1c80] sm:$0xff]
        %v1313 = vld [vmem:[%s228 + $0x1c88] sm:$0xff]
        %v1314 = vld [vmem:[%s228 + $0x1c90] sm:$0xff]
        %v1315 = vld [vmem:[%s228 + $0x1c98] sm:$0xff]
        %v1316 = vld [vmem:[%s228 + $0x1ca0] sm:$0xff]
        %v1317 = vld [vmem:[%s228 + $0x1ca8] sm:$0xff]
        %v1318 = vld [vmem:[%s228 + $0x1cb0] sm:$0xff]
        %v1319 = vld [vmem:[%s228 + $0x1cb8] sm:$0xff]
        %v1320 = vld [vmem:[%s228 + $0x1cc0] sm:$0xff]
        %v1321 = vld [vmem:[%s228 + $0x1cc8] sm:$0xff]
        %v1322 = vld [vmem:[%s228 + $0x1cd0] sm:$0xff]
        %v1323 = vld [vmem:[%s228 + $0x1cd8] sm:$0xff]
        %v1324 = vld [vmem:[%s228 + $0x1ce0] sm:$0xff]
        %v1325 = vld [vmem:[%s228 + $0x1ce8] sm:$0xff]
        %v1326 = vld [vmem:[%s228 + $0x1cf0] sm:$0xff]
        %v1327 = vld [vmem:[%s228 + $0x1cf8] sm:$0xff]
        %v1328 = vld [vmem:[%s228 + $0x1d00] sm:$0xff]
        %v1329 = vld [vmem:[%s228 + $0x1d08] sm:$0xff]
        %v1330 = vld [vmem:[%s228 + $0x1d10] sm:$0xff]
        %v1331 = vld [vmem:[%s228 + $0x1d18] sm:$0xff]
        %v1332 = vld [vmem:[%s228 + $0x1d20] sm:$0xff]
        %v1333 = vld [vmem:[%s228 + $0x1d28] sm:$0xff]
        %v1334 = vld [vmem:[%s228 + $0x1d30] sm:$0xff]
        %v1335 = vld [vmem:[%s228 + $0x1d38] sm:$0xff]
        %v1336 = vld [vmem:[%s228 + $0x1d40] sm:$0xff]
        %v1337 = vld [vmem:[%s228 + $0x1d48] sm:$0xff]
        %v1338 = vld [vmem:[%s228 + $0x1d50] sm:$0xff]
        %v1339 = vld [vmem:[%s228 + $0x1d58] sm:$0xff]
        %v1340 = vld [vmem:[%s228 + $0x1d60] sm:$0xff]
        %v1341 = vld [vmem:[%s228 + $0x1d68] sm:$0xff]
        %v1342 = vld [vmem:[%s228 + $0x1d70] sm:$0xff]
        %v1343 = vld [vmem:[%s228 + $0x1d78] sm:$0xff]
        %v1344 = vld [vmem:[%s228 + $0x1d80] sm:$0xff]
        %v1345 = vld [vmem:[%s228 + $0x1d88] sm:$0xff]
        %v1346 = vld [vmem:[%s228 + $0x1d90] sm:$0xff]
        %v1347 = vld [vmem:[%s228 + $0x1d98] sm:$0xff]
        %v1348 = vld [vmem:[%s228 + $0x1da0] sm:$0xff]
        %v1349 = vld [vmem:[%s228 + $0x1da8] sm:$0xff]
        %v1350 = vld [vmem:[%s228 + $0x1db0] sm:$0xff]
        %v1351 = vld [vmem:[%s228 + $0x1db8] sm:$0xff]
        %v1352 = vld [vmem:[%s228 + $0x1dc0] sm:$0xff]
        %v1353 = vld [vmem:[%s228 + $0x1dc8] sm:$0xff]
        %v1354 = vld [vmem:[%s228 + $0x1dd0] sm:$0xff]
        %v1355 = vld [vmem:[%s228 + $0x1dd8] sm:$0xff]
        %v1356 = vld [vmem:[%s228 + $0x1de0] sm:$0xff]
        %v1357 = vld [vmem:[%s228 + $0x1de8] sm:$0xff]
        %v1358 = vld [vmem:[%s228 + $0x1df0] sm:$0xff]
        %v1359 = vld [vmem:[%s228 + $0x1df8] sm:$0xff]
        %v1360 = vld [vmem:[%s228 + $0x1e00] sm:$0xff]
        %v1361 = vld [vmem:[%s228 + $0x1e08] sm:$0xff]
        %v1362 = vld [vmem:[%s228 + $0x1e10] sm:$0xff]
        %v1363 = vld [vmem:[%s228 + $0x1e18] sm:$0xff]
        %v1364 = vld [vmem:[%s228 + $0x1e20] sm:$0xff]
        %v1365 = vld [vmem:[%s228 + $0x1e28] sm:$0xff]
        %v1366 = vld [vmem:[%s228 + $0x1e30] sm:$0xff]
        %v1367 = vld [vmem:[%s228 + $0x1e38] sm:$0xff]
        %v1368 = vld [vmem:[%s228 + $0x1e40] sm:$0xff]
        %v1369 = vld [vmem:[%s228 + $0x1e48] sm:$0xff]
        %v1370 = vld [vmem:[%s228 + $0x1e50] sm:$0xff]
        %v1371 = vld [vmem:[%s228 + $0x1e58] sm:$0xff]
        %v1372 = vld [vmem:[%s228 + $0x1e60] sm:$0xff]
        %v1373 = vld [vmem:[%s228 + $0x1e68] sm:$0xff]
        %v1374 = vld [vmem:[%s228 + $0x1e70] sm:$0xff]
        %v1375 = vld [vmem:[%s228 + $0x1e78] sm:$0xff]
        %v1376 = vld [vmem:[%s228 + $0x1e80] sm:$0xff]
        %v1377 = vld [vmem:[%s228 + $0x1e88] sm:$0xff]
        %v1378 = vld [vmem:[%s228 + $0x1e90] sm:$0xff]
        %v1379 = vld [vmem:[%s228 + $0x1e98] sm:$0xff]
        %v1380 = vld [vmem:[%s228 + $0x1ea0] sm:$0xff]
        %v1381 = vld [vmem:[%s228 + $0x1ea8] sm:$0xff]
        %v1382 = vld [vmem:[%s228 + $0x1eb0] sm:$0xff]
        %v1383 = vld [vmem:[%s228 + $0x1eb8] sm:$0xff]
        %v1384 = vld [vmem:[%s228 + $0x1ec0] sm:$0xff]
        %v1385 = vld [vmem:[%s228 + $0x1ec8] sm:$0xff]
        %v1386 = vld [vmem:[%s228 + $0x1ed0] sm:$0xff]
        %v1387 = vld [vmem:[%s228 + $0x1ed8] sm:$0xff]
        %v1388 = vld [vmem:[%s228 + $0x1ee0] sm:$0xff]
        %v1389 = vld [vmem:[%s228 + $0x1ee8] sm:$0xff]
        %v1390 = vld [vmem:[%s228 + $0x1ef0] sm:$0xff]
        %v1391 = vld [vmem:[%s228 + $0x1ef8] sm:$0xff]
        %v1392 = vld [vmem:[%s228 + $0x1f00] sm:$0xff]
        %v1393 = vld [vmem:[%s228 + $0x1f08] sm:$0xff]
        %v1394 = vld [vmem:[%s228 + $0x1f10] sm:$0xff]
        %v1395 = vld [vmem:[%s228 + $0x1f18] sm:$0xff]
        %v1396 = vld [vmem:[%s228 + $0x1f20] sm:$0xff]
        %v1397 = vld [vmem:[%s228 + $0x1f28] sm:$0xff]
        %v1398 = vld [vmem:[%s228 + $0x1f30] sm:$0xff]
        %v1399 = vld [vmem:[%s228 + $0x1f38] sm:$0xff]
        %v1400 = vld [vmem:[%s228 + $0x1f40] sm:$0xff]
        %v1401 = vld [vmem:[%s228 + $0x1f48] sm:$0xff]
        %v1402 = vld [vmem:[%s228 + $0x1f50] sm:$0xff]
        %v1403 = vld [vmem:[%s228 + $0x1f58] sm:$0xff]
        %v1404 = vld [vmem:[%s228 + $0x1f60] sm:$0xff]
        %v1405 = vld [vmem:[%s228 + $0x1f68] sm:$0xff]
        %v1406 = vld [vmem:[%s228 + $0x1f70] sm:$0xff]
        %v1407 = vld [vmem:[%s228 + $0x1f78] sm:$0xff]
        %v1408 = vld [vmem:[%s228 + $0x1f80] sm:$0xff]
        %v1409 = vld [vmem:[%s228 + $0x1f88] sm:$0xff]
        %v1410 = vld [vmem:[%s228 + $0x1f90] sm:$0xff]
        %v1411 = vld [vmem:[%s228 + $0x1f98] sm:$0xff]
        %v1412 = vld [vmem:[%s228 + $0x1fa0] sm:$0xff]
        %v1413 = vld [vmem:[%s228 + $0x1fa8] sm:$0xff]
        %v1414 = vld [vmem:[%s228 + $0x1fb0] sm:$0xff]
        %v1415 = vld [vmem:[%s228 + $0x1fb8] sm:$0xff]
        %v1416 = vld [vmem:[%s228 + $0x1fc0] sm:$0xff]
        %v1417 = vld [vmem:[%s228 + $0x1fc8] sm:$0xff]
        %v1418 = vld [vmem:[%s228 + $0x1fd0] sm:$0xff]
        %v1419 = vld [vmem:[%s228 + $0x1fd8] sm:$0xff]
        %v1420 = vld [vmem:[%s228 + $0x1fe0] sm:$0xff]
        %v1421 = vld [vmem:[%s228 + $0x1fe8] sm:$0xff]
        %v1422 = vld [vmem:[%s228 + $0x1ff0] sm:$0xff]
        %v1423 = vld [vmem:[%s228 + $0x1ff8] sm:$0xff]
        %v1424 = vld [vmem:[%s238] sm:$0xf]
        %v1426 = vperm.slane %v1424, 0
        %v1427 = vperm.slane %v1424, 1
        %v1428 = vperm.slane %v1424, 2
        %v1429 = vperm.slane %v1424, 3
        %1434 = vmatpush.msra.mxu0 %v460
        %1435 = vmatpush.msra.mxu0 %v456
        %1436 = vmatpush.msra.mxu0 %v452
        %1437 = vmatpush.msra.mxu0 %v448
        %1438 = vmatpush.msra.mxu0 %v444
        %1439 = vmatpush.msra.mxu0 %v440
        %1440 = vmatpush.msra.mxu0 %v436
        %1441 = vmatpush.msra.mxu0 %v432
        %1442 = vmatpush.msra.mxu0 %v428
        %1443 = vmatpush.msra.mxu0 %v424
        %1444 = vmatpush.msra.mxu0 %v420
        %1445 = vmatpush.msra.mxu0 %v416
        %1446 = vmatpush.msra.mxu0 %v412
        %1447 = vmatpush.msra.mxu0 %v408
        %1448 = vmatpush.msra.mxu0 %v404
        %1449 = vmatpush.msra.mxu0 %v400
        %1450 = vmatmul.f32.gmra.mxu0 %v272
        %v1451 = vpop.f32.mrf.mxu0
        %v1452 = vadd.f32 %v1426, %v1451
        %1453 = vmatmul.f32.gmra.mxu0 %v288
        %v1454 = vpop.f32.mrf.mxu0
        %v1455 = vadd.f32 %v1426, %v1454
        %1456 = vmatmul.f32.gmra.mxu0 %v304
        %v1457 = vpop.f32.mrf.mxu0
        %v1458 = vadd.f32 %v1426, %v1457
        %1459 = vmatmul.f32.gmra.mxu0 %v320
        %v1460 = vpop.f32.mrf.mxu0
        %v1461 = vadd.f32 %v1426, %v1460
        %1462 = vmatmul.f32.gmra.mxu0 %v336
        %v1463 = vpop.f32.mrf.mxu0
        %v1464 = vadd.f32 %v1426, %v1463
        %1465 = vmatmul.f32.gmra.mxu0 %v352
        %v1466 = vpop.f32.mrf.mxu0
        %v1467 = vadd.f32 %v1426, %v1466
        %1468 = vmatmul.f32.gmra.mxu0 %v368
        %v1469 = vpop.f32.mrf.mxu0
        %v1470 = vadd.f32 %v1426, %v1469
        %1471 = vmatmul.f32.gmra.mxu0 %v384
        %v1472 = vpop.f32.mrf.mxu0
        %v1473 = vadd.f32 %v1426, %v1472
        %1474 = vdwg.mxu0
        %1475 = vmatpush.msra.mxu0 %v524
        %1476 = vmatpush.msra.mxu0 %v520
        %1477 = vmatpush.msra.mxu0 %v516
        %1478 = vmatpush.msra.mxu0 %v512
        %1479 = vmatpush.msra.mxu0 %v508
        %1480 = vmatpush.msra.mxu0 %v504
        %1481 = vmatpush.msra.mxu0 %v500
        %1482 = vmatpush.msra.mxu0 %v496
        %1483 = vmatpush.msra.mxu0 %v492
        %1484 = vmatpush.msra.mxu0 %v488
        %1485 = vmatpush.msra.mxu0 %v484
        %1486 = vmatpush.msra.mxu0 %v480
        %1487 = vmatpush.msra.mxu0 %v476
        %1488 = vmatpush.msra.mxu0 %v472
        %1489 = vmatpush.msra.mxu0 %v468
        %1490 = vmatpush.msra.mxu0 %v464
        %1491 = vmatmul.f32.gmra.mxu0 %v273
        %v1492 = vpop.f32.mrf.mxu0
        %v1493 = vadd.f32 %v1452, %v1492
        %1494 = vmatmul.f32.gmra.mxu0 %v289
        %v1495 = vpop.f32.mrf.mxu0
        %v1496 = vadd.f32 %v1455, %v1495
        %1497 = vmatmul.f32.gmra.mxu0 %v305
        %v1498 = vpop.f32.mrf.mxu0
        %v1499 = vadd.f32 %v1458, %v1498
        %1500 = vmatmul.f32.gmra.mxu0 %v321
        %v1501 = vpop.f32.mrf.mxu0
        %v1502 = vadd.f32 %v1461, %v1501
        %1503 = vmatmul.f32.gmra.mxu0 %v337
        %v1504 = vpop.f32.mrf.mxu0
        %v1505 = vadd.f32 %v1464, %v1504
        %1506 = vmatmul.f32.gmra.mxu0 %v353
        %v1507 = vpop.f32.mrf.mxu0
        %v1508 = vadd.f32 %v1467, %v1507
        %1509 = vmatmul.f32.gmra.mxu0 %v369
        %v1510 = vpop.f32.mrf.mxu0
        %v1511 = vadd.f32 %v1470, %v1510
        %1512 = vmatmul.f32.gmra.mxu0 %v385
        %v1513 = vpop.f32.mrf.mxu0
        %v1514 = vadd.f32 %v1473, %v1513
        %1515 = vdwg.mxu0
        %1516 = vmatpush.msra.mxu0 %v588
        %1517 = vmatpush.msra.mxu0 %v584
        %1518 = vmatpush.msra.mxu0 %v580
        %1519 = vmatpush.msra.mxu0 %v576
        %1520 = vmatpush.msra.mxu0 %v572
        %1521 = vmatpush.msra.mxu0 %v568
        %1522 = vmatpush.msra.mxu0 %v564
        %1523 = vmatpush.msra.mxu0 %v560
        %1524 = vmatpush.msra.mxu0 %v556
        %1525 = vmatpush.msra.mxu0 %v552
        %1526 = vmatpush.msra.mxu0 %v548
        %1527 = vmatpush.msra.mxu0 %v544
        %1528 = vmatpush.msra.mxu0 %v540
        %1529 = vmatpush.msra.mxu0 %v536
        %1530 = vmatpush.msra.mxu0 %v532
        %1531 = vmatpush.msra.mxu0 %v528
        %1532 = vmatmul.f32.gmra.mxu0 %v274
        %v1533 = vpop.f32.mrf.mxu0
        %v1534 = vadd.f32 %v1493, %v1533
        %1535 = vmatmul.f32.gmra.mxu0 %v290
        %v1536 = vpop.f32.mrf.mxu0
        %v1537 = vadd.f32 %v1496, %v1536
        %1538 = vmatmul.f32.gmra.mxu0 %v306
        %v1539 = vpop.f32.mrf.mxu0
        %v1540 = vadd.f32 %v1499, %v1539
        %1541 = vmatmul.f32.gmra.mxu0 %v322
        %v1542 = vpop.f32.mrf.mxu0
        %v1543 = vadd.f32 %v1502, %v1542
        %1544 = vmatmul.f32.gmra.mxu0 %v338
        %v1545 = vpop.f32.mrf.mxu0
        %v1546 = vadd.f32 %v1505, %v1545
        %1547 = vmatmul.f32.gmra.mxu0 %v354
        %v1548 = vpop.f32.mrf.mxu0
        %v1549 = vadd.f32 %v1508, %v1548
        %1550 = vmatmul.f32.gmra.mxu0 %v370
        %v1551 = vpop.f32.mrf.mxu0
        %v1552 = vadd.f32 %v1511, %v1551
        %1553 = vmatmul.f32.gmra.mxu0 %v386
        %v1554 = vpop.f32.mrf.mxu0
        %v1555 = vadd.f32 %v1514, %v1554
        %1556 = vdwg.mxu0
        %1557 = vmatpush.msra.mxu0 %v652
        %1558 = vmatpush.msra.mxu0 %v648
        %1559 = vmatpush.msra.mxu0 %v644
        %1560 = vmatpush.msra.mxu0 %v640
        %1561 = vmatpush.msra.mxu0 %v636
        %1562 = vmatpush.msra.mxu0 %v632
        %1563 = vmatpush.msra.mxu0 %v628
        %1564 = vmatpush.msra.mxu0 %v624
        %1565 = vmatpush.msra.mxu0 %v620
        %1566 = vmatpush.msra.mxu0 %v616
        %1567 = vmatpush.msra.mxu0 %v612
        %1568 = vmatpush.msra.mxu0 %v608
        %1569 = vmatpush.msra.mxu0 %v604
        %1570 = vmatpush.msra.mxu0 %v600
        %1571 = vmatpush.msra.mxu0 %v596
        %1572 = vmatpush.msra.mxu0 %v592
        %1573 = vmatmul.f32.gmra.mxu0 %v275
        %v1574 = vpop.f32.mrf.mxu0
        %v1575 = vadd.f32 %v1534, %v1574
        %1576 = vmatmul.f32.gmra.mxu0 %v291
        %v1577 = vpop.f32.mrf.mxu0
        %v1578 = vadd.f32 %v1537, %v1577
        %1579 = vmatmul.f32.gmra.mxu0 %v307
        %v1580 = vpop.f32.mrf.mxu0
        %v1581 = vadd.f32 %v1540, %v1580
        %1582 = vmatmul.f32.gmra.mxu0 %v323
        %v1583 = vpop.f32.mrf.mxu0
        %v1584 = vadd.f32 %v1543, %v1583
        %1585 = vmatmul.f32.gmra.mxu0 %v339
        %v1586 = vpop.f32.mrf.mxu0
        %v1587 = vadd.f32 %v1546, %v1586
        %1588 = vmatmul.f32.gmra.mxu0 %v355
        %v1589 = vpop.f32.mrf.mxu0
        %v1590 = vadd.f32 %v1549, %v1589
        %1591 = vmatmul.f32.gmra.mxu0 %v371
        %v1592 = vpop.f32.mrf.mxu0
        %v1593 = vadd.f32 %v1552, %v1592
        %1594 = vmatmul.f32.gmra.mxu0 %v387
        %v1595 = vpop.f32.mrf.mxu0
        %v1596 = vadd.f32 %v1555, %v1595
        %1597 = vdwg.mxu0
        %1598 = vmatpush.msra.mxu0 %v716
        %1599 = vmatpush.msra.mxu0 %v712
        %1600 = vmatpush.msra.mxu0 %v708
        %1601 = vmatpush.msra.mxu0 %v704
        %1602 = vmatpush.msra.mxu0 %v700
        %1603 = vmatpush.msra.mxu0 %v696
        %1604 = vmatpush.msra.mxu0 %v692
        %1605 = vmatpush.msra.mxu0 %v688
        %1606 = vmatpush.msra.mxu0 %v684
        %1607 = vmatpush.msra.mxu0 %v680
        %1608 = vmatpush.msra.mxu0 %v676
        %1609 = vmatpush.msra.mxu0 %v672
        %1610 = vmatpush.msra.mxu0 %v668
        %1611 = vmatpush.msra.mxu0 %v664
        %1612 = vmatpush.msra.mxu0 %v660
        %1613 = vmatpush.msra.mxu0 %v656
        %1614 = vmatmul.f32.gmra.mxu0 %v276
        %v1615 = vpop.f32.mrf.mxu0
        %v1616 = vadd.f32 %v1575, %v1615
        %1617 = vmatmul.f32.gmra.mxu0 %v292
        %v1618 = vpop.f32.mrf.mxu0
        %v1619 = vadd.f32 %v1578, %v1618
        %1620 = vmatmul.f32.gmra.mxu0 %v308
        %v1621 = vpop.f32.mrf.mxu0
        %v1622 = vadd.f32 %v1581, %v1621
        %1623 = vmatmul.f32.gmra.mxu0 %v324
        %v1624 = vpop.f32.mrf.mxu0
        %v1625 = vadd.f32 %v1584, %v1624
        %1626 = vmatmul.f32.gmra.mxu0 %v340
        %v1627 = vpop.f32.mrf.mxu0
        %v1628 = vadd.f32 %v1587, %v1627
        %1629 = vmatmul.f32.gmra.mxu0 %v356
        %v1630 = vpop.f32.mrf.mxu0
        %v1631 = vadd.f32 %v1590, %v1630
        %1632 = vmatmul.f32.gmra.mxu0 %v372
        %v1633 = vpop.f32.mrf.mxu0
        %v1634 = vadd.f32 %v1593, %v1633
        %1635 = vmatmul.f32.gmra.mxu0 %v388
        %v1636 = vpop.f32.mrf.mxu0
        %v1637 = vadd.f32 %v1596, %v1636
        %1638 = vdwg.mxu0
        %1639 = vmatpush.msra.mxu0 %v780
        %1640 = vmatpush.msra.mxu0 %v776
        %1641 = vmatpush.msra.mxu0 %v772
        %1642 = vmatpush.msra.mxu0 %v768
        %1643 = vmatpush.msra.mxu0 %v764
        %1644 = vmatpush.msra.mxu0 %v760
        %1645 = vmatpush.msra.mxu0 %v756
        %1646 = vmatpush.msra.mxu0 %v752
        %1647 = vmatpush.msra.mxu0 %v748
        %1648 = vmatpush.msra.mxu0 %v744
        %1649 = vmatpush.msra.mxu0 %v740
        %1650 = vmatpush.msra.mxu0 %v736
        %1651 = vmatpush.msra.mxu0 %v732
        %1652 = vmatpush.msra.mxu0 %v728
        %1653 = vmatpush.msra.mxu0 %v724
        %1654 = vmatpush.msra.mxu0 %v720
        %1655 = vmatmul.f32.gmra.mxu0 %v277
        %v1656 = vpop.f32.mrf.mxu0
        %v1657 = vadd.f32 %v1616, %v1656
        %1658 = vmatmul.f32.gmra.mxu0 %v293
        %v1659 = vpop.f32.mrf.mxu0
        %v1660 = vadd.f32 %v1619, %v1659
        %1661 = vmatmul.f32.gmra.mxu0 %v309
        %v1662 = vpop.f32.mrf.mxu0
        %v1663 = vadd.f32 %v1622, %v1662
        %1664 = vmatmul.f32.gmra.mxu0 %v325
        %v1665 = vpop.f32.mrf.mxu0
        %v1666 = vadd.f32 %v1625, %v1665
        %1667 = vmatmul.f32.gmra.mxu0 %v341
        %v1668 = vpop.f32.mrf.mxu0
        %v1669 = vadd.f32 %v1628, %v1668
        %1670 = vmatmul.f32.gmra.mxu0 %v357
        %v1671 = vpop.f32.mrf.mxu0
        %v1672 = vadd.f32 %v1631, %v1671
        %1673 = vmatmul.f32.gmra.mxu0 %v373
        %v1674 = vpop.f32.mrf.mxu0
        %v1675 = vadd.f32 %v1634, %v1674
        %1676 = vmatmul.f32.gmra.mxu0 %v389
        %v1677 = vpop.f32.mrf.mxu0
        %v1678 = vadd.f32 %v1637, %v1677
        %1679 = vdwg.mxu0
        %1680 = vmatpush.msra.mxu0 %v844
        %1681 = vmatpush.msra.mxu0 %v840
        %1682 = vmatpush.msra.mxu0 %v836
        %1683 = vmatpush.msra.mxu0 %v832
        %1684 = vmatpush.msra.mxu0 %v828
        %1685 = vmatpush.msra.mxu0 %v824
        %1686 = vmatpush.msra.mxu0 %v820
        %1687 = vmatpush.msra.mxu0 %v816
        %1688 = vmatpush.msra.mxu0 %v812
        %1689 = vmatpush.msra.mxu0 %v808
        %1690 = vmatpush.msra.mxu0 %v804
        %1691 = vmatpush.msra.mxu0 %v800
        %1692 = vmatpush.msra.mxu0 %v796
        %1693 = vmatpush.msra.mxu0 %v792
        %1694 = vmatpush.msra.mxu0 %v788
        %1695 = vmatpush.msra.mxu0 %v784
        %1696 = vmatmul.f32.gmra.mxu0 %v278
        %v1697 = vpop.f32.mrf.mxu0
        %v1698 = vadd.f32 %v1657, %v1697
        %1699 = vmatmul.f32.gmra.mxu0 %v294
        %v1700 = vpop.f32.mrf.mxu0
        %v1701 = vadd.f32 %v1660, %v1700
        %1702 = vmatmul.f32.gmra.mxu0 %v310
        %v1703 = vpop.f32.mrf.mxu0
        %v1704 = vadd.f32 %v1663, %v1703
        %1705 = vmatmul.f32.gmra.mxu0 %v326
        %v1706 = vpop.f32.mrf.mxu0
        %v1707 = vadd.f32 %v1666, %v1706
        %1708 = vmatmul.f32.gmra.mxu0 %v342
        %v1709 = vpop.f32.mrf.mxu0
        %v1710 = vadd.f32 %v1669, %v1709
        %1711 = vmatmul.f32.gmra.mxu0 %v358
        %v1712 = vpop.f32.mrf.mxu0
        %v1713 = vadd.f32 %v1672, %v1712
        %1714 = vmatmul.f32.gmra.mxu0 %v374
        %v1715 = vpop.f32.mrf.mxu0
        %v1716 = vadd.f32 %v1675, %v1715
        %1717 = vmatmul.f32.gmra.mxu0 %v390
        %v1718 = vpop.f32.mrf.mxu0
        %v1719 = vadd.f32 %v1678, %v1718
        %1720 = vdwg.mxu0
        %1721 = vmatpush.msra.mxu0 %v908
        %1722 = vmatpush.msra.mxu0 %v904
        %1723 = vmatpush.msra.mxu0 %v900
        %1724 = vmatpush.msra.mxu0 %v896
        %1725 = vmatpush.msra.mxu0 %v892
        %1726 = vmatpush.msra.mxu0 %v888
        %1727 = vmatpush.msra.mxu0 %v884
        %1728 = vmatpush.msra.mxu0 %v880
        %1729 = vmatpush.msra.mxu0 %v876
        %1730 = vmatpush.msra.mxu0 %v872
        %1731 = vmatpush.msra.mxu0 %v868
        %1732 = vmatpush.msra.mxu0 %v864
        %1733 = vmatpush.msra.mxu0 %v860
        %1734 = vmatpush.msra.mxu0 %v856
        %1735 = vmatpush.msra.mxu0 %v852
        %1736 = vmatpush.msra.mxu0 %v848
        %1737 = vmatmul.f32.gmra.mxu0 %v279
        %v1738 = vpop.f32.mrf.mxu0
        %v1739 = vadd.f32 %v1698, %v1738
        %1740 = vmatmul.f32.gmra.mxu0 %v295
        %v1741 = vpop.f32.mrf.mxu0
        %v1742 = vadd.f32 %v1701, %v1741
        %1743 = vmatmul.f32.gmra.mxu0 %v311
        %v1744 = vpop.f32.mrf.mxu0
        %v1745 = vadd.f32 %v1704, %v1744
        %1746 = vmatmul.f32.gmra.mxu0 %v327
        %v1747 = vpop.f32.mrf.mxu0
        %v1748 = vadd.f32 %v1707, %v1747
        %1749 = vmatmul.f32.gmra.mxu0 %v343
        %v1750 = vpop.f32.mrf.mxu0
        %v1751 = vadd.f32 %v1710, %v1750
        %1752 = vmatmul.f32.gmra.mxu0 %v359
        %v1753 = vpop.f32.mrf.mxu0
        %v1754 = vadd.f32 %v1713, %v1753
        %1755 = vmatmul.f32.gmra.mxu0 %v375
        %v1756 = vpop.f32.mrf.mxu0
        %v1757 = vadd.f32 %v1716, %v1756
        %1758 = vmatmul.f32.gmra.mxu0 %v391
        %v1759 = vpop.f32.mrf.mxu0
        %v1760 = vadd.f32 %v1719, %v1759
        %1761 = vdwg.mxu0
        %1762 = vmatpush.msra.mxu0 %v972
        %1763 = vmatpush.msra.mxu0 %v968
        %1764 = vmatpush.msra.mxu0 %v964
        %1765 = vmatpush.msra.mxu0 %v960
        %1766 = vmatpush.msra.mxu0 %v956
        %1767 = vmatpush.msra.mxu0 %v952
        %1768 = vmatpush.msra.mxu0 %v948
        %1769 = vmatpush.msra.mxu0 %v944
        %1770 = vmatpush.msra.mxu0 %v940
        %1771 = vmatpush.msra.mxu0 %v936
        %1772 = vmatpush.msra.mxu0 %v932
        %1773 = vmatpush.msra.mxu0 %v928
        %1774 = vmatpush.msra.mxu0 %v924
        %1775 = vmatpush.msra.mxu0 %v920
        %1776 = vmatpush.msra.mxu0 %v916
        %1777 = vmatpush.msra.mxu0 %v912
        %1778 = vmatmul.f32.gmra.mxu0 %v280
        %v1779 = vpop.f32.mrf.mxu0
        %v1780 = vadd.f32 %v1739, %v1779
        %1781 = vmatmul.f32.gmra.mxu0 %v296
        %v1782 = vpop.f32.mrf.mxu0
        %v1783 = vadd.f32 %v1742, %v1782
        %1784 = vmatmul.f32.gmra.mxu0 %v312
        %v1785 = vpop.f32.mrf.mxu0
        %v1786 = vadd.f32 %v1745, %v1785
        %1787 = vmatmul.f32.gmra.mxu0 %v328
        %v1788 = vpop.f32.mrf.mxu0
        %v1789 = vadd.f32 %v1748, %v1788
        %1790 = vmatmul.f32.gmra.mxu0 %v344
        %v1791 = vpop.f32.mrf.mxu0
        %v1792 = vadd.f32 %v1751, %v1791
        %1793 = vmatmul.f32.gmra.mxu0 %v360
        %v1794 = vpop.f32.mrf.mxu0
        %v1795 = vadd.f32 %v1754, %v1794
        %1796 = vmatmul.f32.gmra.mxu0 %v376
        %v1797 = vpop.f32.mrf.mxu0
        %v1798 = vadd.f32 %v1757, %v1797
        %1799 = vmatmul.f32.gmra.mxu0 %v392
        %v1800 = vpop.f32.mrf.mxu0
        %v1801 = vadd.f32 %v1760, %v1800
        %1802 = vdwg.mxu0
        %1803 = vmatpush.msra.mxu0 %v1036
        %1804 = vmatpush.msra.mxu0 %v1032
        %1805 = vmatpush.msra.mxu0 %v1028
        %1806 = vmatpush.msra.mxu0 %v1024
        %1807 = vmatpush.msra.mxu0 %v1020
        %1808 = vmatpush.msra.mxu0 %v1016
        %1809 = vmatpush.msra.mxu0 %v1012
        %1810 = vmatpush.msra.mxu0 %v1008
        %1811 = vmatpush.msra.mxu0 %v1004
        %1812 = vmatpush.msra.mxu0 %v1000
        %1813 = vmatpush.msra.mxu0 %v996
        %1814 = vmatpush.msra.mxu0 %v992
        %1815 = vmatpush.msra.mxu0 %v988
        %1816 = vmatpush.msra.mxu0 %v984
        %1817 = vmatpush.msra.mxu0 %v980
        %1818 = vmatpush.msra.mxu0 %v976
        %1819 = vmatmul.f32.gmra.mxu0 %v281
        %v1820 = vpop.f32.mrf.mxu0
        %v1821 = vadd.f32 %v1780, %v1820
        %1822 = vmatmul.f32.gmra.mxu0 %v297
        %v1823 = vpop.f32.mrf.mxu0
        %v1824 = vadd.f32 %v1783, %v1823
        %1825 = vmatmul.f32.gmra.mxu0 %v313
        %v1826 = vpop.f32.mrf.mxu0
        %v1827 = vadd.f32 %v1786, %v1826
        %1828 = vmatmul.f32.gmra.mxu0 %v329
        %v1829 = vpop.f32.mrf.mxu0
        %v1830 = vadd.f32 %v1789, %v1829
        %1831 = vmatmul.f32.gmra.mxu0 %v345
        %v1832 = vpop.f32.mrf.mxu0
        %v1833 = vadd.f32 %v1792, %v1832
        %1834 = vmatmul.f32.gmra.mxu0 %v361
        %v1835 = vpop.f32.mrf.mxu0
        %v1836 = vadd.f32 %v1795, %v1835
        %1837 = vmatmul.f32.gmra.mxu0 %v377
        %v1838 = vpop.f32.mrf.mxu0
        %v1839 = vadd.f32 %v1798, %v1838
        %1840 = vmatmul.f32.gmra.mxu0 %v393
        %v1841 = vpop.f32.mrf.mxu0
        %v1842 = vadd.f32 %v1801, %v1841
        %1843 = vdwg.mxu0
        %1844 = vmatpush.msra.mxu0 %v1100
        %1845 = vmatpush.msra.mxu0 %v1096
        %1846 = vmatpush.msra.mxu0 %v1092
        %1847 = vmatpush.msra.mxu0 %v1088
        %1848 = vmatpush.msra.mxu0 %v1084
        %1849 = vmatpush.msra.mxu0 %v1080
        %1850 = vmatpush.msra.mxu0 %v1076
        %1851 = vmatpush.msra.mxu0 %v1072
        %1852 = vmatpush.msra.mxu0 %v1068
        %1853 = vmatpush.msra.mxu0 %v1064
        %1854 = vmatpush.msra.mxu0 %v1060
        %1855 = vmatpush.msra.mxu0 %v1056
        %1856 = vmatpush.msra.mxu0 %v1052
        %1857 = vmatpush.msra.mxu0 %v1048
        %1858 = vmatpush.msra.mxu0 %v1044
        %1859 = vmatpush.msra.mxu0 %v1040
        %1860 = vmatmul.f32.gmra.mxu0 %v282
        %v1861 = vpop.f32.mrf.mxu0
        %v1862 = vadd.f32 %v1821, %v1861
        %1863 = vmatmul.f32.gmra.mxu0 %v298
        %v1864 = vpop.f32.mrf.mxu0
        %v1865 = vadd.f32 %v1824, %v1864
        %1866 = vmatmul.f32.gmra.mxu0 %v314
        %v1867 = vpop.f32.mrf.mxu0
        %v1868 = vadd.f32 %v1827, %v1867
        %1869 = vmatmul.f32.gmra.mxu0 %v330
        %v1870 = vpop.f32.mrf.mxu0
        %v1871 = vadd.f32 %v1830, %v1870
        %1872 = vmatmul.f32.gmra.mxu0 %v346
        %v1873 = vpop.f32.mrf.mxu0
        %v1874 = vadd.f32 %v1833, %v1873
        %1875 = vmatmul.f32.gmra.mxu0 %v362
        %v1876 = vpop.f32.mrf.mxu0
        %v1877 = vadd.f32 %v1836, %v1876
        %1878 = vmatmul.f32.gmra.mxu0 %v378
        %v1879 = vpop.f32.mrf.mxu0
        %v1880 = vadd.f32 %v1839, %v1879
        %1881 = vmatmul.f32.gmra.mxu0 %v394
        %v1882 = vpop.f32.mrf.mxu0
        %v1883 = vadd.f32 %v1842, %v1882
        %1884 = vdwg.mxu0
        %1885 = vmatpush.msra.mxu0 %v1164
        %1886 = vmatpush.msra.mxu0 %v1160
        %1887 = vmatpush.msra.mxu0 %v1156
        %1888 = vmatpush.msra.mxu0 %v1152
        %1889 = vmatpush.msra.mxu0 %v1148
        %1890 = vmatpush.msra.mxu0 %v1144
        %1891 = vmatpush.msra.mxu0 %v1140
        %1892 = vmatpush.msra.mxu0 %v1136
        %1893 = vmatpush.msra.mxu0 %v1132
        %1894 = vmatpush.msra.mxu0 %v1128
        %1895 = vmatpush.msra.mxu0 %v1124
        %1896 = vmatpush.msra.mxu0 %v1120
        %1897 = vmatpush.msra.mxu0 %v1116
        %1898 = vmatpush.msra.mxu0 %v1112
        %1899 = vmatpush.msra.mxu0 %v1108
        %1900 = vmatpush.msra.mxu0 %v1104
        %1901 = vmatmul.f32.gmra.mxu0 %v283
        %v1902 = vpop.f32.mrf.mxu0
        %v1903 = vadd.f32 %v1862, %v1902
        %1904 = vmatmul.f32.gmra.mxu0 %v299
        %v1905 = vpop.f32.mrf.mxu0
        %v1906 = vadd.f32 %v1865, %v1905
        %1907 = vmatmul.f32.gmra.mxu0 %v315
        %v1908 = vpop.f32.mrf.mxu0
        %v1909 = vadd.f32 %v1868, %v1908
        %1910 = vmatmul.f32.gmra.mxu0 %v331
        %v1911 = vpop.f32.mrf.mxu0
        %v1912 = vadd.f32 %v1871, %v1911
        %1913 = vmatmul.f32.gmra.mxu0 %v347
        %v1914 = vpop.f32.mrf.mxu0
        %v1915 = vadd.f32 %v1874, %v1914
        %1916 = vmatmul.f32.gmra.mxu0 %v363
        %v1917 = vpop.f32.mrf.mxu0
        %v1918 = vadd.f32 %v1877, %v1917
        %1919 = vmatmul.f32.gmra.mxu0 %v379
        %v1920 = vpop.f32.mrf.mxu0
        %v1921 = vadd.f32 %v1880, %v1920
        %1922 = vmatmul.f32.gmra.mxu0 %v395
        %v1923 = vpop.f32.mrf.mxu0
        %v1924 = vadd.f32 %v1883, %v1923
        %1925 = vdwg.mxu0
        %1926 = vmatpush.msra.mxu0 %v1228
        %1927 = vmatpush.msra.mxu0 %v1224
        %1928 = vmatpush.msra.mxu0 %v1220
        %1929 = vmatpush.msra.mxu0 %v1216
        %1930 = vmatpush.msra.mxu0 %v1212
        %1931 = vmatpush.msra.mxu0 %v1208
        %1932 = vmatpush.msra.mxu0 %v1204
        %1933 = vmatpush.msra.mxu0 %v1200
        %1934 = vmatpush.msra.mxu0 %v1196
        %1935 = vmatpush.msra.mxu0 %v1192
        %1936 = vmatpush.msra.mxu0 %v1188
        %1937 = vmatpush.msra.mxu0 %v1184
        %1938 = vmatpush.msra.mxu0 %v1180
        %1939 = vmatpush.msra.mxu0 %v1176
        %1940 = vmatpush.msra.mxu0 %v1172
        %1941 = vmatpush.msra.mxu0 %v1168
        %1942 = vmatmul.f32.gmra.mxu0 %v284
        %v1943 = vpop.f32.mrf.mxu0
        %v1944 = vadd.f32 %v1903, %v1943
        %1945 = vmatmul.f32.gmra.mxu0 %v300
        %v1946 = vpop.f32.mrf.mxu0
        %v1947 = vadd.f32 %v1906, %v1946
        %1948 = vmatmul.f32.gmra.mxu0 %v316
        %v1949 = vpop.f32.mrf.mxu0
        %v1950 = vadd.f32 %v1909, %v1949
        %1951 = vmatmul.f32.gmra.mxu0 %v332
        %v1952 = vpop.f32.mrf.mxu0
        %v1953 = vadd.f32 %v1912, %v1952
        %1954 = vmatmul.f32.gmra.mxu0 %v348
        %v1955 = vpop.f32.mrf.mxu0
        %v1956 = vadd.f32 %v1915, %v1955
        %1957 = vmatmul.f32.gmra.mxu0 %v364
        %v1958 = vpop.f32.mrf.mxu0
        %v1959 = vadd.f32 %v1918, %v1958
        %1960 = vmatmul.f32.gmra.mxu0 %v380
        %v1961 = vpop.f32.mrf.mxu0
        %v1962 = vadd.f32 %v1921, %v1961
        %1963 = vmatmul.f32.gmra.mxu0 %v396
        %v1964 = vpop.f32.mrf.mxu0
        %v1965 = vadd.f32 %v1924, %v1964
        %1966 = vdwg.mxu0
        %1967 = vmatpush.msra.mxu0 %v1292
        %1968 = vmatpush.msra.mxu0 %v1288
        %1969 = vmatpush.msra.mxu0 %v1284
        %1970 = vmatpush.msra.mxu0 %v1280
        %1971 = vmatpush.msra.mxu0 %v1276
        %1972 = vmatpush.msra.mxu0 %v1272
        %1973 = vmatpush.msra.mxu0 %v1268
        %1974 = vmatpush.msra.mxu0 %v1264
        %1975 = vmatpush.msra.mxu0 %v1260
        %1976 = vmatpush.msra.mxu0 %v1256
        %1977 = vmatpush.msra.mxu0 %v1252
        %1978 = vmatpush.msra.mxu0 %v1248
        %1979 = vmatpush.msra.mxu0 %v1244
        %1980 = vmatpush.msra.mxu0 %v1240
        %1981 = vmatpush.msra.mxu0 %v1236
        %1982 = vmatpush.msra.mxu0 %v1232
        %1983 = vmatmul.f32.gmra.mxu0 %v285
        %v1984 = vpop.f32.mrf.mxu0
        %v1985 = vadd.f32 %v1944, %v1984
        %1986 = vmatmul.f32.gmra.mxu0 %v301
        %v1987 = vpop.f32.mrf.mxu0
        %v1988 = vadd.f32 %v1947, %v1987
        %1989 = vmatmul.f32.gmra.mxu0 %v317
        %v1990 = vpop.f32.mrf.mxu0
        %v1991 = vadd.f32 %v1950, %v1990
        %1992 = vmatmul.f32.gmra.mxu0 %v333
        %v1993 = vpop.f32.mrf.mxu0
        %v1994 = vadd.f32 %v1953, %v1993
        %1995 = vmatmul.f32.gmra.mxu0 %v349
        %v1996 = vpop.f32.mrf.mxu0
        %v1997 = vadd.f32 %v1956, %v1996
        %1998 = vmatmul.f32.gmra.mxu0 %v365
        %v1999 = vpop.f32.mrf.mxu0
        %v2000 = vadd.f32 %v1959, %v1999
        %2001 = vmatmul.f32.gmra.mxu0 %v381
        %v2002 = vpop.f32.mrf.mxu0
        %v2003 = vadd.f32 %v1962, %v2002
        %2004 = vmatmul.f32.gmra.mxu0 %v397
        %v2005 = vpop.f32.mrf.mxu0
        %v2006 = vadd.f32 %v1965, %v2005
        %2007 = vdwg.mxu0
        %2008 = vmatpush.msra.mxu0 %v1356
        %2009 = vmatpush.msra.mxu0 %v1352
        %2010 = vmatpush.msra.mxu0 %v1348
        %2011 = vmatpush.msra.mxu0 %v1344
        %2012 = vmatpush.msra.mxu0 %v1340
        %2013 = vmatpush.msra.mxu0 %v1336
        %2014 = vmatpush.msra.mxu0 %v1332
        %2015 = vmatpush.msra.mxu0 %v1328
        %2016 = vmatpush.msra.mxu0 %v1324
        %2017 = vmatpush.msra.mxu0 %v1320
        %2018 = vmatpush.msra.mxu0 %v1316
        %2019 = vmatpush.msra.mxu0 %v1312
        %2020 = vmatpush.msra.mxu0 %v1308
        %2021 = vmatpush.msra.mxu0 %v1304
        %2022 = vmatpush.msra.mxu0 %v1300
        %2023 = vmatpush.msra.mxu0 %v1296
        %2024 = vmatmul.f32.gmra.mxu0 %v286
        %v2025 = vpop.f32.mrf.mxu0
        %v2026 = vadd.f32 %v1985, %v2025
        %2027 = vmatmul.f32.gmra.mxu0 %v302
        %v2028 = vpop.f32.mrf.mxu0
        %v2029 = vadd.f32 %v1988, %v2028
        %2030 = vmatmul.f32.gmra.mxu0 %v318
        %v2031 = vpop.f32.mrf.mxu0
        %v2032 = vadd.f32 %v1991, %v2031
        %2033 = vmatmul.f32.gmra.mxu0 %v334
        %v2034 = vpop.f32.mrf.mxu0
        %v2035 = vadd.f32 %v1994, %v2034
        %2036 = vmatmul.f32.gmra.mxu0 %v350
        %v2037 = vpop.f32.mrf.mxu0
        %v2038 = vadd.f32 %v1997, %v2037
        %2039 = vmatmul.f32.gmra.mxu0 %v366
        %v2040 = vpop.f32.mrf.mxu0
        %v2041 = vadd.f32 %v2000, %v2040
        %2042 = vmatmul.f32.gmra.mxu0 %v382
        %v2043 = vpop.f32.mrf.mxu0
        %v2044 = vadd.f32 %v2003, %v2043
        %2045 = vmatmul.f32.gmra.mxu0 %v398
        %v2046 = vpop.f32.mrf.mxu0
        %v2047 = vadd.f32 %v2006, %v2046
        %2048 = vdwg.mxu0
        %2049 = vmatpush.msra.mxu0 %v1420
        %2050 = vmatpush.msra.mxu0 %v1416
        %2051 = vmatpush.msra.mxu0 %v1412
        %2052 = vmatpush.msra.mxu0 %v1408
        %2053 = vmatpush.msra.mxu0 %v1404
        %2054 = vmatpush.msra.mxu0 %v1400
        %2055 = vmatpush.msra.mxu0 %v1396
        %2056 = vmatpush.msra.mxu0 %v1392
        %2057 = vmatpush.msra.mxu0 %v1388
        %2058 = vmatpush.msra.mxu0 %v1384
        %2059 = vmatpush.msra.mxu0 %v1380
        %2060 = vmatpush.msra.mxu0 %v1376
        %2061 = vmatpush.msra.mxu0 %v1372
        %2062 = vmatpush.msra.mxu0 %v1368
        %2063 = vmatpush.msra.mxu0 %v1364
        %2064 = vmatpush.msra.mxu0 %v1360
        %2065 = vmatmul.f32.gmra.mxu0 %v287
        %v2066 = vpop.f32.mrf.mxu0
        %v2067 = vadd.f32 %v2026, %v2066
        %2068 = vmatmul.f32.gmra.mxu0 %v303
        %v2069 = vpop.f32.mrf.mxu0
        %v2070 = vadd.f32 %v2029, %v2069
        %2071 = vmatmul.f32.gmra.mxu0 %v319
        %v2072 = vpop.f32.mrf.mxu0
        %v2073 = vadd.f32 %v2032, %v2072
        %2074 = vmatmul.f32.gmra.mxu0 %v335
        %v2075 = vpop.f32.mrf.mxu0
        %v2076 = vadd.f32 %v2035, %v2075
        %2077 = vmatmul.f32.gmra.mxu0 %v351
        %v2078 = vpop.f32.mrf.mxu0
        %v2079 = vadd.f32 %v2038, %v2078
        %2080 = vmatmul.f32.gmra.mxu0 %v367
        %v2081 = vpop.f32.mrf.mxu0
        %v2082 = vadd.f32 %v2041, %v2081
        %2083 = vmatmul.f32.gmra.mxu0 %v383
        %v2084 = vpop.f32.mrf.mxu0
        %v2085 = vadd.f32 %v2044, %v2084
        %2086 = vmatmul.f32.gmra.mxu0 %v399
        %v2087 = vpop.f32.mrf.mxu0
        %v2088 = vadd.f32 %v2047, %v2087
        %2089 = vdwg.mxu0
        %2090 = vmatpush.msra.mxu0 %v461
        %2091 = vmatpush.msra.mxu0 %v457
        %2092 = vmatpush.msra.mxu0 %v453
        %2093 = vmatpush.msra.mxu0 %v449
        %2094 = vmatpush.msra.mxu0 %v445
        %2095 = vmatpush.msra.mxu0 %v441
        %2096 = vmatpush.msra.mxu0 %v437
        %2097 = vmatpush.msra.mxu0 %v433
        %2098 = vmatpush.msra.mxu0 %v429
        %2099 = vmatpush.msra.mxu0 %v425
        %2100 = vmatpush.msra.mxu0 %v421
        %2101 = vmatpush.msra.mxu0 %v417
        %2102 = vmatpush.msra.mxu0 %v413
        %2103 = vmatpush.msra.mxu0 %v409
        %2104 = vmatpush.msra.mxu0 %v405
        %2105 = vmatpush.msra.mxu0 %v401
        %2106 = vmatmul.f32.gmra.mxu0 %v272
        %v2107 = vpop.f32.mrf.mxu0
        %v2108 = vadd.f32 %v1427, %v2107
        %2109 = vmatmul.f32.gmra.mxu0 %v288
        %v2110 = vpop.f32.mrf.mxu0
        %v2111 = vadd.f32 %v1427, %v2110
        %2112 = vmatmul.f32.gmra.mxu0 %v304
        %v2113 = vpop.f32.mrf.mxu0
        %v2114 = vadd.f32 %v1427, %v2113
        %2115 = vmatmul.f32.gmra.mxu0 %v320
        %v2116 = vpop.f32.mrf.mxu0
        %v2117 = vadd.f32 %v1427, %v2116
        %2118 = vmatmul.f32.gmra.mxu0 %v336
        %v2119 = vpop.f32.mrf.mxu0
        %v2120 = vadd.f32 %v1427, %v2119
        %2121 = vmatmul.f32.gmra.mxu0 %v352
        %v2122 = vpop.f32.mrf.mxu0
        %v2123 = vadd.f32 %v1427, %v2122
        %2124 = vmatmul.f32.gmra.mxu0 %v368
        %v2125 = vpop.f32.mrf.mxu0
        %v2126 = vadd.f32 %v1427, %v2125
        %2127 = vmatmul.f32.gmra.mxu0 %v384
        %v2128 = vpop.f32.mrf.mxu0
        %v2129 = vadd.f32 %v1427, %v2128
        %2130 = vdwg.mxu0
        %2131 = vmatpush.msra.mxu0 %v525
        %2132 = vmatpush.msra.mxu0 %v521
        %2133 = vmatpush.msra.mxu0 %v517
        %2134 = vmatpush.msra.mxu0 %v513
        %2135 = vmatpush.msra.mxu0 %v509
        %2136 = vmatpush.msra.mxu0 %v505
        %2137 = vmatpush.msra.mxu0 %v501
        %2138 = vmatpush.msra.mxu0 %v497
        %2139 = vmatpush.msra.mxu0 %v493
        %2140 = vmatpush.msra.mxu0 %v489
        %2141 = vmatpush.msra.mxu0 %v485
        %2142 = vmatpush.msra.mxu0 %v481
        %2143 = vmatpush.msra.mxu0 %v477
        %2144 = vmatpush.msra.mxu0 %v473
        %2145 = vmatpush.msra.mxu0 %v469
        %2146 = vmatpush.msra.mxu0 %v465
        %2147 = vmatmul.f32.gmra.mxu0 %v273
        %v2148 = vpop.f32.mrf.mxu0
        %v2149 = vadd.f32 %v2108, %v2148
        %2150 = vmatmul.f32.gmra.mxu0 %v289
        %v2151 = vpop.f32.mrf.mxu0
        %v2152 = vadd.f32 %v2111, %v2151
        %2153 = vmatmul.f32.gmra.mxu0 %v305
        %v2154 = vpop.f32.mrf.mxu0
        %v2155 = vadd.f32 %v2114, %v2154
        %2156 = vmatmul.f32.gmra.mxu0 %v321
        %v2157 = vpop.f32.mrf.mxu0
        %v2158 = vadd.f32 %v2117, %v2157
        %2159 = vmatmul.f32.gmra.mxu0 %v337
        %v2160 = vpop.f32.mrf.mxu0
        %v2161 = vadd.f32 %v2120, %v2160
        %2162 = vmatmul.f32.gmra.mxu0 %v353
        %v2163 = vpop.f32.mrf.mxu0
        %v2164 = vadd.f32 %v2123, %v2163
        %2165 = vmatmul.f32.gmra.mxu0 %v369
        %v2166 = vpop.f32.mrf.mxu0
        %v2167 = vadd.f32 %v2126, %v2166
        %2168 = vmatmul.f32.gmra.mxu0 %v385
        %v2169 = vpop.f32.mrf.mxu0
        %v2170 = vadd.f32 %v2129, %v2169
        %2171 = vdwg.mxu0
        %2172 = vmatpush.msra.mxu0 %v589
        %2173 = vmatpush.msra.mxu0 %v585
        %2174 = vmatpush.msra.mxu0 %v581
        %2175 = vmatpush.msra.mxu0 %v577
        %2176 = vmatpush.msra.mxu0 %v573
        %2177 = vmatpush.msra.mxu0 %v569
        %2178 = vmatpush.msra.mxu0 %v565
        %2179 = vmatpush.msra.mxu0 %v561
        %2180 = vmatpush.msra.mxu0 %v557
        %2181 = vmatpush.msra.mxu0 %v553
        %2182 = vmatpush.msra.mxu0 %v549
        %2183 = vmatpush.msra.mxu0 %v545
        %2184 = vmatpush.msra.mxu0 %v541
        %2185 = vmatpush.msra.mxu0 %v537
        %2186 = vmatpush.msra.mxu0 %v533
        %2187 = vmatpush.msra.mxu0 %v529
        %2188 = vmatmul.f32.gmra.mxu0 %v274
        %v2189 = vpop.f32.mrf.mxu0
        %v2190 = vadd.f32 %v2149, %v2189
        %2191 = vmatmul.f32.gmra.mxu0 %v290
        %v2192 = vpop.f32.mrf.mxu0
        %v2193 = vadd.f32 %v2152, %v2192
        %2194 = vmatmul.f32.gmra.mxu0 %v306
        %v2195 = vpop.f32.mrf.mxu0
        %v2196 = vadd.f32 %v2155, %v2195
        %2197 = vmatmul.f32.gmra.mxu0 %v322
        %v2198 = vpop.f32.mrf.mxu0
        %v2199 = vadd.f32 %v2158, %v2198
        %2200 = vmatmul.f32.gmra.mxu0 %v338
        %v2201 = vpop.f32.mrf.mxu0
        %v2202 = vadd.f32 %v2161, %v2201
        %2203 = vmatmul.f32.gmra.mxu0 %v354
        %v2204 = vpop.f32.mrf.mxu0
        %v2205 = vadd.f32 %v2164, %v2204
        %2206 = vmatmul.f32.gmra.mxu0 %v370
        %v2207 = vpop.f32.mrf.mxu0
        %v2208 = vadd.f32 %v2167, %v2207
        %2209 = vmatmul.f32.gmra.mxu0 %v386
        %v2210 = vpop.f32.mrf.mxu0
        %v2211 = vadd.f32 %v2170, %v2210
        %2212 = vdwg.mxu0
        %2213 = vmatpush.msra.mxu0 %v653
        %2214 = vmatpush.msra.mxu0 %v649
        %2215 = vmatpush.msra.mxu0 %v645
        %2216 = vmatpush.msra.mxu0 %v641
        %2217 = vmatpush.msra.mxu0 %v637
        %2218 = vmatpush.msra.mxu0 %v633
        %2219 = vmatpush.msra.mxu0 %v629
        %2220 = vmatpush.msra.mxu0 %v625
        %2221 = vmatpush.msra.mxu0 %v621
        %2222 = vmatpush.msra.mxu0 %v617
        %2223 = vmatpush.msra.mxu0 %v613
        %2224 = vmatpush.msra.mxu0 %v609
        %2225 = vmatpush.msra.mxu0 %v605
        %2226 = vmatpush.msra.mxu0 %v601
        %2227 = vmatpush.msra.mxu0 %v597
        %2228 = vmatpush.msra.mxu0 %v593
        %2229 = vmatmul.f32.gmra.mxu0 %v275
        %v2230 = vpop.f32.mrf.mxu0
        %v2231 = vadd.f32 %v2190, %v2230
        %2232 = vmatmul.f32.gmra.mxu0 %v291
        %v2233 = vpop.f32.mrf.mxu0
        %v2234 = vadd.f32 %v2193, %v2233
        %2235 = vmatmul.f32.gmra.mxu0 %v307
        %v2236 = vpop.f32.mrf.mxu0
        %v2237 = vadd.f32 %v2196, %v2236
        %2238 = vmatmul.f32.gmra.mxu0 %v323
        %v2239 = vpop.f32.mrf.mxu0
        %v2240 = vadd.f32 %v2199, %v2239
        %2241 = vmatmul.f32.gmra.mxu0 %v339
        %v2242 = vpop.f32.mrf.mxu0
        %v2243 = vadd.f32 %v2202, %v2242
        %2244 = vmatmul.f32.gmra.mxu0 %v355
        %v2245 = vpop.f32.mrf.mxu0
        %v2246 = vadd.f32 %v2205, %v2245
        %2247 = vmatmul.f32.gmra.mxu0 %v371
        %v2248 = vpop.f32.mrf.mxu0
        %v2249 = vadd.f32 %v2208, %v2248
        %2250 = vmatmul.f32.gmra.mxu0 %v387
        %v2251 = vpop.f32.mrf.mxu0
        %v2252 = vadd.f32 %v2211, %v2251
        %2253 = vdwg.mxu0
        %2254 = vmatpush.msra.mxu0 %v717
        %2255 = vmatpush.msra.mxu0 %v713
        %2256 = vmatpush.msra.mxu0 %v709
        %2257 = vmatpush.msra.mxu0 %v705
        %2258 = vmatpush.msra.mxu0 %v701
        %2259 = vmatpush.msra.mxu0 %v697
        %2260 = vmatpush.msra.mxu0 %v693
        %2261 = vmatpush.msra.mxu0 %v689
        %2262 = vmatpush.msra.mxu0 %v685
        %2263 = vmatpush.msra.mxu0 %v681
        %2264 = vmatpush.msra.mxu0 %v677
        %2265 = vmatpush.msra.mxu0 %v673
        %2266 = vmatpush.msra.mxu0 %v669
        %2267 = vmatpush.msra.mxu0 %v665
        %2268 = vmatpush.msra.mxu0 %v661
        %2269 = vmatpush.msra.mxu0 %v657
        %2270 = vmatmul.f32.gmra.mxu0 %v276
        %v2271 = vpop.f32.mrf.mxu0
        %v2272 = vadd.f32 %v2231, %v2271
        %2273 = vmatmul.f32.gmra.mxu0 %v292
        %v2274 = vpop.f32.mrf.mxu0
        %v2275 = vadd.f32 %v2234, %v2274
        %2276 = vmatmul.f32.gmra.mxu0 %v308
        %v2277 = vpop.f32.mrf.mxu0
        %v2278 = vadd.f32 %v2237, %v2277
        %2279 = vmatmul.f32.gmra.mxu0 %v324
        %v2280 = vpop.f32.mrf.mxu0
        %v2281 = vadd.f32 %v2240, %v2280
        %2282 = vmatmul.f32.gmra.mxu0 %v340
        %v2283 = vpop.f32.mrf.mxu0
        %v2284 = vadd.f32 %v2243, %v2283
        %2285 = vmatmul.f32.gmra.mxu0 %v356
        %v2286 = vpop.f32.mrf.mxu0
        %v2287 = vadd.f32 %v2246, %v2286
        %2288 = vmatmul.f32.gmra.mxu0 %v372
        %v2289 = vpop.f32.mrf.mxu0
        %v2290 = vadd.f32 %v2249, %v2289
        %2291 = vmatmul.f32.gmra.mxu0 %v388
        %v2292 = vpop.f32.mrf.mxu0
        %v2293 = vadd.f32 %v2252, %v2292
        %2294 = vdwg.mxu0
        %2295 = vmatpush.msra.mxu0 %v781
        %2296 = vmatpush.msra.mxu0 %v777
        %2297 = vmatpush.msra.mxu0 %v773
        %2298 = vmatpush.msra.mxu0 %v769
        %2299 = vmatpush.msra.mxu0 %v765
        %2300 = vmatpush.msra.mxu0 %v761
        %2301 = vmatpush.msra.mxu0 %v757
        %2302 = vmatpush.msra.mxu0 %v753
        %2303 = vmatpush.msra.mxu0 %v749
        %2304 = vmatpush.msra.mxu0 %v745
        %2305 = vmatpush.msra.mxu0 %v741
        %2306 = vmatpush.msra.mxu0 %v737
        %2307 = vmatpush.msra.mxu0 %v733
        %2308 = vmatpush.msra.mxu0 %v729
        %2309 = vmatpush.msra.mxu0 %v725
        %2310 = vmatpush.msra.mxu0 %v721
        %2311 = vmatmul.f32.gmra.mxu0 %v277
        %v2312 = vpop.f32.mrf.mxu0
        %v2313 = vadd.f32 %v2272, %v2312
        %2314 = vmatmul.f32.gmra.mxu0 %v293
        %v2315 = vpop.f32.mrf.mxu0
        %v2316 = vadd.f32 %v2275, %v2315
        %2317 = vmatmul.f32.gmra.mxu0 %v309
        %v2318 = vpop.f32.mrf.mxu0
        %v2319 = vadd.f32 %v2278, %v2318
        %2320 = vmatmul.f32.gmra.mxu0 %v325
        %v2321 = vpop.f32.mrf.mxu0
        %v2322 = vadd.f32 %v2281, %v2321
        %2323 = vmatmul.f32.gmra.mxu0 %v341
        %v2324 = vpop.f32.mrf.mxu0
        %v2325 = vadd.f32 %v2284, %v2324
        %2326 = vmatmul.f32.gmra.mxu0 %v357
        %v2327 = vpop.f32.mrf.mxu0
        %v2328 = vadd.f32 %v2287, %v2327
        %2329 = vmatmul.f32.gmra.mxu0 %v373
        %v2330 = vpop.f32.mrf.mxu0
        %v2331 = vadd.f32 %v2290, %v2330
        %2332 = vmatmul.f32.gmra.mxu0 %v389
        %v2333 = vpop.f32.mrf.mxu0
        %v2334 = vadd.f32 %v2293, %v2333
        %2335 = vdwg.mxu0
        %2336 = vmatpush.msra.mxu0 %v845
        %2337 = vmatpush.msra.mxu0 %v841
        %2338 = vmatpush.msra.mxu0 %v837
        %2339 = vmatpush.msra.mxu0 %v833
        %2340 = vmatpush.msra.mxu0 %v829
        %2341 = vmatpush.msra.mxu0 %v825
        %2342 = vmatpush.msra.mxu0 %v821
        %2343 = vmatpush.msra.mxu0 %v817
        %2344 = vmatpush.msra.mxu0 %v813
        %2345 = vmatpush.msra.mxu0 %v809
        %2346 = vmatpush.msra.mxu0 %v805
        %2347 = vmatpush.msra.mxu0 %v801
        %2348 = vmatpush.msra.mxu0 %v797
        %2349 = vmatpush.msra.mxu0 %v793
        %2350 = vmatpush.msra.mxu0 %v789
        %2351 = vmatpush.msra.mxu0 %v785
        %2352 = vmatmul.f32.gmra.mxu0 %v278
        %v2353 = vpop.f32.mrf.mxu0
        %v2354 = vadd.f32 %v2313, %v2353
        %2355 = vmatmul.f32.gmra.mxu0 %v294
        %v2356 = vpop.f32.mrf.mxu0
        %v2357 = vadd.f32 %v2316, %v2356
        %2358 = vmatmul.f32.gmra.mxu0 %v310
        %v2359 = vpop.f32.mrf.mxu0
        %v2360 = vadd.f32 %v2319, %v2359
        %2361 = vmatmul.f32.gmra.mxu0 %v326
        %v2362 = vpop.f32.mrf.mxu0
        %v2363 = vadd.f32 %v2322, %v2362
        %2364 = vmatmul.f32.gmra.mxu0 %v342
        %v2365 = vpop.f32.mrf.mxu0
        %v2366 = vadd.f32 %v2325, %v2365
        %2367 = vmatmul.f32.gmra.mxu0 %v358
        %v2368 = vpop.f32.mrf.mxu0
        %v2369 = vadd.f32 %v2328, %v2368
        %2370 = vmatmul.f32.gmra.mxu0 %v374
        %v2371 = vpop.f32.mrf.mxu0
        %v2372 = vadd.f32 %v2331, %v2371
        %2373 = vmatmul.f32.gmra.mxu0 %v390
        %v2374 = vpop.f32.mrf.mxu0
        %v2375 = vadd.f32 %v2334, %v2374
        %2376 = vdwg.mxu0
        %2377 = vmatpush.msra.mxu0 %v909
        %2378 = vmatpush.msra.mxu0 %v905
        %2379 = vmatpush.msra.mxu0 %v901
        %2380 = vmatpush.msra.mxu0 %v897
        %2381 = vmatpush.msra.mxu0 %v893
        %2382 = vmatpush.msra.mxu0 %v889
        %2383 = vmatpush.msra.mxu0 %v885
        %2384 = vmatpush.msra.mxu0 %v881
        %2385 = vmatpush.msra.mxu0 %v877
        %2386 = vmatpush.msra.mxu0 %v873
        %2387 = vmatpush.msra.mxu0 %v869
        %2388 = vmatpush.msra.mxu0 %v865
        %2389 = vmatpush.msra.mxu0 %v861
        %2390 = vmatpush.msra.mxu0 %v857
        %2391 = vmatpush.msra.mxu0 %v853
        %2392 = vmatpush.msra.mxu0 %v849
        %2393 = vmatmul.f32.gmra.mxu0 %v279
        %v2394 = vpop.f32.mrf.mxu0
        %v2395 = vadd.f32 %v2354, %v2394
        %2396 = vmatmul.f32.gmra.mxu0 %v295
        %v2397 = vpop.f32.mrf.mxu0
        %v2398 = vadd.f32 %v2357, %v2397
        %2399 = vmatmul.f32.gmra.mxu0 %v311
        %v2400 = vpop.f32.mrf.mxu0
        %v2401 = vadd.f32 %v2360, %v2400
        %2402 = vmatmul.f32.gmra.mxu0 %v327
        %v2403 = vpop.f32.mrf.mxu0
        %v2404 = vadd.f32 %v2363, %v2403
        %2405 = vmatmul.f32.gmra.mxu0 %v343
        %v2406 = vpop.f32.mrf.mxu0
        %v2407 = vadd.f32 %v2366, %v2406
        %2408 = vmatmul.f32.gmra.mxu0 %v359
        %v2409 = vpop.f32.mrf.mxu0
        %v2410 = vadd.f32 %v2369, %v2409
        %2411 = vmatmul.f32.gmra.mxu0 %v375
        %v2412 = vpop.f32.mrf.mxu0
        %v2413 = vadd.f32 %v2372, %v2412
        %2414 = vmatmul.f32.gmra.mxu0 %v391
        %v2415 = vpop.f32.mrf.mxu0
        %v2416 = vadd.f32 %v2375, %v2415
        %2417 = vdwg.mxu0
        %2418 = vmatpush.msra.mxu0 %v973
        %2419 = vmatpush.msra.mxu0 %v969
        %2420 = vmatpush.msra.mxu0 %v965
        %2421 = vmatpush.msra.mxu0 %v961
        %2422 = vmatpush.msra.mxu0 %v957
        %2423 = vmatpush.msra.mxu0 %v953
        %2424 = vmatpush.msra.mxu0 %v949
        %2425 = vmatpush.msra.mxu0 %v945
        %2426 = vmatpush.msra.mxu0 %v941
        %2427 = vmatpush.msra.mxu0 %v937
        %2428 = vmatpush.msra.mxu0 %v933
        %2429 = vmatpush.msra.mxu0 %v929
        %2430 = vmatpush.msra.mxu0 %v925
        %2431 = vmatpush.msra.mxu0 %v921
        %2432 = vmatpush.msra.mxu0 %v917
        %2433 = vmatpush.msra.mxu0 %v913
        %2434 = vmatmul.f32.gmra.mxu0 %v280
        %v2435 = vpop.f32.mrf.mxu0
        %v2436 = vadd.f32 %v2395, %v2435
        %2437 = vmatmul.f32.gmra.mxu0 %v296
        %v2438 = vpop.f32.mrf.mxu0
        %v2439 = vadd.f32 %v2398, %v2438
        %2440 = vmatmul.f32.gmra.mxu0 %v312
        %v2441 = vpop.f32.mrf.mxu0
        %v2442 = vadd.f32 %v2401, %v2441
        %2443 = vmatmul.f32.gmra.mxu0 %v328
        %v2444 = vpop.f32.mrf.mxu0
        %v2445 = vadd.f32 %v2404, %v2444
        %2446 = vmatmul.f32.gmra.mxu0 %v344
        %v2447 = vpop.f32.mrf.mxu0
        %v2448 = vadd.f32 %v2407, %v2447
        %2449 = vmatmul.f32.gmra.mxu0 %v360
        %v2450 = vpop.f32.mrf.mxu0
        %v2451 = vadd.f32 %v2410, %v2450
        %2452 = vmatmul.f32.gmra.mxu0 %v376
        %v2453 = vpop.f32.mrf.mxu0
        %v2454 = vadd.f32 %v2413, %v2453
        %2455 = vmatmul.f32.gmra.mxu0 %v392
        %v2456 = vpop.f32.mrf.mxu0
        %v2457 = vadd.f32 %v2416, %v2456
        %2458 = vdwg.mxu0
        %2459 = vmatpush.msra.mxu0 %v1037
        %2460 = vmatpush.msra.mxu0 %v1033
        %2461 = vmatpush.msra.mxu0 %v1029
        %2462 = vmatpush.msra.mxu0 %v1025
        %2463 = vmatpush.msra.mxu0 %v1021
        %2464 = vmatpush.msra.mxu0 %v1017
        %2465 = vmatpush.msra.mxu0 %v1013
        %2466 = vmatpush.msra.mxu0 %v1009
        %2467 = vmatpush.msra.mxu0 %v1005
        %2468 = vmatpush.msra.mxu0 %v1001
        %2469 = vmatpush.msra.mxu0 %v997
        %2470 = vmatpush.msra.mxu0 %v993
        %2471 = vmatpush.msra.mxu0 %v989
        %2472 = vmatpush.msra.mxu0 %v985
        %2473 = vmatpush.msra.mxu0 %v981
        %2474 = vmatpush.msra.mxu0 %v977
        %2475 = vmatmul.f32.gmra.mxu0 %v281
        %v2476 = vpop.f32.mrf.mxu0
        %v2477 = vadd.f32 %v2436, %v2476
        %2478 = vmatmul.f32.gmra.mxu0 %v297
        %v2479 = vpop.f32.mrf.mxu0
        %v2480 = vadd.f32 %v2439, %v2479
        %2481 = vmatmul.f32.gmra.mxu0 %v313
        %v2482 = vpop.f32.mrf.mxu0
        %v2483 = vadd.f32 %v2442, %v2482
        %2484 = vmatmul.f32.gmra.mxu0 %v329
        %v2485 = vpop.f32.mrf.mxu0
        %v2486 = vadd.f32 %v2445, %v2485
        %2487 = vmatmul.f32.gmra.mxu0 %v345
        %v2488 = vpop.f32.mrf.mxu0
        %v2489 = vadd.f32 %v2448, %v2488
        %2490 = vmatmul.f32.gmra.mxu0 %v361
        %v2491 = vpop.f32.mrf.mxu0
        %v2492 = vadd.f32 %v2451, %v2491
        %2493 = vmatmul.f32.gmra.mxu0 %v377
        %v2494 = vpop.f32.mrf.mxu0
        %v2495 = vadd.f32 %v2454, %v2494
        %2496 = vmatmul.f32.gmra.mxu0 %v393
        %v2497 = vpop.f32.mrf.mxu0
        %v2498 = vadd.f32 %v2457, %v2497
        %2499 = vdwg.mxu0
        %2500 = vmatpush.msra.mxu0 %v1101
        %2501 = vmatpush.msra.mxu0 %v1097
        %2502 = vmatpush.msra.mxu0 %v1093
        %2503 = vmatpush.msra.mxu0 %v1089
        %2504 = vmatpush.msra.mxu0 %v1085
        %2505 = vmatpush.msra.mxu0 %v1081
        %2506 = vmatpush.msra.mxu0 %v1077
        %2507 = vmatpush.msra.mxu0 %v1073
        %2508 = vmatpush.msra.mxu0 %v1069
        %2509 = vmatpush.msra.mxu0 %v1065
        %2510 = vmatpush.msra.mxu0 %v1061
        %2511 = vmatpush.msra.mxu0 %v1057
        %2512 = vmatpush.msra.mxu0 %v1053
        %2513 = vmatpush.msra.mxu0 %v1049
        %2514 = vmatpush.msra.mxu0 %v1045
        %2515 = vmatpush.msra.mxu0 %v1041
        %2516 = vmatmul.f32.gmra.mxu0 %v282
        %v2517 = vpop.f32.mrf.mxu0
        %v2518 = vadd.f32 %v2477, %v2517
        %2519 = vmatmul.f32.gmra.mxu0 %v298
        %v2520 = vpop.f32.mrf.mxu0
        %v2521 = vadd.f32 %v2480, %v2520
        %2522 = vmatmul.f32.gmra.mxu0 %v314
        %v2523 = vpop.f32.mrf.mxu0
        %v2524 = vadd.f32 %v2483, %v2523
        %2525 = vmatmul.f32.gmra.mxu0 %v330
        %v2526 = vpop.f32.mrf.mxu0
        %v2527 = vadd.f32 %v2486, %v2526
        %2528 = vmatmul.f32.gmra.mxu0 %v346
        %v2529 = vpop.f32.mrf.mxu0
        %v2530 = vadd.f32 %v2489, %v2529
        %2531 = vmatmul.f32.gmra.mxu0 %v362
        %v2532 = vpop.f32.mrf.mxu0
        %v2533 = vadd.f32 %v2492, %v2532
        %2534 = vmatmul.f32.gmra.mxu0 %v378
        %v2535 = vpop.f32.mrf.mxu0
        %v2536 = vadd.f32 %v2495, %v2535
        %2537 = vmatmul.f32.gmra.mxu0 %v394
        %v2538 = vpop.f32.mrf.mxu0
        %v2539 = vadd.f32 %v2498, %v2538
        %2540 = vdwg.mxu0
        %2541 = vmatpush.msra.mxu0 %v1165
        %2542 = vmatpush.msra.mxu0 %v1161
        %2543 = vmatpush.msra.mxu0 %v1157
        %2544 = vmatpush.msra.mxu0 %v1153
        %2545 = vmatpush.msra.mxu0 %v1149
        %2546 = vmatpush.msra.mxu0 %v1145
        %2547 = vmatpush.msra.mxu0 %v1141
        %2548 = vmatpush.msra.mxu0 %v1137
        %2549 = vmatpush.msra.mxu0 %v1133
        %2550 = vmatpush.msra.mxu0 %v1129
        %2551 = vmatpush.msra.mxu0 %v1125
        %2552 = vmatpush.msra.mxu0 %v1121
        %2553 = vmatpush.msra.mxu0 %v1117
        %2554 = vmatpush.msra.mxu0 %v1113
        %2555 = vmatpush.msra.mxu0 %v1109
        %2556 = vmatpush.msra.mxu0 %v1105
        %2557 = vmatmul.f32.gmra.mxu0 %v283
        %v2558 = vpop.f32.mrf.mxu0
        %v2559 = vadd.f32 %v2518, %v2558
        %2560 = vmatmul.f32.gmra.mxu0 %v299
        %v2561 = vpop.f32.mrf.mxu0
        %v2562 = vadd.f32 %v2521, %v2561
        %2563 = vmatmul.f32.gmra.mxu0 %v315
        %v2564 = vpop.f32.mrf.mxu0
        %v2565 = vadd.f32 %v2524, %v2564
        %2566 = vmatmul.f32.gmra.mxu0 %v331
        %v2567 = vpop.f32.mrf.mxu0
        %v2568 = vadd.f32 %v2527, %v2567
        %2569 = vmatmul.f32.gmra.mxu0 %v347
        %v2570 = vpop.f32.mrf.mxu0
        %v2571 = vadd.f32 %v2530, %v2570
        %2572 = vmatmul.f32.gmra.mxu0 %v363
        %v2573 = vpop.f32.mrf.mxu0
        %v2574 = vadd.f32 %v2533, %v2573
        %2575 = vmatmul.f32.gmra.mxu0 %v379
        %v2576 = vpop.f32.mrf.mxu0
        %v2577 = vadd.f32 %v2536, %v2576
        %2578 = vmatmul.f32.gmra.mxu0 %v395
        %v2579 = vpop.f32.mrf.mxu0
        %v2580 = vadd.f32 %v2539, %v2579
        %2581 = vdwg.mxu0
        %2582 = vmatpush.msra.mxu0 %v1229
        %2583 = vmatpush.msra.mxu0 %v1225
        %2584 = vmatpush.msra.mxu0 %v1221
        %2585 = vmatpush.msra.mxu0 %v1217
        %2586 = vmatpush.msra.mxu0 %v1213
        %2587 = vmatpush.msra.mxu0 %v1209
        %2588 = vmatpush.msra.mxu0 %v1205
        %2589 = vmatpush.msra.mxu0 %v1201
        %2590 = vmatpush.msra.mxu0 %v1197
        %2591 = vmatpush.msra.mxu0 %v1193
        %2592 = vmatpush.msra.mxu0 %v1189
        %2593 = vmatpush.msra.mxu0 %v1185
        %2594 = vmatpush.msra.mxu0 %v1181
        %2595 = vmatpush.msra.mxu0 %v1177
        %2596 = vmatpush.msra.mxu0 %v1173
        %2597 = vmatpush.msra.mxu0 %v1169
        %2598 = vmatmul.f32.gmra.mxu0 %v284
        %v2599 = vpop.f32.mrf.mxu0
        %v2600 = vadd.f32 %v2559, %v2599
        %2601 = vmatmul.f32.gmra.mxu0 %v300
        %v2602 = vpop.f32.mrf.mxu0
        %v2603 = vadd.f32 %v2562, %v2602
        %2604 = vmatmul.f32.gmra.mxu0 %v316
        %v2605 = vpop.f32.mrf.mxu0
        %v2606 = vadd.f32 %v2565, %v2605
        %2607 = vmatmul.f32.gmra.mxu0 %v332
        %v2608 = vpop.f32.mrf.mxu0
        %v2609 = vadd.f32 %v2568, %v2608
        %2610 = vmatmul.f32.gmra.mxu0 %v348
        %v2611 = vpop.f32.mrf.mxu0
        %v2612 = vadd.f32 %v2571, %v2611
        %2613 = vmatmul.f32.gmra.mxu0 %v364
        %v2614 = vpop.f32.mrf.mxu0
        %v2615 = vadd.f32 %v2574, %v2614
        %2616 = vmatmul.f32.gmra.mxu0 %v380
        %v2617 = vpop.f32.mrf.mxu0
        %v2618 = vadd.f32 %v2577, %v2617
        %2619 = vmatmul.f32.gmra.mxu0 %v396
        %v2620 = vpop.f32.mrf.mxu0
        %v2621 = vadd.f32 %v2580, %v2620
        %2622 = vdwg.mxu0
        %2623 = vmatpush.msra.mxu0 %v1293
        %2624 = vmatpush.msra.mxu0 %v1289
        %2625 = vmatpush.msra.mxu0 %v1285
        %2626 = vmatpush.msra.mxu0 %v1281
        %2627 = vmatpush.msra.mxu0 %v1277
        %2628 = vmatpush.msra.mxu0 %v1273
        %2629 = vmatpush.msra.mxu0 %v1269
        %2630 = vmatpush.msra.mxu0 %v1265
        %2631 = vmatpush.msra.mxu0 %v1261
        %2632 = vmatpush.msra.mxu0 %v1257
        %2633 = vmatpush.msra.mxu0 %v1253
        %2634 = vmatpush.msra.mxu0 %v1249
        %2635 = vmatpush.msra.mxu0 %v1245
        %2636 = vmatpush.msra.mxu0 %v1241
        %2637 = vmatpush.msra.mxu0 %v1237
        %2638 = vmatpush.msra.mxu0 %v1233
        %2639 = vmatmul.f32.gmra.mxu0 %v285
        %v2640 = vpop.f32.mrf.mxu0
        %v2641 = vadd.f32 %v2600, %v2640
        %2642 = vmatmul.f32.gmra.mxu0 %v301
        %v2643 = vpop.f32.mrf.mxu0
        %v2644 = vadd.f32 %v2603, %v2643
        %2645 = vmatmul.f32.gmra.mxu0 %v317
        %v2646 = vpop.f32.mrf.mxu0
        %v2647 = vadd.f32 %v2606, %v2646
        %2648 = vmatmul.f32.gmra.mxu0 %v333
        %v2649 = vpop.f32.mrf.mxu0
        %v2650 = vadd.f32 %v2609, %v2649
        %2651 = vmatmul.f32.gmra.mxu0 %v349
        %v2652 = vpop.f32.mrf.mxu0
        %v2653 = vadd.f32 %v2612, %v2652
        %2654 = vmatmul.f32.gmra.mxu0 %v365
        %v2655 = vpop.f32.mrf.mxu0
        %v2656 = vadd.f32 %v2615, %v2655
        %2657 = vmatmul.f32.gmra.mxu0 %v381
        %v2658 = vpop.f32.mrf.mxu0
        %v2659 = vadd.f32 %v2618, %v2658
        %2660 = vmatmul.f32.gmra.mxu0 %v397
        %v2661 = vpop.f32.mrf.mxu0
        %v2662 = vadd.f32 %v2621, %v2661
        %2663 = vdwg.mxu0
        %2664 = vmatpush.msra.mxu0 %v1357
        %2665 = vmatpush.msra.mxu0 %v1353
        %2666 = vmatpush.msra.mxu0 %v1349
        %2667 = vmatpush.msra.mxu0 %v1345
        %2668 = vmatpush.msra.mxu0 %v1341
        %2669 = vmatpush.msra.mxu0 %v1337
        %2670 = vmatpush.msra.mxu0 %v1333
        %2671 = vmatpush.msra.mxu0 %v1329
        %2672 = vmatpush.msra.mxu0 %v1325
        %2673 = vmatpush.msra.mxu0 %v1321
        %2674 = vmatpush.msra.mxu0 %v1317
        %2675 = vmatpush.msra.mxu0 %v1313
        %2676 = vmatpush.msra.mxu0 %v1309
        %2677 = vmatpush.msra.mxu0 %v1305
        %2678 = vmatpush.msra.mxu0 %v1301
        %2679 = vmatpush.msra.mxu0 %v1297
        %2680 = vmatmul.f32.gmra.mxu0 %v286
        %v2681 = vpop.f32.mrf.mxu0
        %v2682 = vadd.f32 %v2641, %v2681
        %2683 = vmatmul.f32.gmra.mxu0 %v302
        %v2684 = vpop.f32.mrf.mxu0
        %v2685 = vadd.f32 %v2644, %v2684
        %2686 = vmatmul.f32.gmra.mxu0 %v318
        %v2687 = vpop.f32.mrf.mxu0
        %v2688 = vadd.f32 %v2647, %v2687
        %2689 = vmatmul.f32.gmra.mxu0 %v334
        %v2690 = vpop.f32.mrf.mxu0
        %v2691 = vadd.f32 %v2650, %v2690
        %2692 = vmatmul.f32.gmra.mxu0 %v350
        %v2693 = vpop.f32.mrf.mxu0
        %v2694 = vadd.f32 %v2653, %v2693
        %2695 = vmatmul.f32.gmra.mxu0 %v366
        %v2696 = vpop.f32.mrf.mxu0
        %v2697 = vadd.f32 %v2656, %v2696
        %2698 = vmatmul.f32.gmra.mxu0 %v382
        %v2699 = vpop.f32.mrf.mxu0
        %v2700 = vadd.f32 %v2659, %v2699
        %2701 = vmatmul.f32.gmra.mxu0 %v398
        %v2702 = vpop.f32.mrf.mxu0
        %v2703 = vadd.f32 %v2662, %v2702
        %2704 = vdwg.mxu0
        %2705 = vmatpush.msra.mxu0 %v1421
        %2706 = vmatpush.msra.mxu0 %v1417
        %2707 = vmatpush.msra.mxu0 %v1413
        %2708 = vmatpush.msra.mxu0 %v1409
        %2709 = vmatpush.msra.mxu0 %v1405
        %2710 = vmatpush.msra.mxu0 %v1401
        %2711 = vmatpush.msra.mxu0 %v1397
        %2712 = vmatpush.msra.mxu0 %v1393
        %2713 = vmatpush.msra.mxu0 %v1389
        %2714 = vmatpush.msra.mxu0 %v1385
        %2715 = vmatpush.msra.mxu0 %v1381
        %2716 = vmatpush.msra.mxu0 %v1377
        %2717 = vmatpush.msra.mxu0 %v1373
        %2718 = vmatpush.msra.mxu0 %v1369
        %2719 = vmatpush.msra.mxu0 %v1365
        %2720 = vmatpush.msra.mxu0 %v1361
        %2721 = vmatmul.f32.gmra.mxu0 %v287
        %v2722 = vpop.f32.mrf.mxu0
        %v2723 = vadd.f32 %v2682, %v2722
        %2724 = vmatmul.f32.gmra.mxu0 %v303
        %v2725 = vpop.f32.mrf.mxu0
        %v2726 = vadd.f32 %v2685, %v2725
        %2727 = vmatmul.f32.gmra.mxu0 %v319
        %v2728 = vpop.f32.mrf.mxu0
        %v2729 = vadd.f32 %v2688, %v2728
        %2730 = vmatmul.f32.gmra.mxu0 %v335
        %v2731 = vpop.f32.mrf.mxu0
        %v2732 = vadd.f32 %v2691, %v2731
        %2733 = vmatmul.f32.gmra.mxu0 %v351
        %v2734 = vpop.f32.mrf.mxu0
        %v2735 = vadd.f32 %v2694, %v2734
        %2736 = vmatmul.f32.gmra.mxu0 %v367
        %v2737 = vpop.f32.mrf.mxu0
        %v2738 = vadd.f32 %v2697, %v2737
        %2739 = vmatmul.f32.gmra.mxu0 %v383
        %v2740 = vpop.f32.mrf.mxu0
        %v2741 = vadd.f32 %v2700, %v2740
        %2742 = vmatmul.f32.gmra.mxu0 %v399
        %v2743 = vpop.f32.mrf.mxu0
        %v2744 = vadd.f32 %v2703, %v2743
        %2745 = vdwg.mxu0
        %2746 = vmatpush.msra.mxu0 %v462
        %2747 = vmatpush.msra.mxu0 %v458
        %2748 = vmatpush.msra.mxu0 %v454
        %2749 = vmatpush.msra.mxu0 %v450
        %2750 = vmatpush.msra.mxu0 %v446
        %2751 = vmatpush.msra.mxu0 %v442
        %2752 = vmatpush.msra.mxu0 %v438
        %2753 = vmatpush.msra.mxu0 %v434
        %2754 = vmatpush.msra.mxu0 %v430
        %2755 = vmatpush.msra.mxu0 %v426
        %2756 = vmatpush.msra.mxu0 %v422
        %2757 = vmatpush.msra.mxu0 %v418
        %2758 = vmatpush.msra.mxu0 %v414
        %2759 = vmatpush.msra.mxu0 %v410
        %2760 = vmatpush.msra.mxu0 %v406
        %2761 = vmatpush.msra.mxu0 %v402
        %2762 = vmatmul.f32.gmra.mxu0 %v272
        %v2763 = vpop.f32.mrf.mxu0
        %v2764 = vadd.f32 %v1428, %v2763
        %2765 = vmatmul.f32.gmra.mxu0 %v288
        %v2766 = vpop.f32.mrf.mxu0
        %v2767 = vadd.f32 %v1428, %v2766
        %2768 = vmatmul.f32.gmra.mxu0 %v304
        %v2769 = vpop.f32.mrf.mxu0
        %v2770 = vadd.f32 %v1428, %v2769
        %2771 = vmatmul.f32.gmra.mxu0 %v320
        %v2772 = vpop.f32.mrf.mxu0
        %v2773 = vadd.f32 %v1428, %v2772
        %2774 = vmatmul.f32.gmra.mxu0 %v336
        %v2775 = vpop.f32.mrf.mxu0
        %v2776 = vadd.f32 %v1428, %v2775
        %2777 = vmatmul.f32.gmra.mxu0 %v352
        %v2778 = vpop.f32.mrf.mxu0
        %v2779 = vadd.f32 %v1428, %v2778
        %2780 = vmatmul.f32.gmra.mxu0 %v368
        %v2781 = vpop.f32.mrf.mxu0
        %v2782 = vadd.f32 %v1428, %v2781
        %2783 = vmatmul.f32.gmra.mxu0 %v384
        %v2784 = vpop.f32.mrf.mxu0
        %v2785 = vadd.f32 %v1428, %v2784
        %2786 = vdwg.mxu0
        %2787 = vmatpush.msra.mxu0 %v526
        %2788 = vmatpush.msra.mxu0 %v522
        %2789 = vmatpush.msra.mxu0 %v518
        %2790 = vmatpush.msra.mxu0 %v514
        %2791 = vmatpush.msra.mxu0 %v510
        %2792 = vmatpush.msra.mxu0 %v506
        %2793 = vmatpush.msra.mxu0 %v502
        %2794 = vmatpush.msra.mxu0 %v498
        %2795 = vmatpush.msra.mxu0 %v494
        %2796 = vmatpush.msra.mxu0 %v490
        %2797 = vmatpush.msra.mxu0 %v486
        %2798 = vmatpush.msra.mxu0 %v482
        %2799 = vmatpush.msra.mxu0 %v478
        %2800 = vmatpush.msra.mxu0 %v474
        %2801 = vmatpush.msra.mxu0 %v470
        %2802 = vmatpush.msra.mxu0 %v466
        %2803 = vmatmul.f32.gmra.mxu0 %v273
        %v2804 = vpop.f32.mrf.mxu0
        %v2805 = vadd.f32 %v2764, %v2804
        %2806 = vmatmul.f32.gmra.mxu0 %v289
        %v2807 = vpop.f32.mrf.mxu0
        %v2808 = vadd.f32 %v2767, %v2807
        %2809 = vmatmul.f32.gmra.mxu0 %v305
        %v2810 = vpop.f32.mrf.mxu0
        %v2811 = vadd.f32 %v2770, %v2810
        %2812 = vmatmul.f32.gmra.mxu0 %v321
        %v2813 = vpop.f32.mrf.mxu0
        %v2814 = vadd.f32 %v2773, %v2813
        %2815 = vmatmul.f32.gmra.mxu0 %v337
        %v2816 = vpop.f32.mrf.mxu0
        %v2817 = vadd.f32 %v2776, %v2816
        %2818 = vmatmul.f32.gmra.mxu0 %v353
        %v2819 = vpop.f32.mrf.mxu0
        %v2820 = vadd.f32 %v2779, %v2819
        %2821 = vmatmul.f32.gmra.mxu0 %v369
        %v2822 = vpop.f32.mrf.mxu0
        %v2823 = vadd.f32 %v2782, %v2822
        %2824 = vmatmul.f32.gmra.mxu0 %v385
        %v2825 = vpop.f32.mrf.mxu0
        %v2826 = vadd.f32 %v2785, %v2825
        %2827 = vdwg.mxu0
        %2828 = vmatpush.msra.mxu0 %v590
        %2829 = vmatpush.msra.mxu0 %v586
        %2830 = vmatpush.msra.mxu0 %v582
        %2831 = vmatpush.msra.mxu0 %v578
        %2832 = vmatpush.msra.mxu0 %v574
        %2833 = vmatpush.msra.mxu0 %v570
        %2834 = vmatpush.msra.mxu0 %v566
        %2835 = vmatpush.msra.mxu0 %v562
        %2836 = vmatpush.msra.mxu0 %v558
        %2837 = vmatpush.msra.mxu0 %v554
        %2838 = vmatpush.msra.mxu0 %v550
        %2839 = vmatpush.msra.mxu0 %v546
        %2840 = vmatpush.msra.mxu0 %v542
        %2841 = vmatpush.msra.mxu0 %v538
        %2842 = vmatpush.msra.mxu0 %v534
        %2843 = vmatpush.msra.mxu0 %v530
        %2844 = vmatmul.f32.gmra.mxu0 %v274
        %v2845 = vpop.f32.mrf.mxu0
        %v2846 = vadd.f32 %v2805, %v2845
        %2847 = vmatmul.f32.gmra.mxu0 %v290
        %v2848 = vpop.f32.mrf.mxu0
        %v2849 = vadd.f32 %v2808, %v2848
        %2850 = vmatmul.f32.gmra.mxu0 %v306
        %v2851 = vpop.f32.mrf.mxu0
        %v2852 = vadd.f32 %v2811, %v2851
        %2853 = vmatmul.f32.gmra.mxu0 %v322
        %v2854 = vpop.f32.mrf.mxu0
        %v2855 = vadd.f32 %v2814, %v2854
        %2856 = vmatmul.f32.gmra.mxu0 %v338
        %v2857 = vpop.f32.mrf.mxu0
        %v2858 = vadd.f32 %v2817, %v2857
        %2859 = vmatmul.f32.gmra.mxu0 %v354
        %v2860 = vpop.f32.mrf.mxu0
        %v2861 = vadd.f32 %v2820, %v2860
        %2862 = vmatmul.f32.gmra.mxu0 %v370
        %v2863 = vpop.f32.mrf.mxu0
        %v2864 = vadd.f32 %v2823, %v2863
        %2865 = vmatmul.f32.gmra.mxu0 %v386
        %v2866 = vpop.f32.mrf.mxu0
        %v2867 = vadd.f32 %v2826, %v2866
        %2868 = vdwg.mxu0
        %2869 = vmatpush.msra.mxu0 %v654
        %2870 = vmatpush.msra.mxu0 %v650
        %2871 = vmatpush.msra.mxu0 %v646
        %2872 = vmatpush.msra.mxu0 %v642
        %2873 = vmatpush.msra.mxu0 %v638
        %2874 = vmatpush.msra.mxu0 %v634
        %2875 = vmatpush.msra.mxu0 %v630
        %2876 = vmatpush.msra.mxu0 %v626
        %2877 = vmatpush.msra.mxu0 %v622
        %2878 = vmatpush.msra.mxu0 %v618
        %2879 = vmatpush.msra.mxu0 %v614
        %2880 = vmatpush.msra.mxu0 %v610
        %2881 = vmatpush.msra.mxu0 %v606
        %2882 = vmatpush.msra.mxu0 %v602
        %2883 = vmatpush.msra.mxu0 %v598
        %2884 = vmatpush.msra.mxu0 %v594
        %2885 = vmatmul.f32.gmra.mxu0 %v275
        %v2886 = vpop.f32.mrf.mxu0
        %v2887 = vadd.f32 %v2846, %v2886
        %2888 = vmatmul.f32.gmra.mxu0 %v291
        %v2889 = vpop.f32.mrf.mxu0
        %v2890 = vadd.f32 %v2849, %v2889
        %2891 = vmatmul.f32.gmra.mxu0 %v307
        %v2892 = vpop.f32.mrf.mxu0
        %v2893 = vadd.f32 %v2852, %v2892
        %2894 = vmatmul.f32.gmra.mxu0 %v323
        %v2895 = vpop.f32.mrf.mxu0
        %v2896 = vadd.f32 %v2855, %v2895
        %2897 = vmatmul.f32.gmra.mxu0 %v339
        %v2898 = vpop.f32.mrf.mxu0
        %v2899 = vadd.f32 %v2858, %v2898
        %2900 = vmatmul.f32.gmra.mxu0 %v355
        %v2901 = vpop.f32.mrf.mxu0
        %v2902 = vadd.f32 %v2861, %v2901
        %2903 = vmatmul.f32.gmra.mxu0 %v371
        %v2904 = vpop.f32.mrf.mxu0
        %v2905 = vadd.f32 %v2864, %v2904
        %2906 = vmatmul.f32.gmra.mxu0 %v387
        %v2907 = vpop.f32.mrf.mxu0
        %v2908 = vadd.f32 %v2867, %v2907
        %2909 = vdwg.mxu0
        %2910 = vmatpush.msra.mxu0 %v718
        %2911 = vmatpush.msra.mxu0 %v714
        %2912 = vmatpush.msra.mxu0 %v710
        %2913 = vmatpush.msra.mxu0 %v706
        %2914 = vmatpush.msra.mxu0 %v702
        %2915 = vmatpush.msra.mxu0 %v698
        %2916 = vmatpush.msra.mxu0 %v694
        %2917 = vmatpush.msra.mxu0 %v690
        %2918 = vmatpush.msra.mxu0 %v686
        %2919 = vmatpush.msra.mxu0 %v682
        %2920 = vmatpush.msra.mxu0 %v678
        %2921 = vmatpush.msra.mxu0 %v674
        %2922 = vmatpush.msra.mxu0 %v670
        %2923 = vmatpush.msra.mxu0 %v666
        %2924 = vmatpush.msra.mxu0 %v662
        %2925 = vmatpush.msra.mxu0 %v658
        %2926 = vmatmul.f32.gmra.mxu0 %v276
        %v2927 = vpop.f32.mrf.mxu0
        %v2928 = vadd.f32 %v2887, %v2927
        %2929 = vmatmul.f32.gmra.mxu0 %v292
        %v2930 = vpop.f32.mrf.mxu0
        %v2931 = vadd.f32 %v2890, %v2930
        %2932 = vmatmul.f32.gmra.mxu0 %v308
        %v2933 = vpop.f32.mrf.mxu0
        %v2934 = vadd.f32 %v2893, %v2933
        %2935 = vmatmul.f32.gmra.mxu0 %v324
        %v2936 = vpop.f32.mrf.mxu0
        %v2937 = vadd.f32 %v2896, %v2936
        %2938 = vmatmul.f32.gmra.mxu0 %v340
        %v2939 = vpop.f32.mrf.mxu0
        %v2940 = vadd.f32 %v2899, %v2939
        %2941 = vmatmul.f32.gmra.mxu0 %v356
        %v2942 = vpop.f32.mrf.mxu0
        %v2943 = vadd.f32 %v2902, %v2942
        %2944 = vmatmul.f32.gmra.mxu0 %v372
        %v2945 = vpop.f32.mrf.mxu0
        %v2946 = vadd.f32 %v2905, %v2945
        %2947 = vmatmul.f32.gmra.mxu0 %v388
        %v2948 = vpop.f32.mrf.mxu0
        %v2949 = vadd.f32 %v2908, %v2948
        %2950 = vdwg.mxu0
        %2951 = vmatpush.msra.mxu0 %v782
        %2952 = vmatpush.msra.mxu0 %v778
        %2953 = vmatpush.msra.mxu0 %v774
        %2954 = vmatpush.msra.mxu0 %v770
        %2955 = vmatpush.msra.mxu0 %v766
        %2956 = vmatpush.msra.mxu0 %v762
        %2957 = vmatpush.msra.mxu0 %v758
        %2958 = vmatpush.msra.mxu0 %v754
        %2959 = vmatpush.msra.mxu0 %v750
        %2960 = vmatpush.msra.mxu0 %v746
        %2961 = vmatpush.msra.mxu0 %v742
        %2962 = vmatpush.msra.mxu0 %v738
        %2963 = vmatpush.msra.mxu0 %v734
        %2964 = vmatpush.msra.mxu0 %v730
        %2965 = vmatpush.msra.mxu0 %v726
        %2966 = vmatpush.msra.mxu0 %v722
        %2967 = vmatmul.f32.gmra.mxu0 %v277
        %v2968 = vpop.f32.mrf.mxu0
        %v2969 = vadd.f32 %v2928, %v2968
        %2970 = vmatmul.f32.gmra.mxu0 %v293
        %v2971 = vpop.f32.mrf.mxu0
        %v2972 = vadd.f32 %v2931, %v2971
        %2973 = vmatmul.f32.gmra.mxu0 %v309
        %v2974 = vpop.f32.mrf.mxu0
        %v2975 = vadd.f32 %v2934, %v2974
        %2976 = vmatmul.f32.gmra.mxu0 %v325
        %v2977 = vpop.f32.mrf.mxu0
        %v2978 = vadd.f32 %v2937, %v2977
        %2979 = vmatmul.f32.gmra.mxu0 %v341
        %v2980 = vpop.f32.mrf.mxu0
        %v2981 = vadd.f32 %v2940, %v2980
        %2982 = vmatmul.f32.gmra.mxu0 %v357
        %v2983 = vpop.f32.mrf.mxu0
        %v2984 = vadd.f32 %v2943, %v2983
        %2985 = vmatmul.f32.gmra.mxu0 %v373
        %v2986 = vpop.f32.mrf.mxu0
        %v2987 = vadd.f32 %v2946, %v2986
        %2988 = vmatmul.f32.gmra.mxu0 %v389
        %v2989 = vpop.f32.mrf.mxu0
        %v2990 = vadd.f32 %v2949, %v2989
        %2991 = vdwg.mxu0
        %2992 = vmatpush.msra.mxu0 %v846
        %2993 = vmatpush.msra.mxu0 %v842
        %2994 = vmatpush.msra.mxu0 %v838
        %2995 = vmatpush.msra.mxu0 %v834
        %2996 = vmatpush.msra.mxu0 %v830
        %2997 = vmatpush.msra.mxu0 %v826
        %2998 = vmatpush.msra.mxu0 %v822
        %2999 = vmatpush.msra.mxu0 %v818
        %3000 = vmatpush.msra.mxu0 %v814
        %3001 = vmatpush.msra.mxu0 %v810
        %3002 = vmatpush.msra.mxu0 %v806
        %3003 = vmatpush.msra.mxu0 %v802
        %3004 = vmatpush.msra.mxu0 %v798
        %3005 = vmatpush.msra.mxu0 %v794
        %3006 = vmatpush.msra.mxu0 %v790
        %3007 = vmatpush.msra.mxu0 %v786
        %3008 = vmatmul.f32.gmra.mxu0 %v278
        %v3009 = vpop.f32.mrf.mxu0
        %v3010 = vadd.f32 %v2969, %v3009
        %3011 = vmatmul.f32.gmra.mxu0 %v294
        %v3012 = vpop.f32.mrf.mxu0
        %v3013 = vadd.f32 %v2972, %v3012
        %3014 = vmatmul.f32.gmra.mxu0 %v310
        %v3015 = vpop.f32.mrf.mxu0
        %v3016 = vadd.f32 %v2975, %v3015
        %3017 = vmatmul.f32.gmra.mxu0 %v326
        %v3018 = vpop.f32.mrf.mxu0
        %v3019 = vadd.f32 %v2978, %v3018
        %3020 = vmatmul.f32.gmra.mxu0 %v342
        %v3021 = vpop.f32.mrf.mxu0
        %v3022 = vadd.f32 %v2981, %v3021
        %3023 = vmatmul.f32.gmra.mxu0 %v358
        %v3024 = vpop.f32.mrf.mxu0
        %v3025 = vadd.f32 %v2984, %v3024
        %3026 = vmatmul.f32.gmra.mxu0 %v374
        %v3027 = vpop.f32.mrf.mxu0
        %v3028 = vadd.f32 %v2987, %v3027
        %3029 = vmatmul.f32.gmra.mxu0 %v390
        %v3030 = vpop.f32.mrf.mxu0
        %v3031 = vadd.f32 %v2990, %v3030
        %3032 = vdwg.mxu0
        %3033 = vmatpush.msra.mxu0 %v910
        %3034 = vmatpush.msra.mxu0 %v906
        %3035 = vmatpush.msra.mxu0 %v902
        %3036 = vmatpush.msra.mxu0 %v898
        %3037 = vmatpush.msra.mxu0 %v894
        %3038 = vmatpush.msra.mxu0 %v890
        %3039 = vmatpush.msra.mxu0 %v886
        %3040 = vmatpush.msra.mxu0 %v882
        %3041 = vmatpush.msra.mxu0 %v878
        %3042 = vmatpush.msra.mxu0 %v874
        %3043 = vmatpush.msra.mxu0 %v870
        %3044 = vmatpush.msra.mxu0 %v866
        %3045 = vmatpush.msra.mxu0 %v862
        %3046 = vmatpush.msra.mxu0 %v858
        %3047 = vmatpush.msra.mxu0 %v854
        %3048 = vmatpush.msra.mxu0 %v850
        %3049 = vmatmul.f32.gmra.mxu0 %v279
        %v3050 = vpop.f32.mrf.mxu0
        %v3051 = vadd.f32 %v3010, %v3050
        %3052 = vmatmul.f32.gmra.mxu0 %v295
        %v3053 = vpop.f32.mrf.mxu0
        %v3054 = vadd.f32 %v3013, %v3053
        %3055 = vmatmul.f32.gmra.mxu0 %v311
        %v3056 = vpop.f32.mrf.mxu0
        %v3057 = vadd.f32 %v3016, %v3056
        %3058 = vmatmul.f32.gmra.mxu0 %v327
        %v3059 = vpop.f32.mrf.mxu0
        %v3060 = vadd.f32 %v3019, %v3059
        %3061 = vmatmul.f32.gmra.mxu0 %v343
        %v3062 = vpop.f32.mrf.mxu0
        %v3063 = vadd.f32 %v3022, %v3062
        %3064 = vmatmul.f32.gmra.mxu0 %v359
        %v3065 = vpop.f32.mrf.mxu0
        %v3066 = vadd.f32 %v3025, %v3065
        %3067 = vmatmul.f32.gmra.mxu0 %v375
        %v3068 = vpop.f32.mrf.mxu0
        %v3069 = vadd.f32 %v3028, %v3068
        %3070 = vmatmul.f32.gmra.mxu0 %v391
        %v3071 = vpop.f32.mrf.mxu0
        %v3072 = vadd.f32 %v3031, %v3071
        %3073 = vdwg.mxu0
        %3074 = vmatpush.msra.mxu0 %v974
        %3075 = vmatpush.msra.mxu0 %v970
        %3076 = vmatpush.msra.mxu0 %v966
        %3077 = vmatpush.msra.mxu0 %v962
        %3078 = vmatpush.msra.mxu0 %v958
        %3079 = vmatpush.msra.mxu0 %v954
        %3080 = vmatpush.msra.mxu0 %v950
        %3081 = vmatpush.msra.mxu0 %v946
        %3082 = vmatpush.msra.mxu0 %v942
        %3083 = vmatpush.msra.mxu0 %v938
        %3084 = vmatpush.msra.mxu0 %v934
        %3085 = vmatpush.msra.mxu0 %v930
        %3086 = vmatpush.msra.mxu0 %v926
        %3087 = vmatpush.msra.mxu0 %v922
        %3088 = vmatpush.msra.mxu0 %v918
        %3089 = vmatpush.msra.mxu0 %v914
        %3090 = vmatmul.f32.gmra.mxu0 %v280
        %v3091 = vpop.f32.mrf.mxu0
        %v3092 = vadd.f32 %v3051, %v3091
        %3093 = vmatmul.f32.gmra.mxu0 %v296
        %v3094 = vpop.f32.mrf.mxu0
        %v3095 = vadd.f32 %v3054, %v3094
        %3096 = vmatmul.f32.gmra.mxu0 %v312
        %v3097 = vpop.f32.mrf.mxu0
        %v3098 = vadd.f32 %v3057, %v3097
        %3099 = vmatmul.f32.gmra.mxu0 %v328
        %v3100 = vpop.f32.mrf.mxu0
        %v3101 = vadd.f32 %v3060, %v3100
        %3102 = vmatmul.f32.gmra.mxu0 %v344
        %v3103 = vpop.f32.mrf.mxu0
        %v3104 = vadd.f32 %v3063, %v3103
        %3105 = vmatmul.f32.gmra.mxu0 %v360
        %v3106 = vpop.f32.mrf.mxu0
        %v3107 = vadd.f32 %v3066, %v3106
        %3108 = vmatmul.f32.gmra.mxu0 %v376
        %v3109 = vpop.f32.mrf.mxu0
        %v3110 = vadd.f32 %v3069, %v3109
        %3111 = vmatmul.f32.gmra.mxu0 %v392
        %v3112 = vpop.f32.mrf.mxu0
        %v3113 = vadd.f32 %v3072, %v3112
        %3114 = vdwg.mxu0
        %3115 = vmatpush.msra.mxu0 %v1038
        %3116 = vmatpush.msra.mxu0 %v1034
        %3117 = vmatpush.msra.mxu0 %v1030
        %3118 = vmatpush.msra.mxu0 %v1026
        %3119 = vmatpush.msra.mxu0 %v1022
        %3120 = vmatpush.msra.mxu0 %v1018
        %3121 = vmatpush.msra.mxu0 %v1014
        %3122 = vmatpush.msra.mxu0 %v1010
        %3123 = vmatpush.msra.mxu0 %v1006
        %3124 = vmatpush.msra.mxu0 %v1002
        %3125 = vmatpush.msra.mxu0 %v998
        %3126 = vmatpush.msra.mxu0 %v994
        %3127 = vmatpush.msra.mxu0 %v990
        %3128 = vmatpush.msra.mxu0 %v986
        %3129 = vmatpush.msra.mxu0 %v982
        %3130 = vmatpush.msra.mxu0 %v978
        %3131 = vmatmul.f32.gmra.mxu0 %v281
        %v3132 = vpop.f32.mrf.mxu0
        %v3133 = vadd.f32 %v3092, %v3132
        %3134 = vmatmul.f32.gmra.mxu0 %v297
        %v3135 = vpop.f32.mrf.mxu0
        %v3136 = vadd.f32 %v3095, %v3135
        %3137 = vmatmul.f32.gmra.mxu0 %v313
        %v3138 = vpop.f32.mrf.mxu0
        %v3139 = vadd.f32 %v3098, %v3138
        %3140 = vmatmul.f32.gmra.mxu0 %v329
        %v3141 = vpop.f32.mrf.mxu0
        %v3142 = vadd.f32 %v3101, %v3141
        %3143 = vmatmul.f32.gmra.mxu0 %v345
        %v3144 = vpop.f32.mrf.mxu0
        %v3145 = vadd.f32 %v3104, %v3144
        %3146 = vmatmul.f32.gmra.mxu0 %v361
        %v3147 = vpop.f32.mrf.mxu0
        %v3148 = vadd.f32 %v3107, %v3147
        %3149 = vmatmul.f32.gmra.mxu0 %v377
        %v3150 = vpop.f32.mrf.mxu0
        %v3151 = vadd.f32 %v3110, %v3150
        %3152 = vmatmul.f32.gmra.mxu0 %v393
        %v3153 = vpop.f32.mrf.mxu0
        %v3154 = vadd.f32 %v3113, %v3153
        %3155 = vdwg.mxu0
        %3156 = vmatpush.msra.mxu0 %v1102
        %3157 = vmatpush.msra.mxu0 %v1098
        %3158 = vmatpush.msra.mxu0 %v1094
        %3159 = vmatpush.msra.mxu0 %v1090
        %3160 = vmatpush.msra.mxu0 %v1086
        %3161 = vmatpush.msra.mxu0 %v1082
        %3162 = vmatpush.msra.mxu0 %v1078
        %3163 = vmatpush.msra.mxu0 %v1074
        %3164 = vmatpush.msra.mxu0 %v1070
        %3165 = vmatpush.msra.mxu0 %v1066
        %3166 = vmatpush.msra.mxu0 %v1062
        %3167 = vmatpush.msra.mxu0 %v1058
        %3168 = vmatpush.msra.mxu0 %v1054
        %3169 = vmatpush.msra.mxu0 %v1050
        %3170 = vmatpush.msra.mxu0 %v1046
        %3171 = vmatpush.msra.mxu0 %v1042
        %3172 = vmatmul.f32.gmra.mxu0 %v282
        %v3173 = vpop.f32.mrf.mxu0
        %v3174 = vadd.f32 %v3133, %v3173
        %3175 = vmatmul.f32.gmra.mxu0 %v298
        %v3176 = vpop.f32.mrf.mxu0
        %v3177 = vadd.f32 %v3136, %v3176
        %3178 = vmatmul.f32.gmra.mxu0 %v314
        %v3179 = vpop.f32.mrf.mxu0
        %v3180 = vadd.f32 %v3139, %v3179
        %3181 = vmatmul.f32.gmra.mxu0 %v330
        %v3182 = vpop.f32.mrf.mxu0
        %v3183 = vadd.f32 %v3142, %v3182
        %3184 = vmatmul.f32.gmra.mxu0 %v346
        %v3185 = vpop.f32.mrf.mxu0
        %v3186 = vadd.f32 %v3145, %v3185
        %3187 = vmatmul.f32.gmra.mxu0 %v362
        %v3188 = vpop.f32.mrf.mxu0
        %v3189 = vadd.f32 %v3148, %v3188
        %3190 = vmatmul.f32.gmra.mxu0 %v378
        %v3191 = vpop.f32.mrf.mxu0
        %v3192 = vadd.f32 %v3151, %v3191
        %3193 = vmatmul.f32.gmra.mxu0 %v394
        %v3194 = vpop.f32.mrf.mxu0
        %v3195 = vadd.f32 %v3154, %v3194
        %3196 = vdwg.mxu0
        %3197 = vmatpush.msra.mxu0 %v1166
        %3198 = vmatpush.msra.mxu0 %v1162
        %3199 = vmatpush.msra.mxu0 %v1158
        %3200 = vmatpush.msra.mxu0 %v1154
        %3201 = vmatpush.msra.mxu0 %v1150
        %3202 = vmatpush.msra.mxu0 %v1146
        %3203 = vmatpush.msra.mxu0 %v1142
        %3204 = vmatpush.msra.mxu0 %v1138
        %3205 = vmatpush.msra.mxu0 %v1134
        %3206 = vmatpush.msra.mxu0 %v1130
        %3207 = vmatpush.msra.mxu0 %v1126
        %3208 = vmatpush.msra.mxu0 %v1122
        %3209 = vmatpush.msra.mxu0 %v1118
        %3210 = vmatpush.msra.mxu0 %v1114
        %3211 = vmatpush.msra.mxu0 %v1110
        %3212 = vmatpush.msra.mxu0 %v1106
        %3213 = vmatmul.f32.gmra.mxu0 %v283
        %v3214 = vpop.f32.mrf.mxu0
        %v3215 = vadd.f32 %v3174, %v3214
        %3216 = vmatmul.f32.gmra.mxu0 %v299
        %v3217 = vpop.f32.mrf.mxu0
        %v3218 = vadd.f32 %v3177, %v3217
        %3219 = vmatmul.f32.gmra.mxu0 %v315
        %v3220 = vpop.f32.mrf.mxu0
        %v3221 = vadd.f32 %v3180, %v3220
        %3222 = vmatmul.f32.gmra.mxu0 %v331
        %v3223 = vpop.f32.mrf.mxu0
        %v3224 = vadd.f32 %v3183, %v3223
        %3225 = vmatmul.f32.gmra.mxu0 %v347
        %v3226 = vpop.f32.mrf.mxu0
        %v3227 = vadd.f32 %v3186, %v3226
        %3228 = vmatmul.f32.gmra.mxu0 %v363
        %v3229 = vpop.f32.mrf.mxu0
        %v3230 = vadd.f32 %v3189, %v3229
        %3231 = vmatmul.f32.gmra.mxu0 %v379
        %v3232 = vpop.f32.mrf.mxu0
        %v3233 = vadd.f32 %v3192, %v3232
        %3234 = vmatmul.f32.gmra.mxu0 %v395
        %v3235 = vpop.f32.mrf.mxu0
        %v3236 = vadd.f32 %v3195, %v3235
        %3237 = vdwg.mxu0
        %3238 = vmatpush.msra.mxu0 %v1230
        %3239 = vmatpush.msra.mxu0 %v1226
        %3240 = vmatpush.msra.mxu0 %v1222
        %3241 = vmatpush.msra.mxu0 %v1218
        %3242 = vmatpush.msra.mxu0 %v1214
        %3243 = vmatpush.msra.mxu0 %v1210
        %3244 = vmatpush.msra.mxu0 %v1206
        %3245 = vmatpush.msra.mxu0 %v1202
        %3246 = vmatpush.msra.mxu0 %v1198
        %3247 = vmatpush.msra.mxu0 %v1194
        %3248 = vmatpush.msra.mxu0 %v1190
        %3249 = vmatpush.msra.mxu0 %v1186
        %3250 = vmatpush.msra.mxu0 %v1182
        %3251 = vmatpush.msra.mxu0 %v1178
        %3252 = vmatpush.msra.mxu0 %v1174
        %3253 = vmatpush.msra.mxu0 %v1170
        %3254 = vmatmul.f32.gmra.mxu0 %v284
        %v3255 = vpop.f32.mrf.mxu0
        %v3256 = vadd.f32 %v3215, %v3255
        %3257 = vmatmul.f32.gmra.mxu0 %v300
        %v3258 = vpop.f32.mrf.mxu0
        %v3259 = vadd.f32 %v3218, %v3258
        %3260 = vmatmul.f32.gmra.mxu0 %v316
        %v3261 = vpop.f32.mrf.mxu0
        %v3262 = vadd.f32 %v3221, %v3261
        %3263 = vmatmul.f32.gmra.mxu0 %v332
        %v3264 = vpop.f32.mrf.mxu0
        %v3265 = vadd.f32 %v3224, %v3264
        %3266 = vmatmul.f32.gmra.mxu0 %v348
        %v3267 = vpop.f32.mrf.mxu0
        %v3268 = vadd.f32 %v3227, %v3267
        %3269 = vmatmul.f32.gmra.mxu0 %v364
        %v3270 = vpop.f32.mrf.mxu0
        %v3271 = vadd.f32 %v3230, %v3270
        %3272 = vmatmul.f32.gmra.mxu0 %v380
        %v3273 = vpop.f32.mrf.mxu0
        %v3274 = vadd.f32 %v3233, %v3273
        %3275 = vmatmul.f32.gmra.mxu0 %v396
        %v3276 = vpop.f32.mrf.mxu0
        %v3277 = vadd.f32 %v3236, %v3276
        %3278 = vdwg.mxu0
        %3279 = vmatpush.msra.mxu0 %v1294
        %3280 = vmatpush.msra.mxu0 %v1290
        %3281 = vmatpush.msra.mxu0 %v1286
        %3282 = vmatpush.msra.mxu0 %v1282
        %3283 = vmatpush.msra.mxu0 %v1278
        %3284 = vmatpush.msra.mxu0 %v1274
        %3285 = vmatpush.msra.mxu0 %v1270
        %3286 = vmatpush.msra.mxu0 %v1266
        %3287 = vmatpush.msra.mxu0 %v1262
        %3288 = vmatpush.msra.mxu0 %v1258
        %3289 = vmatpush.msra.mxu0 %v1254
        %3290 = vmatpush.msra.mxu0 %v1250
        %3291 = vmatpush.msra.mxu0 %v1246
        %3292 = vmatpush.msra.mxu0 %v1242
        %3293 = vmatpush.msra.mxu0 %v1238
        %3294 = vmatpush.msra.mxu0 %v1234
        %3295 = vmatmul.f32.gmra.mxu0 %v285
        %v3296 = vpop.f32.mrf.mxu0
        %v3297 = vadd.f32 %v3256, %v3296
        %3298 = vmatmul.f32.gmra.mxu0 %v301
        %v3299 = vpop.f32.mrf.mxu0
        %v3300 = vadd.f32 %v3259, %v3299
        %3301 = vmatmul.f32.gmra.mxu0 %v317
        %v3302 = vpop.f32.mrf.mxu0
        %v3303 = vadd.f32 %v3262, %v3302
        %3304 = vmatmul.f32.gmra.mxu0 %v333
        %v3305 = vpop.f32.mrf.mxu0
        %v3306 = vadd.f32 %v3265, %v3305
        %3307 = vmatmul.f32.gmra.mxu0 %v349
        %v3308 = vpop.f32.mrf.mxu0
        %v3309 = vadd.f32 %v3268, %v3308
        %3310 = vmatmul.f32.gmra.mxu0 %v365
        %v3311 = vpop.f32.mrf.mxu0
        %v3312 = vadd.f32 %v3271, %v3311
        %3313 = vmatmul.f32.gmra.mxu0 %v381
        %v3314 = vpop.f32.mrf.mxu0
        %v3315 = vadd.f32 %v3274, %v3314
        %3316 = vmatmul.f32.gmra.mxu0 %v397
        %v3317 = vpop.f32.mrf.mxu0
        %v3318 = vadd.f32 %v3277, %v3317
        %3319 = vdwg.mxu0
        %3320 = vmatpush.msra.mxu0 %v1358
        %3321 = vmatpush.msra.mxu0 %v1354
        %3322 = vmatpush.msra.mxu0 %v1350
        %3323 = vmatpush.msra.mxu0 %v1346
        %3324 = vmatpush.msra.mxu0 %v1342
        %3325 = vmatpush.msra.mxu0 %v1338
        %3326 = vmatpush.msra.mxu0 %v1334
        %3327 = vmatpush.msra.mxu0 %v1330
        %3328 = vmatpush.msra.mxu0 %v1326
        %3329 = vmatpush.msra.mxu0 %v1322
        %3330 = vmatpush.msra.mxu0 %v1318
        %3331 = vmatpush.msra.mxu0 %v1314
        %3332 = vmatpush.msra.mxu0 %v1310
        %3333 = vmatpush.msra.mxu0 %v1306
        %3334 = vmatpush.msra.mxu0 %v1302
        %3335 = vmatpush.msra.mxu0 %v1298
        %3336 = vmatmul.f32.gmra.mxu0 %v286
        %v3337 = vpop.f32.mrf.mxu0
        %v3338 = vadd.f32 %v3297, %v3337
        %3339 = vmatmul.f32.gmra.mxu0 %v302
        %v3340 = vpop.f32.mrf.mxu0
        %v3341 = vadd.f32 %v3300, %v3340
        %3342 = vmatmul.f32.gmra.mxu0 %v318
        %v3343 = vpop.f32.mrf.mxu0
        %v3344 = vadd.f32 %v3303, %v3343
        %3345 = vmatmul.f32.gmra.mxu0 %v334
        %v3346 = vpop.f32.mrf.mxu0
        %v3347 = vadd.f32 %v3306, %v3346
        %3348 = vmatmul.f32.gmra.mxu0 %v350
        %v3349 = vpop.f32.mrf.mxu0
        %v3350 = vadd.f32 %v3309, %v3349
        %3351 = vmatmul.f32.gmra.mxu0 %v366
        %v3352 = vpop.f32.mrf.mxu0
        %v3353 = vadd.f32 %v3312, %v3352
        %3354 = vmatmul.f32.gmra.mxu0 %v382
        %v3355 = vpop.f32.mrf.mxu0
        %v3356 = vadd.f32 %v3315, %v3355
        %3357 = vmatmul.f32.gmra.mxu0 %v398
        %v3358 = vpop.f32.mrf.mxu0
        %v3359 = vadd.f32 %v3318, %v3358
        %3360 = vdwg.mxu0
        %3361 = vmatpush.msra.mxu0 %v1422
        %3362 = vmatpush.msra.mxu0 %v1418
        %3363 = vmatpush.msra.mxu0 %v1414
        %3364 = vmatpush.msra.mxu0 %v1410
        %3365 = vmatpush.msra.mxu0 %v1406
        %3366 = vmatpush.msra.mxu0 %v1402
        %3367 = vmatpush.msra.mxu0 %v1398
        %3368 = vmatpush.msra.mxu0 %v1394
        %3369 = vmatpush.msra.mxu0 %v1390
        %3370 = vmatpush.msra.mxu0 %v1386
        %3371 = vmatpush.msra.mxu0 %v1382
        %3372 = vmatpush.msra.mxu0 %v1378
        %3373 = vmatpush.msra.mxu0 %v1374
        %3374 = vmatpush.msra.mxu0 %v1370
        %3375 = vmatpush.msra.mxu0 %v1366
        %3376 = vmatpush.msra.mxu0 %v1362
        %3377 = vmatmul.f32.gmra.mxu0 %v287
        %v3378 = vpop.f32.mrf.mxu0
        %v3379 = vadd.f32 %v3338, %v3378
        %3380 = vmatmul.f32.gmra.mxu0 %v303
        %v3381 = vpop.f32.mrf.mxu0
        %v3382 = vadd.f32 %v3341, %v3381
        %3383 = vmatmul.f32.gmra.mxu0 %v319
        %v3384 = vpop.f32.mrf.mxu0
        %v3385 = vadd.f32 %v3344, %v3384
        %3386 = vmatmul.f32.gmra.mxu0 %v335
        %v3387 = vpop.f32.mrf.mxu0
        %v3388 = vadd.f32 %v3347, %v3387
        %3389 = vmatmul.f32.gmra.mxu0 %v351
        %v3390 = vpop.f32.mrf.mxu0
        %v3391 = vadd.f32 %v3350, %v3390
        %3392 = vmatmul.f32.gmra.mxu0 %v367
        %v3393 = vpop.f32.mrf.mxu0
        %v3394 = vadd.f32 %v3353, %v3393
        %3395 = vmatmul.f32.gmra.mxu0 %v383
        %v3396 = vpop.f32.mrf.mxu0
        %v3397 = vadd.f32 %v3356, %v3396
        %3398 = vmatmul.f32.gmra.mxu0 %v399
        %v3399 = vpop.f32.mrf.mxu0
        %v3400 = vadd.f32 %v3359, %v3399
        %3401 = vdwg.mxu0
        %3402 = vmatpush.msra.mxu0 %v463
        %3403 = vmatpush.msra.mxu0 %v459
        %3404 = vmatpush.msra.mxu0 %v455
        %3405 = vmatpush.msra.mxu0 %v451
        %3406 = vmatpush.msra.mxu0 %v447
        %3407 = vmatpush.msra.mxu0 %v443
        %3408 = vmatpush.msra.mxu0 %v439
        %3409 = vmatpush.msra.mxu0 %v435
        %3410 = vmatpush.msra.mxu0 %v431
        %3411 = vmatpush.msra.mxu0 %v427
        %3412 = vmatpush.msra.mxu0 %v423
        %3413 = vmatpush.msra.mxu0 %v419
        %3414 = vmatpush.msra.mxu0 %v415
        %3415 = vmatpush.msra.mxu0 %v411
        %3416 = vmatpush.msra.mxu0 %v407
        %3417 = vmatpush.msra.mxu0 %v403
        %3418 = vmatmul.f32.gmra.mxu0 %v272
        %v3419 = vpop.f32.mrf.mxu0
        %v3420 = vadd.f32 %v1429, %v3419
        %3421 = vmatmul.f32.gmra.mxu0 %v288
        %v3422 = vpop.f32.mrf.mxu0
        %v3423 = vadd.f32 %v1429, %v3422
        %3424 = vmatmul.f32.gmra.mxu0 %v304
        %v3425 = vpop.f32.mrf.mxu0
        %v3426 = vadd.f32 %v1429, %v3425
        %3427 = vmatmul.f32.gmra.mxu0 %v320
        %v3428 = vpop.f32.mrf.mxu0
        %v3429 = vadd.f32 %v1429, %v3428
        %3430 = vmatmul.f32.gmra.mxu0 %v336
        %v3431 = vpop.f32.mrf.mxu0
        %v3432 = vadd.f32 %v1429, %v3431
        %3433 = vmatmul.f32.gmra.mxu0 %v352
        %v3434 = vpop.f32.mrf.mxu0
        %v3435 = vadd.f32 %v1429, %v3434
        %3436 = vmatmul.f32.gmra.mxu0 %v368
        %v3437 = vpop.f32.mrf.mxu0
        %v3438 = vadd.f32 %v1429, %v3437
        %3439 = vmatmul.f32.gmra.mxu0 %v384
        %v3440 = vpop.f32.mrf.mxu0
        %v3441 = vadd.f32 %v1429, %v3440
        %3442 = vdwg.mxu0
        %3443 = vmatpush.msra.mxu0 %v527
        %3444 = vmatpush.msra.mxu0 %v523
        %3445 = vmatpush.msra.mxu0 %v519
        %3446 = vmatpush.msra.mxu0 %v515
        %3447 = vmatpush.msra.mxu0 %v511
        %3448 = vmatpush.msra.mxu0 %v507
        %3449 = vmatpush.msra.mxu0 %v503
        %3450 = vmatpush.msra.mxu0 %v499
        %3451 = vmatpush.msra.mxu0 %v495
        %3452 = vmatpush.msra.mxu0 %v491
        %3453 = vmatpush.msra.mxu0 %v487
        %3454 = vmatpush.msra.mxu0 %v483
        %3455 = vmatpush.msra.mxu0 %v479
        %3456 = vmatpush.msra.mxu0 %v475
        %3457 = vmatpush.msra.mxu0 %v471
        %3458 = vmatpush.msra.mxu0 %v467
        %3459 = vmatmul.f32.gmra.mxu0 %v273
        %v3460 = vpop.f32.mrf.mxu0
        %v3461 = vadd.f32 %v3420, %v3460
        %3462 = vmatmul.f32.gmra.mxu0 %v289
        %v3463 = vpop.f32.mrf.mxu0
        %v3464 = vadd.f32 %v3423, %v3463
        %3465 = vmatmul.f32.gmra.mxu0 %v305
        %v3466 = vpop.f32.mrf.mxu0
        %v3467 = vadd.f32 %v3426, %v3466
        %3468 = vmatmul.f32.gmra.mxu0 %v321
        %v3469 = vpop.f32.mrf.mxu0
        %v3470 = vadd.f32 %v3429, %v3469
        %3471 = vmatmul.f32.gmra.mxu0 %v337
        %v3472 = vpop.f32.mrf.mxu0
        %v3473 = vadd.f32 %v3432, %v3472
        %3474 = vmatmul.f32.gmra.mxu0 %v353
        %v3475 = vpop.f32.mrf.mxu0
        %v3476 = vadd.f32 %v3435, %v3475
        %3477 = vmatmul.f32.gmra.mxu0 %v369
        %v3478 = vpop.f32.mrf.mxu0
        %v3479 = vadd.f32 %v3438, %v3478
        %3480 = vmatmul.f32.gmra.mxu0 %v385
        %v3481 = vpop.f32.mrf.mxu0
        %v3482 = vadd.f32 %v3441, %v3481
        %3483 = vdwg.mxu0
        %3484 = vmatpush.msra.mxu0 %v591
        %3485 = vmatpush.msra.mxu0 %v587
        %3486 = vmatpush.msra.mxu0 %v583
        %3487 = vmatpush.msra.mxu0 %v579
        %3488 = vmatpush.msra.mxu0 %v575
        %3489 = vmatpush.msra.mxu0 %v571
        %3490 = vmatpush.msra.mxu0 %v567
        %3491 = vmatpush.msra.mxu0 %v563
        %3492 = vmatpush.msra.mxu0 %v559
        %3493 = vmatpush.msra.mxu0 %v555
        %3494 = vmatpush.msra.mxu0 %v551
        %3495 = vmatpush.msra.mxu0 %v547
        %3496 = vmatpush.msra.mxu0 %v543
        %3497 = vmatpush.msra.mxu0 %v539
        %3498 = vmatpush.msra.mxu0 %v535
        %3499 = vmatpush.msra.mxu0 %v531
        %3500 = vmatmul.f32.gmra.mxu0 %v274
        %v3501 = vpop.f32.mrf.mxu0
        %v3502 = vadd.f32 %v3461, %v3501
        %3503 = vmatmul.f32.gmra.mxu0 %v290
        %v3504 = vpop.f32.mrf.mxu0
        %v3505 = vadd.f32 %v3464, %v3504
        %3506 = vmatmul.f32.gmra.mxu0 %v306
        %v3507 = vpop.f32.mrf.mxu0
        %v3508 = vadd.f32 %v3467, %v3507
        %3509 = vmatmul.f32.gmra.mxu0 %v322
        %v3510 = vpop.f32.mrf.mxu0
        %v3511 = vadd.f32 %v3470, %v3510
        %3512 = vmatmul.f32.gmra.mxu0 %v338
        %v3513 = vpop.f32.mrf.mxu0
        %v3514 = vadd.f32 %v3473, %v3513
        %3515 = vmatmul.f32.gmra.mxu0 %v354
        %v3516 = vpop.f32.mrf.mxu0
        %v3517 = vadd.f32 %v3476, %v3516
        %3518 = vmatmul.f32.gmra.mxu0 %v370
        %v3519 = vpop.f32.mrf.mxu0
        %v3520 = vadd.f32 %v3479, %v3519
        %3521 = vmatmul.f32.gmra.mxu0 %v386
        %v3522 = vpop.f32.mrf.mxu0
        %v3523 = vadd.f32 %v3482, %v3522
        %3524 = vdwg.mxu0
        %3525 = vmatpush.msra.mxu0 %v655
        %3526 = vmatpush.msra.mxu0 %v651
        %3527 = vmatpush.msra.mxu0 %v647
        %3528 = vmatpush.msra.mxu0 %v643
        %3529 = vmatpush.msra.mxu0 %v639
        %3530 = vmatpush.msra.mxu0 %v635
        %3531 = vmatpush.msra.mxu0 %v631
        %3532 = vmatpush.msra.mxu0 %v627
        %3533 = vmatpush.msra.mxu0 %v623
        %3534 = vmatpush.msra.mxu0 %v619
        %3535 = vmatpush.msra.mxu0 %v615
        %3536 = vmatpush.msra.mxu0 %v611
        %3537 = vmatpush.msra.mxu0 %v607
        %3538 = vmatpush.msra.mxu0 %v603
        %3539 = vmatpush.msra.mxu0 %v599
        %3540 = vmatpush.msra.mxu0 %v595
        %3541 = vmatmul.f32.gmra.mxu0 %v275
        %v3542 = vpop.f32.mrf.mxu0
        %v3543 = vadd.f32 %v3502, %v3542
        %3544 = vmatmul.f32.gmra.mxu0 %v291
        %v3545 = vpop.f32.mrf.mxu0
        %v3546 = vadd.f32 %v3505, %v3545
        %3547 = vmatmul.f32.gmra.mxu0 %v307
        %v3548 = vpop.f32.mrf.mxu0
        %v3549 = vadd.f32 %v3508, %v3548
        %3550 = vmatmul.f32.gmra.mxu0 %v323
        %v3551 = vpop.f32.mrf.mxu0
        %v3552 = vadd.f32 %v3511, %v3551
        %3553 = vmatmul.f32.gmra.mxu0 %v339
        %v3554 = vpop.f32.mrf.mxu0
        %v3555 = vadd.f32 %v3514, %v3554
        %3556 = vmatmul.f32.gmra.mxu0 %v355
        %v3557 = vpop.f32.mrf.mxu0
        %v3558 = vadd.f32 %v3517, %v3557
        %3559 = vmatmul.f32.gmra.mxu0 %v371
        %v3560 = vpop.f32.mrf.mxu0
        %v3561 = vadd.f32 %v3520, %v3560
        %3562 = vmatmul.f32.gmra.mxu0 %v387
        %v3563 = vpop.f32.mrf.mxu0
        %v3564 = vadd.f32 %v3523, %v3563
        %3565 = vdwg.mxu0
        %3566 = vmatpush.msra.mxu0 %v719
        %3567 = vmatpush.msra.mxu0 %v715
        %3568 = vmatpush.msra.mxu0 %v711
        %3569 = vmatpush.msra.mxu0 %v707
        %3570 = vmatpush.msra.mxu0 %v703
        %3571 = vmatpush.msra.mxu0 %v699
        %3572 = vmatpush.msra.mxu0 %v695
        %3573 = vmatpush.msra.mxu0 %v691
        %3574 = vmatpush.msra.mxu0 %v687
        %3575 = vmatpush.msra.mxu0 %v683
        %3576 = vmatpush.msra.mxu0 %v679
        %3577 = vmatpush.msra.mxu0 %v675
        %3578 = vmatpush.msra.mxu0 %v671
        %3579 = vmatpush.msra.mxu0 %v667
        %3580 = vmatpush.msra.mxu0 %v663
        %3581 = vmatpush.msra.mxu0 %v659
        %3582 = vmatmul.f32.gmra.mxu0 %v276
        %v3583 = vpop.f32.mrf.mxu0
        %v3584 = vadd.f32 %v3543, %v3583
        %3585 = vmatmul.f32.gmra.mxu0 %v292
        %v3586 = vpop.f32.mrf.mxu0
        %v3587 = vadd.f32 %v3546, %v3586
        %3588 = vmatmul.f32.gmra.mxu0 %v308
        %v3589 = vpop.f32.mrf.mxu0
        %v3590 = vadd.f32 %v3549, %v3589
        %3591 = vmatmul.f32.gmra.mxu0 %v324
        %v3592 = vpop.f32.mrf.mxu0
        %v3593 = vadd.f32 %v3552, %v3592
        %3594 = vmatmul.f32.gmra.mxu0 %v340
        %v3595 = vpop.f32.mrf.mxu0
        %v3596 = vadd.f32 %v3555, %v3595
        %3597 = vmatmul.f32.gmra.mxu0 %v356
        %v3598 = vpop.f32.mrf.mxu0
        %v3599 = vadd.f32 %v3558, %v3598
        %3600 = vmatmul.f32.gmra.mxu0 %v372
        %v3601 = vpop.f32.mrf.mxu0
        %v3602 = vadd.f32 %v3561, %v3601
        %3603 = vmatmul.f32.gmra.mxu0 %v388
        %v3604 = vpop.f32.mrf.mxu0
        %v3605 = vadd.f32 %v3564, %v3604
        %3606 = vdwg.mxu0
        %3607 = vmatpush.msra.mxu0 %v783
        %3608 = vmatpush.msra.mxu0 %v779
        %3609 = vmatpush.msra.mxu0 %v775
        %3610 = vmatpush.msra.mxu0 %v771
        %3611 = vmatpush.msra.mxu0 %v767
        %3612 = vmatpush.msra.mxu0 %v763
        %3613 = vmatpush.msra.mxu0 %v759
        %3614 = vmatpush.msra.mxu0 %v755
        %3615 = vmatpush.msra.mxu0 %v751
        %3616 = vmatpush.msra.mxu0 %v747
        %3617 = vmatpush.msra.mxu0 %v743
        %3618 = vmatpush.msra.mxu0 %v739
        %3619 = vmatpush.msra.mxu0 %v735
        %3620 = vmatpush.msra.mxu0 %v731
        %3621 = vmatpush.msra.mxu0 %v727
        %3622 = vmatpush.msra.mxu0 %v723
        %3623 = vmatmul.f32.gmra.mxu0 %v277
        %v3624 = vpop.f32.mrf.mxu0
        %v3625 = vadd.f32 %v3584, %v3624
        %3626 = vmatmul.f32.gmra.mxu0 %v293
        %v3627 = vpop.f32.mrf.mxu0
        %v3628 = vadd.f32 %v3587, %v3627
        %3629 = vmatmul.f32.gmra.mxu0 %v309
        %v3630 = vpop.f32.mrf.mxu0
        %v3631 = vadd.f32 %v3590, %v3630
        %3632 = vmatmul.f32.gmra.mxu0 %v325
        %v3633 = vpop.f32.mrf.mxu0
        %v3634 = vadd.f32 %v3593, %v3633
        %3635 = vmatmul.f32.gmra.mxu0 %v341
        %v3636 = vpop.f32.mrf.mxu0
        %v3637 = vadd.f32 %v3596, %v3636
        %3638 = vmatmul.f32.gmra.mxu0 %v357
        %v3639 = vpop.f32.mrf.mxu0
        %v3640 = vadd.f32 %v3599, %v3639
        %3641 = vmatmul.f32.gmra.mxu0 %v373
        %v3642 = vpop.f32.mrf.mxu0
        %v3643 = vadd.f32 %v3602, %v3642
        %3644 = vmatmul.f32.gmra.mxu0 %v389
        %v3645 = vpop.f32.mrf.mxu0
        %v3646 = vadd.f32 %v3605, %v3645
        %3647 = vdwg.mxu0
        %3648 = vmatpush.msra.mxu0 %v847
        %3649 = vmatpush.msra.mxu0 %v843
        %3650 = vmatpush.msra.mxu0 %v839
        %3651 = vmatpush.msra.mxu0 %v835
        %3652 = vmatpush.msra.mxu0 %v831
        %3653 = vmatpush.msra.mxu0 %v827
        %3654 = vmatpush.msra.mxu0 %v823
        %3655 = vmatpush.msra.mxu0 %v819
        %3656 = vmatpush.msra.mxu0 %v815
        %3657 = vmatpush.msra.mxu0 %v811
        %3658 = vmatpush.msra.mxu0 %v807
        %3659 = vmatpush.msra.mxu0 %v803
        %3660 = vmatpush.msra.mxu0 %v799
        %3661 = vmatpush.msra.mxu0 %v795
        %3662 = vmatpush.msra.mxu0 %v791
        %3663 = vmatpush.msra.mxu0 %v787
        %3664 = vmatmul.f32.gmra.mxu0 %v278
        %v3665 = vpop.f32.mrf.mxu0
        %v3666 = vadd.f32 %v3625, %v3665
        %3667 = vmatmul.f32.gmra.mxu0 %v294
        %v3668 = vpop.f32.mrf.mxu0
        %v3669 = vadd.f32 %v3628, %v3668
        %3670 = vmatmul.f32.gmra.mxu0 %v310
        %v3671 = vpop.f32.mrf.mxu0
        %v3672 = vadd.f32 %v3631, %v3671
        %3673 = vmatmul.f32.gmra.mxu0 %v326
        %v3674 = vpop.f32.mrf.mxu0
        %v3675 = vadd.f32 %v3634, %v3674
        %3676 = vmatmul.f32.gmra.mxu0 %v342
        %v3677 = vpop.f32.mrf.mxu0
        %v3678 = vadd.f32 %v3637, %v3677
        %3679 = vmatmul.f32.gmra.mxu0 %v358
        %v3680 = vpop.f32.mrf.mxu0
        %v3681 = vadd.f32 %v3640, %v3680
        %3682 = vmatmul.f32.gmra.mxu0 %v374
        %v3683 = vpop.f32.mrf.mxu0
        %v3684 = vadd.f32 %v3643, %v3683
        %3685 = vmatmul.f32.gmra.mxu0 %v390
        %v3686 = vpop.f32.mrf.mxu0
        %v3687 = vadd.f32 %v3646, %v3686
        %3688 = vdwg.mxu0
        %3689 = vmatpush.msra.mxu0 %v911
        %3690 = vmatpush.msra.mxu0 %v907
        %3691 = vmatpush.msra.mxu0 %v903
        %3692 = vmatpush.msra.mxu0 %v899
        %3693 = vmatpush.msra.mxu0 %v895
        %3694 = vmatpush.msra.mxu0 %v891
        %3695 = vmatpush.msra.mxu0 %v887
        %3696 = vmatpush.msra.mxu0 %v883
        %3697 = vmatpush.msra.mxu0 %v879
        %3698 = vmatpush.msra.mxu0 %v875
        %3699 = vmatpush.msra.mxu0 %v871
        %3700 = vmatpush.msra.mxu0 %v867
        %3701 = vmatpush.msra.mxu0 %v863
        %3702 = vmatpush.msra.mxu0 %v859
        %3703 = vmatpush.msra.mxu0 %v855
        %3704 = vmatpush.msra.mxu0 %v851
        %3705 = vmatmul.f32.gmra.mxu0 %v279
        %v3706 = vpop.f32.mrf.mxu0
        %v3707 = vadd.f32 %v3666, %v3706
        %3708 = vmatmul.f32.gmra.mxu0 %v295
        %v3709 = vpop.f32.mrf.mxu0
        %v3710 = vadd.f32 %v3669, %v3709
        %3711 = vmatmul.f32.gmra.mxu0 %v311
        %v3712 = vpop.f32.mrf.mxu0
        %v3713 = vadd.f32 %v3672, %v3712
        %3714 = vmatmul.f32.gmra.mxu0 %v327
        %v3715 = vpop.f32.mrf.mxu0
        %v3716 = vadd.f32 %v3675, %v3715
        %3717 = vmatmul.f32.gmra.mxu0 %v343
        %v3718 = vpop.f32.mrf.mxu0
        %v3719 = vadd.f32 %v3678, %v3718
        %3720 = vmatmul.f32.gmra.mxu0 %v359
        %v3721 = vpop.f32.mrf.mxu0
        %v3722 = vadd.f32 %v3681, %v3721
        %3723 = vmatmul.f32.gmra.mxu0 %v375
        %v3724 = vpop.f32.mrf.mxu0
        %v3725 = vadd.f32 %v3684, %v3724
        %3726 = vmatmul.f32.gmra.mxu0 %v391
        %v3727 = vpop.f32.mrf.mxu0
        %v3728 = vadd.f32 %v3687, %v3727
        %3729 = vdwg.mxu0
        %3730 = vmatpush.msra.mxu0 %v975
        %3731 = vmatpush.msra.mxu0 %v971
        %3732 = vmatpush.msra.mxu0 %v967
        %3733 = vmatpush.msra.mxu0 %v963
        %3734 = vmatpush.msra.mxu0 %v959
        %3735 = vmatpush.msra.mxu0 %v955
        %3736 = vmatpush.msra.mxu0 %v951
        %3737 = vmatpush.msra.mxu0 %v947
        %3738 = vmatpush.msra.mxu0 %v943
        %3739 = vmatpush.msra.mxu0 %v939
        %3740 = vmatpush.msra.mxu0 %v935
        %3741 = vmatpush.msra.mxu0 %v931
        %3742 = vmatpush.msra.mxu0 %v927
        %3743 = vmatpush.msra.mxu0 %v923
        %3744 = vmatpush.msra.mxu0 %v919
        %3745 = vmatpush.msra.mxu0 %v915
        %3746 = vmatmul.f32.gmra.mxu0 %v280
        %v3747 = vpop.f32.mrf.mxu0
        %v3748 = vadd.f32 %v3707, %v3747
        %3749 = vmatmul.f32.gmra.mxu0 %v296
        %v3750 = vpop.f32.mrf.mxu0
        %v3751 = vadd.f32 %v3710, %v3750
        %3752 = vmatmul.f32.gmra.mxu0 %v312
        %v3753 = vpop.f32.mrf.mxu0
        %v3754 = vadd.f32 %v3713, %v3753
        %3755 = vmatmul.f32.gmra.mxu0 %v328
        %v3756 = vpop.f32.mrf.mxu0
        %v3757 = vadd.f32 %v3716, %v3756
        %3758 = vmatmul.f32.gmra.mxu0 %v344
        %v3759 = vpop.f32.mrf.mxu0
        %v3760 = vadd.f32 %v3719, %v3759
        %3761 = vmatmul.f32.gmra.mxu0 %v360
        %v3762 = vpop.f32.mrf.mxu0
        %v3763 = vadd.f32 %v3722, %v3762
        %3764 = vmatmul.f32.gmra.mxu0 %v376
        %v3765 = vpop.f32.mrf.mxu0
        %v3766 = vadd.f32 %v3725, %v3765
        %3767 = vmatmul.f32.gmra.mxu0 %v392
        %v3768 = vpop.f32.mrf.mxu0
        %v3769 = vadd.f32 %v3728, %v3768
        %3770 = vdwg.mxu0
        %3771 = vmatpush.msra.mxu0 %v1039
        %3772 = vmatpush.msra.mxu0 %v1035
        %3773 = vmatpush.msra.mxu0 %v1031
        %3774 = vmatpush.msra.mxu0 %v1027
        %3775 = vmatpush.msra.mxu0 %v1023
        %3776 = vmatpush.msra.mxu0 %v1019
        %3777 = vmatpush.msra.mxu0 %v1015
        %3778 = vmatpush.msra.mxu0 %v1011
        %3779 = vmatpush.msra.mxu0 %v1007
        %3780 = vmatpush.msra.mxu0 %v1003
        %3781 = vmatpush.msra.mxu0 %v999
        %3782 = vmatpush.msra.mxu0 %v995
        %3783 = vmatpush.msra.mxu0 %v991
        %3784 = vmatpush.msra.mxu0 %v987
        %3785 = vmatpush.msra.mxu0 %v983
        %3786 = vmatpush.msra.mxu0 %v979
        %3787 = vmatmul.f32.gmra.mxu0 %v281
        %v3788 = vpop.f32.mrf.mxu0
        %v3789 = vadd.f32 %v3748, %v3788
        %3790 = vmatmul.f32.gmra.mxu0 %v297
        %v3791 = vpop.f32.mrf.mxu0
        %v3792 = vadd.f32 %v3751, %v3791
        %3793 = vmatmul.f32.gmra.mxu0 %v313
        %v3794 = vpop.f32.mrf.mxu0
        %v3795 = vadd.f32 %v3754, %v3794
        %3796 = vmatmul.f32.gmra.mxu0 %v329
        %v3797 = vpop.f32.mrf.mxu0
        %v3798 = vadd.f32 %v3757, %v3797
        %3799 = vmatmul.f32.gmra.mxu0 %v345
        %v3800 = vpop.f32.mrf.mxu0
        %v3801 = vadd.f32 %v3760, %v3800
        %3802 = vmatmul.f32.gmra.mxu0 %v361
        %v3803 = vpop.f32.mrf.mxu0
        %v3804 = vadd.f32 %v3763, %v3803
        %3805 = vmatmul.f32.gmra.mxu0 %v377
        %v3806 = vpop.f32.mrf.mxu0
        %v3807 = vadd.f32 %v3766, %v3806
        %3808 = vmatmul.f32.gmra.mxu0 %v393
        %v3809 = vpop.f32.mrf.mxu0
        %v3810 = vadd.f32 %v3769, %v3809
        %3811 = vdwg.mxu0
        %3812 = vmatpush.msra.mxu0 %v1103
        %3813 = vmatpush.msra.mxu0 %v1099
        %3814 = vmatpush.msra.mxu0 %v1095
        %3815 = vmatpush.msra.mxu0 %v1091
        %3816 = vmatpush.msra.mxu0 %v1087
        %3817 = vmatpush.msra.mxu0 %v1083
        %3818 = vmatpush.msra.mxu0 %v1079
        %3819 = vmatpush.msra.mxu0 %v1075
        %3820 = vmatpush.msra.mxu0 %v1071
        %3821 = vmatpush.msra.mxu0 %v1067
        %3822 = vmatpush.msra.mxu0 %v1063
        %3823 = vmatpush.msra.mxu0 %v1059
        %3824 = vmatpush.msra.mxu0 %v1055
        %3825 = vmatpush.msra.mxu0 %v1051
        %3826 = vmatpush.msra.mxu0 %v1047
        %3827 = vmatpush.msra.mxu0 %v1043
        %3828 = vmatmul.f32.gmra.mxu0 %v282
        %v3829 = vpop.f32.mrf.mxu0
        %v3830 = vadd.f32 %v3789, %v3829
        %3831 = vmatmul.f32.gmra.mxu0 %v298
        %v3832 = vpop.f32.mrf.mxu0
        %v3833 = vadd.f32 %v3792, %v3832
        %3834 = vmatmul.f32.gmra.mxu0 %v314
        %v3835 = vpop.f32.mrf.mxu0
        %v3836 = vadd.f32 %v3795, %v3835
        %3837 = vmatmul.f32.gmra.mxu0 %v330
        %v3838 = vpop.f32.mrf.mxu0
        %v3839 = vadd.f32 %v3798, %v3838
        %3840 = vmatmul.f32.gmra.mxu0 %v346
        %v3841 = vpop.f32.mrf.mxu0
        %v3842 = vadd.f32 %v3801, %v3841
        %3843 = vmatmul.f32.gmra.mxu0 %v362
        %v3844 = vpop.f32.mrf.mxu0
        %v3845 = vadd.f32 %v3804, %v3844
        %3846 = vmatmul.f32.gmra.mxu0 %v378
        %v3847 = vpop.f32.mrf.mxu0
        %v3848 = vadd.f32 %v3807, %v3847
        %3849 = vmatmul.f32.gmra.mxu0 %v394
        %v3850 = vpop.f32.mrf.mxu0
        %v3851 = vadd.f32 %v3810, %v3850
        %3852 = vdwg.mxu0
        %3853 = vmatpush.msra.mxu0 %v1167
        %3854 = vmatpush.msra.mxu0 %v1163
        %3855 = vmatpush.msra.mxu0 %v1159
        %3856 = vmatpush.msra.mxu0 %v1155
        %3857 = vmatpush.msra.mxu0 %v1151
        %3858 = vmatpush.msra.mxu0 %v1147
        %3859 = vmatpush.msra.mxu0 %v1143
        %3860 = vmatpush.msra.mxu0 %v1139
        %3861 = vmatpush.msra.mxu0 %v1135
        %3862 = vmatpush.msra.mxu0 %v1131
        %3863 = vmatpush.msra.mxu0 %v1127
        %3864 = vmatpush.msra.mxu0 %v1123
        %3865 = vmatpush.msra.mxu0 %v1119
        %3866 = vmatpush.msra.mxu0 %v1115
        %3867 = vmatpush.msra.mxu0 %v1111
        %3868 = vmatpush.msra.mxu0 %v1107
        %3869 = vmatmul.f32.gmra.mxu0 %v283
        %v3870 = vpop.f32.mrf.mxu0
        %v3871 = vadd.f32 %v3830, %v3870
        %3872 = vmatmul.f32.gmra.mxu0 %v299
        %v3873 = vpop.f32.mrf.mxu0
        %v3874 = vadd.f32 %v3833, %v3873
        %3875 = vmatmul.f32.gmra.mxu0 %v315
        %v3876 = vpop.f32.mrf.mxu0
        %v3877 = vadd.f32 %v3836, %v3876
        %3878 = vmatmul.f32.gmra.mxu0 %v331
        %v3879 = vpop.f32.mrf.mxu0
        %v3880 = vadd.f32 %v3839, %v3879
        %3881 = vmatmul.f32.gmra.mxu0 %v347
        %v3882 = vpop.f32.mrf.mxu0
        %v3883 = vadd.f32 %v3842, %v3882
        %3884 = vmatmul.f32.gmra.mxu0 %v363
        %v3885 = vpop.f32.mrf.mxu0
        %v3886 = vadd.f32 %v3845, %v3885
        %3887 = vmatmul.f32.gmra.mxu0 %v379
        %v3888 = vpop.f32.mrf.mxu0
        %v3889 = vadd.f32 %v3848, %v3888
        %3890 = vmatmul.f32.gmra.mxu0 %v395
        %v3891 = vpop.f32.mrf.mxu0
        %v3892 = vadd.f32 %v3851, %v3891
        %3893 = vdwg.mxu0
        %3894 = vmatpush.msra.mxu0 %v1231
        %3895 = vmatpush.msra.mxu0 %v1227
        %3896 = vmatpush.msra.mxu0 %v1223
        %3897 = vmatpush.msra.mxu0 %v1219
        %3898 = vmatpush.msra.mxu0 %v1215
        %3899 = vmatpush.msra.mxu0 %v1211
        %3900 = vmatpush.msra.mxu0 %v1207
        %3901 = vmatpush.msra.mxu0 %v1203
        %3902 = vmatpush.msra.mxu0 %v1199
        %3903 = vmatpush.msra.mxu0 %v1195
        %3904 = vmatpush.msra.mxu0 %v1191
        %3905 = vmatpush.msra.mxu0 %v1187
        %3906 = vmatpush.msra.mxu0 %v1183
        %3907 = vmatpush.msra.mxu0 %v1179
        %3908 = vmatpush.msra.mxu0 %v1175
        %3909 = vmatpush.msra.mxu0 %v1171
        %3910 = vmatmul.f32.gmra.mxu0 %v284
        %v3911 = vpop.f32.mrf.mxu0
        %v3912 = vadd.f32 %v3871, %v3911
        %3913 = vmatmul.f32.gmra.mxu0 %v300
        %v3914 = vpop.f32.mrf.mxu0
        %v3915 = vadd.f32 %v3874, %v3914
        %3916 = vmatmul.f32.gmra.mxu0 %v316
        %v3917 = vpop.f32.mrf.mxu0
        %v3918 = vadd.f32 %v3877, %v3917
        %3919 = vmatmul.f32.gmra.mxu0 %v332
        %v3920 = vpop.f32.mrf.mxu0
        %v3921 = vadd.f32 %v3880, %v3920
        %3922 = vmatmul.f32.gmra.mxu0 %v348
        %v3923 = vpop.f32.mrf.mxu0
        %v3924 = vadd.f32 %v3883, %v3923
        %3925 = vmatmul.f32.gmra.mxu0 %v364
        %v3926 = vpop.f32.mrf.mxu0
        %v3927 = vadd.f32 %v3886, %v3926
        %3928 = vmatmul.f32.gmra.mxu0 %v380
        %v3929 = vpop.f32.mrf.mxu0
        %v3930 = vadd.f32 %v3889, %v3929
        %3931 = vmatmul.f32.gmra.mxu0 %v396
        %v3932 = vpop.f32.mrf.mxu0
        %v3933 = vadd.f32 %v3892, %v3932
        %3934 = vdwg.mxu0
        %3935 = vmatpush.msra.mxu0 %v1295
        %3936 = vmatpush.msra.mxu0 %v1291
        %3937 = vmatpush.msra.mxu0 %v1287
        %3938 = vmatpush.msra.mxu0 %v1283
        %3939 = vmatpush.msra.mxu0 %v1279
        %3940 = vmatpush.msra.mxu0 %v1275
        %3941 = vmatpush.msra.mxu0 %v1271
        %3942 = vmatpush.msra.mxu0 %v1267
        %3943 = vmatpush.msra.mxu0 %v1263
        %3944 = vmatpush.msra.mxu0 %v1259
        %3945 = vmatpush.msra.mxu0 %v1255
        %3946 = vmatpush.msra.mxu0 %v1251
        %3947 = vmatpush.msra.mxu0 %v1247
        %3948 = vmatpush.msra.mxu0 %v1243
        %3949 = vmatpush.msra.mxu0 %v1239
        %3950 = vmatpush.msra.mxu0 %v1235
        %3951 = vmatmul.f32.gmra.mxu0 %v285
        %v3952 = vpop.f32.mrf.mxu0
        %v3953 = vadd.f32 %v3912, %v3952
        %3954 = vmatmul.f32.gmra.mxu0 %v301
        %v3955 = vpop.f32.mrf.mxu0
        %v3956 = vadd.f32 %v3915, %v3955
        %3957 = vmatmul.f32.gmra.mxu0 %v317
        %v3958 = vpop.f32.mrf.mxu0
        %v3959 = vadd.f32 %v3918, %v3958
        %3960 = vmatmul.f32.gmra.mxu0 %v333
        %v3961 = vpop.f32.mrf.mxu0
        %v3962 = vadd.f32 %v3921, %v3961
        %3963 = vmatmul.f32.gmra.mxu0 %v349
        %v3964 = vpop.f32.mrf.mxu0
        %v3965 = vadd.f32 %v3924, %v3964
        %3966 = vmatmul.f32.gmra.mxu0 %v365
        %v3967 = vpop.f32.mrf.mxu0
        %v3968 = vadd.f32 %v3927, %v3967
        %3969 = vmatmul.f32.gmra.mxu0 %v381
        %v3970 = vpop.f32.mrf.mxu0
        %v3971 = vadd.f32 %v3930, %v3970
        %3972 = vmatmul.f32.gmra.mxu0 %v397
        %v3973 = vpop.f32.mrf.mxu0
        %v3974 = vadd.f32 %v3933, %v3973
        %3975 = vdwg.mxu0
        %3976 = vmatpush.msra.mxu0 %v1359
        %3977 = vmatpush.msra.mxu0 %v1355
        %3978 = vmatpush.msra.mxu0 %v1351
        %3979 = vmatpush.msra.mxu0 %v1347
        %3980 = vmatpush.msra.mxu0 %v1343
        %3981 = vmatpush.msra.mxu0 %v1339
        %3982 = vmatpush.msra.mxu0 %v1335
        %3983 = vmatpush.msra.mxu0 %v1331
        %3984 = vmatpush.msra.mxu0 %v1327
        %3985 = vmatpush.msra.mxu0 %v1323
        %3986 = vmatpush.msra.mxu0 %v1319
        %3987 = vmatpush.msra.mxu0 %v1315
        %3988 = vmatpush.msra.mxu0 %v1311
        %3989 = vmatpush.msra.mxu0 %v1307
        %3990 = vmatpush.msra.mxu0 %v1303
        %3991 = vmatpush.msra.mxu0 %v1299
        %3992 = vmatmul.f32.gmra.mxu0 %v286
        %v3993 = vpop.f32.mrf.mxu0
        %v3994 = vadd.f32 %v3953, %v3993
        %3995 = vmatmul.f32.gmra.mxu0 %v302
        %v3996 = vpop.f32.mrf.mxu0
        %v3997 = vadd.f32 %v3956, %v3996
        %3998 = vmatmul.f32.gmra.mxu0 %v318
        %v3999 = vpop.f32.mrf.mxu0
        %v4000 = vadd.f32 %v3959, %v3999
        %4001 = vmatmul.f32.gmra.mxu0 %v334
        %v4002 = vpop.f32.mrf.mxu0
        %v4003 = vadd.f32 %v3962, %v4002
        %4004 = vmatmul.f32.gmra.mxu0 %v350
        %v4005 = vpop.f32.mrf.mxu0
        %v4006 = vadd.f32 %v3965, %v4005
        %4007 = vmatmul.f32.gmra.mxu0 %v366
        %v4008 = vpop.f32.mrf.mxu0
        %v4009 = vadd.f32 %v3968, %v4008
        %4010 = vmatmul.f32.gmra.mxu0 %v382
        %v4011 = vpop.f32.mrf.mxu0
        %v4012 = vadd.f32 %v3971, %v4011
        %4013 = vmatmul.f32.gmra.mxu0 %v398
        %v4014 = vpop.f32.mrf.mxu0
        %v4015 = vadd.f32 %v3974, %v4014
        %4016 = vdwg.mxu0
        %4017 = vmatpush.msra.mxu0 %v1423
        %4018 = vmatpush.msra.mxu0 %v1419
        %4019 = vmatpush.msra.mxu0 %v1415
        %4020 = vmatpush.msra.mxu0 %v1411
        %4021 = vmatpush.msra.mxu0 %v1407
        %4022 = vmatpush.msra.mxu0 %v1403
        %4023 = vmatpush.msra.mxu0 %v1399
        %4024 = vmatpush.msra.mxu0 %v1395
        %4025 = vmatpush.msra.mxu0 %v1391
        %4026 = vmatpush.msra.mxu0 %v1387
        %4027 = vmatpush.msra.mxu0 %v1383
        %4028 = vmatpush.msra.mxu0 %v1379
        %4029 = vmatpush.msra.mxu0 %v1375
        %4030 = vmatpush.msra.mxu0 %v1371
        %4031 = vmatpush.msra.mxu0 %v1367
        %4032 = vmatpush.msra.mxu0 %v1363
        %4033 = vmatmul.f32.gmra.mxu0 %v287
        %v4034 = vpop.f32.mrf.mxu0
        %v4035 = vadd.f32 %v3994, %v4034
        %4036 = vmatmul.f32.gmra.mxu0 %v303
        %v4037 = vpop.f32.mrf.mxu0
        %v4038 = vadd.f32 %v3997, %v4037
        %4039 = vmatmul.f32.gmra.mxu0 %v319
        %v4040 = vpop.f32.mrf.mxu0
        %v4041 = vadd.f32 %v4000, %v4040
        %4042 = vmatmul.f32.gmra.mxu0 %v335
        %v4043 = vpop.f32.mrf.mxu0
        %v4044 = vadd.f32 %v4003, %v4043
        %4045 = vmatmul.f32.gmra.mxu0 %v351
        %v4046 = vpop.f32.mrf.mxu0
        %v4047 = vadd.f32 %v4006, %v4046
        %4048 = vmatmul.f32.gmra.mxu0 %v367
        %v4049 = vpop.f32.mrf.mxu0
        %v4050 = vadd.f32 %v4009, %v4049
        %4051 = vmatmul.f32.gmra.mxu0 %v383
        %v4052 = vpop.f32.mrf.mxu0
        %v4053 = vadd.f32 %v4012, %v4052
        %4054 = vmatmul.f32.gmra.mxu0 %v399
        %v4055 = vpop.f32.mrf.mxu0
        %v4056 = vadd.f32 %v4015, %v4055
        %4057 = vdwg.mxu0
        %4058 = vst [vmem:[%s266] sm:$0xff] %v2067
        %4059 = vst [vmem:[%s266 + $0x8] sm:$0xff] %v2723
        %4060 = vst [vmem:[%s266 + $0x10] sm:$0xff] %v3379
        %4061 = vst [vmem:[%s266 + $0x18] sm:$0xff] %v4035
        %4062 = vst [vmem:[%s266 + $0x20] sm:$0xff] %v2070
        %4063 = vst [vmem:[%s266 + $0x28] sm:$0xff] %v2726
        %4064 = vst [vmem:[%s266 + $0x30] sm:$0xff] %v3382
        %4065 = vst [vmem:[%s266 + $0x38] sm:$0xff] %v4038
        %4066 = vst [vmem:[%s266 + $0x40] sm:$0xff] %v2073
        %4067 = vst [vmem:[%s266 + $0x48] sm:$0xff] %v2729
        %4068 = vst [vmem:[%s266 + $0x50] sm:$0xff] %v3385
        %4069 = vst [vmem:[%s266 + $0x58] sm:$0xff] %v4041
        %4070 = vst [vmem:[%s266 + $0x60] sm:$0xff] %v2076
        %4071 = vst [vmem:[%s266 + $0x68] sm:$0xff] %v2732
        %4072 = vst [vmem:[%s266 + $0x70] sm:$0xff] %v3388
        %4073 = vst [vmem:[%s266 + $0x78] sm:$0xff] %v4044
        %4074 = vst [vmem:[%s266 + $0x80] sm:$0xff] %v2079
        %4075 = vst [vmem:[%s266 + $0x88] sm:$0xff] %v2735
        %4076 = vst [vmem:[%s266 + $0x90] sm:$0xff] %v3391
        %4077 = vst [vmem:[%s266 + $0x98] sm:$0xff] %v4047
        %4078 = vst [vmem:[%s266 + $0xa0] sm:$0xff] %v2082
        %4079 = vst [vmem:[%s266 + $0xa8] sm:$0xff] %v2738
        %4080 = vst [vmem:[%s266 + $0xb0] sm:$0xff] %v3394
        %4081 = vst [vmem:[%s266 + $0xb8] sm:$0xff] %v4050
        %4082 = vst [vmem:[%s266 + $0xc0] sm:$0xff] %v2085
        %4083 = vst [vmem:[%s266 + $0xc8] sm:$0xff] %v2741
        %4084 = vst [vmem:[%s266 + $0xd0] sm:$0xff] %v3397
        %4085 = vst [vmem:[%s266 + $0xd8] sm:$0xff] %v4053
        %4086 = vst [vmem:[%s266 + $0xe0] sm:$0xff] %v2088
        %4087 = vst [vmem:[%s266 + $0xe8] sm:$0xff] %v2744
        %4088 = vst [vmem:[%s266 + $0xf0] sm:$0xff] %v3400
        %4089 = vst [vmem:[%s266 + $0xf8] sm:$0xff] %v4056
        %s4090 = sand.u32 %s121, 1
        %s4091 = scalar_lea.sflag [#allocation4], %s4090
        %s4092 = sand.u32 %s121, 1
        %s4093 = smul.addr %s4092, 256
        %s4094 = scalar_lea.vmem [#allocation8], %s4093
        // Predicated region
        $region45: #{tpu_custom_call.1} parent=31 // pred_check
          %p4095 = pneg %p131
        $region46: #{tpu_custom_call.1} parent=31 // pred_check_branch
          %4097 = sbr.rel (%p4095) target = $region48
        $region47: #{tpu_custom_call.1} parent=31 // pred_region
          %s4098 = smul.u32 8, %s26
          %s4099 = smul.u32 4, %s25
          %4101 = vsyncadd %s4091, 0
          %s4102 = smul.addr %s4098, 8
          %s4103 = sadd.s32 %s4099, %s4102
          %s4104 = smul.addr %s4103, 8
          %s4105 = scalar_lea.hbm %s3, %s4104
          %s4106 = sshll.u32 %s4094, 4
          %s4107 = int_to_ptr.vmem [resolvable:$true] %s4106
          %s4108 = sshll.u32 %s4105, 4
          %s4109 = int_to_ptr.hbm [resolvable:$true] %s4108
          %4114 = dma.vmem_to_hbm [thread:$0]  %s4107, 4096, %s4109, %s4091, 512, 1024, 32
        $region48: #{tpu_custom_call.1} parent=31 // pred_fallthru
          _
      $region32: #{tpu_custom_call.1} parent=5 // pred_fallthru
        _
      %p4115 = scmp.le.s32.totalorder 2, %s16
      // Predicated region
      $region49: #{tpu_custom_call.1} parent=5 // pred_check
        %p4116 = pneg %p4115
      $region50: #{tpu_custom_call.1} parent=5 // pred_check_branch
        %4118 = sbr.rel (%p4116) target = $region52
      $region51: #{tpu_custom_call.1} parent=5 // pred_region
        %s4119 = ssub.s32 %s16, 2
        // Predicated region
        $region53: #{tpu_custom_call.1} parent=51 // pred_check
          %p4120 = pneg %p137
        $region54: #{tpu_custom_call.1} parent=51 // pred_check_branch
          %4122 = sbr.rel (%p4120) target = $region56
        $region55: #{tpu_custom_call.1} parent=51 // pred_region
          %s4123 = sand.u32 %s122, 1
          %s4124 = scalar_lea.sflag [#allocation4], %s4123
          %s4125 = sand.u32 %s122, 1
          %s4126 = smul.addr %s4125, 256
          %s4127 = scalar_lea.vmem [#allocation8], %s4126
          %4129 = dma.done %s4124, 4096
        $region56: #{tpu_custom_call.1} parent=51 // pred_fallthru
          _
      $region52: #{tpu_custom_call.1} parent=5 // pred_fallthru
        _
    $region6: #{tpu_custom_call.1} parent=1 // loop_footer
      %s20 = sadd.s32 1, %s16
    $region7: #{tpu_custom_call.1} parent=1 // loop_footer_branch
      %15 = sbr.rel target = $region3
    $region8: #{tpu_custom_call.1} parent=1 // loop_exit
      _
    %4130 = vsyncpa [#allocation3], 1
    %s4131 = scalar_lea.sflag [#allocation3], 1
    %4132 = vsyncpa %s4131, 1
    %4133 = vsyncpa [#allocation6], 1
    %s4134 = scalar_lea.sflag [#allocation6], 1
    %4135 = vsyncpa %s4134, 1
    %4136 = vsyncpa [#allocation4], 1
    %s4137 = scalar_lea.sflag [#allocation4], 1
    %4138 = vsyncpa %s4137, 1

</llo_original>
